<compile_context>
chip_gen: v5e
topology: v5e:2x2
jax: 0.10.0
libtpu: 0.0.40
codegen_flags: <defaults>
</compile_context>

<pallas_src>
import math

import jax
import jax.numpy as jnp
from jax import lax
from jax.experimental import pallas as pl
from jax.experimental.pallas import tpu as pltpu

MIN_NORM = 1e-15
PROJ_EPS = 1e-5


# ----------------------------- small utilities -------------------------------------
def _round_up(x, m):
    return ((x + m - 1) // m) * m


def _pad_feature_dim(d):
    dp = _round_up(d, 128)
    if dp > 1024:                 # wide features get a K grid axis with tk_in = 512
        dp = _round_up(dp, 512)
    return dp


def _big_row_tile():
    try:
        kind = jax.devices()[0].device_kind.lower()
    except Exception:
        kind = ""
    # 3.2 TB/s HBM on v7x -> larger tiles amortize the ~0.35us grid-step overhead
    return 2048 if "v7" in kind else 1024


def _row_layout(n):
    """Return (padded row count, row tile) shared by both kernels."""
    big = _big_row_tile()
    if n >= 2 * big:
        return _round_up(n, big), big
    # small/medium graphs: pad to a multiple of 32 and split rows into two tiles
    # so the "parallel" row axis always has >= 2 blocks (v7x has 2 TensorCores)
    # and every bf16 block stays 16-row aligned.
    n_pad = _round_up(max(n, 32), 32)
    return n_pad, n_pad // 2


def _vmem_capacity():
    try:
        return int(pltpu.get_tpu_info().vmem_capacity_bytes)
    except Exception:
        return 128 << 20          # v5e/v6e physical VMEM fallback


def _vmem_limit(est_bytes):
    budget = int(0.8 * _vmem_capacity())   # ~102 MB on v5e/v6e, ~51 MB on v7x
    return int(min(max(2 * est_bytes, 8 << 20), budget))


# ---------------- Poincare-ball math (traced inside Pallas kernels) ----------------
# Exact reciprocals on every hyperbolic denominator (review correctness feedback);
# the kernels are HBM/XLU-bound so the extra Newton steps are hidden.
def _artanh(x):
    x = jnp.clip(x, -1.0 + 1e-7, 1.0 - 1e-7)
    return 0.5 * (jnp.log1p(x) - jnp.log1p(-x))


def _norm(x):
    return jnp.sqrt(jnp.maximum(jnp.sum(x * x, axis=-1, keepdims=True), MIN_NORM))


def _clamp_abs(x, eps=1e-10):
    sign = jnp.where(x >= 0.0, 1.0, -1.0)
    return sign * jnp.maximum(jnp.abs(x), eps)


def _project(x, c):
    norm = _norm(x)
    maxnorm = (1.0 - PROJ_EPS) / math.sqrt(c)       # host-side constant
    scaled = x * (maxnorm / norm)
    return jnp.where(norm > maxnorm, scaled, x)


def _lambda_x(x, c):
    x2 = jnp.sum(x * x, axis=-1, keepdims=True)
    return 2.0 / jnp.maximum(1.0 - c * x2, MIN_NORM)


def _expmap0(u, c):
    sqrt_c = math.sqrt(c)
    u_norm = _norm(u)
    return jnp.tanh(sqrt_c * u_norm) * u / (sqrt_c * u_norm)


def _mobius_add(x, y, c, y2=None):
    x2 = jnp.sum(x * x, axis=-1, keepdims=True)
    if y2 is None:
        y2 = jnp.sum(y * y, axis=-1, keepdims=True)
    xy = jnp.sum(x * y, axis=-1, keepdims=True)
    num = (1.0 + 2.0 * c * xy + c * y2) * x + (1.0 - c * x2) * y
    den = 1.0 + 2.0 * c * xy + c * c * x2 * y2
    return num / jnp.maximum(den, MIN_NORM)


def _mobius_scalar_mul(r, x, c):
    sqrt_c = math.sqrt(c)
    x_norm = _norm(x)
    return jnp.tanh(r * _artanh(sqrt_c * x_norm)) * x / (x_norm * sqrt_c)


def _gyro_midpoint2(a, b, w0, w1, c):
    ga = _lambda_x(a, c)
    gb = _lambda_x(b, c)
    den = w0 * (ga - 1.0) + w1 * (gb - 1.0)
    nom = w0 * ga * a + w1 * gb * b
    mid = nom / _clamp_abs(den)
    return _project(_mobius_scalar_mul(0.5, mid, c), c)


# ----------------------------- Mobius linear kernel --------------------------------
def _make_mobius_linear_kernel(c, *, use_relu, midpoint_w=None, residual_is_input=False,
                               logsoftmax_nclass=None, emit_cat_dreal=None):
    sqrt_c = math.sqrt(c)

    def epilogue(res, res_in):
        if use_relu:
            # TODO(synk): act applied directly on ball coordinates (matches prior impl)
            res = jnp.maximum(res, 0.0)
        if midpoint_w is not None:
            w0, w1 = midpoint_w
            res = _gyro_midpoint2(res, res_in, w0, w1, c)
        cat = None
        if emit_cat_dreal is not None:
            # bf16 "cat" operand for the next aggregation: [gamma*res | gamma-1]
            # (hoisted out of the (row,k) aggregation loop per review feedback).
            d_real = emit_cat_dreal
            gamma = _lambda_x(res, c)
            col = lax.broadcasted_iota(jnp.int32, res.shape, 1)
            den_col = (col == d_real).astype(res.dtype)
            cat = gamma * res + (gamma - 1.0) * den_col
        if logsoftmax_nclass is not None:
            ncls = logsoftmax_nclass
            col = lax.broadcasted_iota(jnp.int32, res.shape, 1)
            logits = jnp.where(col < ncls, res, -1e30)      # mask padded lanes
            m = jnp.max(logits, axis=-1, keepdims=True)
            z = logits - m
            lse = jnp.log(jnp.sum(jnp.exp(z), axis=-1, keepdims=True))
            res = z - lse
        return res, cat

    def body(x_ref, wt_ref, b_ref, b2_ref, o_ref, cat_ref, mx_acc, x2_acc):
        k = pl.program_id(1)

        @pl.when(k == 0)
        def _():
            mx_acc[...] = jnp.zeros_like(mx_acc)
            x2_acc[...] = jnp.zeros_like(x2_acc)

        x = x_ref[...]
        mx_acc[...] += jnp.dot(x, wt_ref[...], preferred_element_type=jnp.float32)
        x2_acc[...] += jnp.sum(x * x, axis=-1, keepdims=True)

        @pl.when(k == pl.num_programs(1) - 1)
        def _():
            mx = mx_acc[...]
            x_norm = jnp.sqrt(jnp.maximum(x2_acc[...], MIN_NORM))
            mx_norm = _norm(mx)
            ratio = mx_norm / x_norm
            res = jnp.tanh(ratio * _artanh(sqrt_c * x_norm)) * mx / (mx_norm * sqrt_c)
            # zero-row guard reuses mx_norm (no extra reduction)
            res = jnp.where(mx_norm * mx_norm <= MIN_NORM, jnp.zeros_like(res), res)
            # bias_h = project(expmap0(b)) and ||bias_h||^2 hoisted to the wrapper;
            # the redundant project() before the bias add was dropped (review).
            res = _project(_mobius_add(res, b_ref[...], c, y2=b2_ref[0, 0]), c)
            res, cat = epilogue(res, x if residual_is_input else None)
            o_ref[...] = res.astype(o_ref.dtype)
            if cat_ref is not None:
                cat_ref[...] = cat.astype(cat_ref.dtype)

    if emit_cat_dreal is not None:
        def kernel(x_ref, wt_ref, b_ref, b2_ref, o_ref, cat_ref, mx_acc, x2_acc):
            body(x_ref, wt_ref, b_ref, b2_ref, o_ref, cat_ref, mx_acc, x2_acc)
    else:
        def kernel(x_ref, wt_ref, b_ref, b2_ref, o_ref, mx_acc, x2_acc):
            body(x_ref, wt_ref, b_ref, b2_ref, o_ref, None, mx_acc, x2_acc)
    return kernel


def mobius_linear(x, wt, bias_h, bias_h2, *, c, row_tile, use_relu,
                  residual_is_input=False, midpoint_w=None,
                  logsoftmax_nclass=None, emit_cat_dreal=None):
    n_pad, din = x.shape
    dout = wt.shape[1]
    tm = min(row_tile, n_pad)
    assert n_pad % tm == 0

    # K-tiled matmul (f32 accumulate) so wide padded feature dims stay pipelined.
    tk = din if din <= 1024 else 512
    assert din % tk == 0
    kgrid = din // tk
    if midpoint_w is not None:
        assert residual_is_input, "the residual gyro-midpoint aliases the input"
    if residual_is_input:
        assert kgrid == 1 and din == dout, "aliased residual needs a single K block"

    kernel = _make_mobius_linear_kernel(
        c, use_relu=use_relu, midpoint_w=midpoint_w,
        residual_is_input=residual_is_input,
        logsoftmax_nclass=logsoftmax_nclass, emit_cat_dreal=emit_cat_dreal)

    in_specs = [
        pl.BlockSpec((tm, tk), lambda i, k: (i, k)),
        pl.BlockSpec((tk, dout), lambda i, k: (k, 0)),         # weight K-slab
        pl.BlockSpec((1, dout), lambda i, k: (0, 0)),          # hyperbolic bias
        pl.BlockSpec(memory_space=pltpu.MemorySpace.SMEM),     # ||bias_h||^2 scalar
    ]

    if emit_cat_dreal is not None:
        out_shape = (jax.ShapeDtypeStruct((n_pad, dout), jnp.float32),
                     jax.ShapeDtypeStruct((n_pad, dout), jnp.bfloat16))
        out_specs = (pl.BlockSpec((tm, dout), lambda i, k: (i, 0)),
                     pl.BlockSpec((tm, dout), lambda i, k: (i, 0)))
    else:
        out_shape = jax.ShapeDtypeStruct((n_pad, dout), jnp.float32)
        out_specs = pl.BlockSpec((tm, dout), lambda i, k: (i, 0))

    est = 4 * (2 * tm * tk + 2 * tk * dout + 2 * dout + 2 * tm * dout
               + tm * dout + tm)
    if emit_cat_dreal is not None:
        est += 2 * tm * dout * 2

    return pl.pallas_call(
        kernel,
        grid=(n_pad // tm, kgrid),
        in_specs=in_specs,
        out_specs=out_specs,
        out_shape=out_shape,
        scratch_shapes=[pltpu.VMEM((tm, dout), jnp.float32),   # mx accumulator
                        pltpu.VMEM((tm, 1), jnp.float32)],     # ||x||^2 accumulator
        compiler_params=pltpu.CompilerParams(
            dimension_semantics=("parallel", "arbitrary"),
            vmem_limit_bytes=_vmem_limit(est),
        ),
    )(x, wt, bias_h, bias_h2)


# --------------------- hyperbolic graph-conv aggregation kernel ---------------------
def _make_hgc_agg_kernel(c, alpha, d_real):
    w0, w1 = 1.0 - alpha, alpha

    def kernel(cat_ref, adj_ref, h0_ref, o_ref, acc_ref):
        k = pl.program_id(1)

        @pl.when(k == 0)
        def _():
            acc_ref[...] = jnp.zeros_like(acc_ref)

        # Single fused MXU pass per tile: adj @ [gamma*x | gamma-1], bf16 operands,
        # f32 accumulate.  The cat operand is precomputed once per layer.
        acc_ref[...] += jnp.dot(adj_ref[...], cat_ref[...],
                                preferred_element_type=jnp.float32)

        @pl.when(k == pl.num_programs(1) - 1)
        def _():
            acc = acc_ref[...]                                  # (TM, Dp)
            col = lax.broadcasted_iota(jnp.int32, acc.shape, 1)
            feat_mask = (col < d_real).astype(jnp.float32)
            nom = acc * feat_mask
            den = acc[:, d_real:d_real + 1]                     # (TM, 1)
            mid = nom / _clamp_abs(den)
            support = _project(_mobius_scalar_mul(0.5, mid, c), c)
            # residual gyro-midpoint with h_init, weights (1 - alpha, alpha)
            o_ref[...] = _gyro_midpoint2(support, h0_ref[...], w0, w1, c
                                         ).astype(o_ref.dtype)

    return kernel


def hgc_aggregate(cat_bf16, adj_bf16, h_init, *, c, alpha, d_real, row_tile):
    n_pad, dp = h_init.shape
    assert d_real < dp, "need a spare padded lane for the fused denominator column"
    tm = min(row_tile, n_pad)
    # keep the adjacency block lane dim either a multiple of 128 or the full extent
    tk = tm if tm % 128 == 0 else n_pad
    assert n_pad % tm == 0 and n_pad % tk == 0
    grid = (n_pad // tm, n_pad // tk)        # reduction (k) axis last, "arbitrary"

    est = 2 * (tk * dp * 2) + 2 * (tm * tk * 2) + 2 * (tm * dp * 4) \
        + 2 * (tm * dp * 4) + tm * dp * 4
    return pl.pallas_call(
        _make_hgc_agg_kernel(c, alpha, d_real),
        grid=grid,
        in_specs=[
            pl.BlockSpec((tk, dp), lambda i, k: (k, 0)),   # bf16 cat (precomputed)
            pl.BlockSpec((tm, tk), lambda i, k: (i, k)),   # bf16 adjacency tile
            pl.BlockSpec((tm, dp), lambda i, k: (i, 0)),   # h_init (resident over k)
        ],
        out_specs=pl.BlockSpec((tm, dp), lambda i, k: (i, 0)),
        out_shape=jax.ShapeDtypeStruct((n_pad, dp), jnp.float32),
        scratch_shapes=[pltpu.VMEM((tm, dp), jnp.float32)],
        compiler_params=pltpu.CompilerParams(
            dimension_semantics=("parallel", "arbitrary"),
            vmem_limit_bytes=_vmem_limit(est),
        ),
    )(cat_bf16, adj_bf16, h_init)


# --------------------------------- HGCN forward ------------------------------------
def hgcn_forward(x_pad, adj_bf16, params, *, c, alpha, beta, nlayers, final_agg,
                 nhidden, nclass, row_tile):
    wt0, bh0, b20 = params["fc0"]
    wt1, bh1, b21 = params["fc1"]

    # fcs[0]: MobiusLinearFast(nfeat -> nhidden, nonlin=relu); also emits the bf16
    # cat operand [gamma*h | gamma-1] consumed by the first aggregation.
    h, cat = mobius_linear(x_pad, wt0, bh0, b20, c=c, row_tile=row_tile,
                           use_relu=True, emit_cat_dreal=nhidden)
    h_init = h
    layer_out = h

    for ln in range(nlayers):
        final = ln == nlayers - 1
        # weighted_midpoint_spmm + residual midpoint with h_init (weights 1-a, a)
        support = hgc_aggregate(cat, adj_bf16, h_init, c=c, alpha=alpha,
                                d_real=nhidden, row_tile=row_tile)
        if final:
            layer_out = support
            break
        theta = math.log(beta / (ln + 1) + 1.0)
        wtc, bhc, b2c = params["conv"][ln]
        # HyperbolicLinearFast (Mobius linear + relu); the theta-midpoint against
        # support_res (== its own input, residual_is_input) and the next layer's
        # cat are fused into its epilogue.  Only cat feeds the next aggregation.
        if final_agg:
            _, cat = mobius_linear(support, wtc, bhc, b2c, c=c, row_tile=row_tile,
                                   use_relu=True, residual_is_input=True,
                                   midpoint_w=(theta, 1.0 - theta),
                                   emit_cat_dreal=nhidden)
        else:
            _, cat = mobius_linear(support, wtc, bhc, b2c, c=c, row_tile=row_tile,
                                   use_relu=True, emit_cat_dreal=nhidden)

    # fcs[-1]: MobiusLinearFast(nhidden -> nclass, nonlin=None) + fused log_softmax
    # (log_softmax is applied to the output coordinates, as in the reference).
    return mobius_linear(layer_out, wt1, bh1, b21, c=c, row_tile=row_tile,
                         use_relu=False, logsoftmax_nclass=nclass)


# --------------------------- parameter preparation (once) ---------------------------
def prepare_params(raw, *, c, nfeat, nhidden, nclass, DF, DH, DC):
    def prep(Wb, din, dinp, dout, doutp):
        W, b = Wb                                           # nn.Linear layout (out, in)
        wt = jnp.zeros((dinp, doutp), jnp.float32).at[:din, :dout].set(W.T)
        bp = jnp.zeros((1, doutp), jnp.float32).at[0, :dout].set(b)
        bias_h = _project(_expmap0(bp, c), c)               # hoisted hyperbolic bias
        b2 = jnp.sum(bias_h * bias_h).reshape(1, 1).astype(jnp.float32)  # SMEM scalar
        return wt, bias_h, b2

    return {
        "fc0": prep(raw["fc0"], nfeat, DF, nhidden, DH),
        "fc1": prep(raw["fc1"], nhidden, DH, nclass, DC),
        "conv": [prep(p, nhidden, DH, nhidden, DH) for p in raw["conv"]],
    }


# ------------------------------------- main -----------------------------------------
if __name__ == "__main__":
    N, nfeat, nhidden, nclass, nlayers = 8, 16, 32, 8, 2
    c, alpha, beta = 1.0, 0.1, 0.5
    final_agg = True

    key = jax.random.PRNGKey(0)
    keys = jax.random.split(key, 4 + nlayers)
    kx, ka, k0, k1 = keys[0], keys[1], keys[2], keys[3]
    kc = keys[4:]

    # node features inside the Poincare ball
    x = 0.3 * jax.random.normal(kx, (N, nfeat), jnp.float32) / math.sqrt(nfeat)

    # symmetric normalized adjacency with self loops
    A = (jax.random.uniform(ka, (N, N)) < 0.4).astype(jnp.float32)
    A = jnp.minimum(A + A.T + jnp.eye(N, dtype=jnp.float32), 1.0)
    dinv = 1.0 / jnp.sqrt(jnp.sum(A, axis=1))
    adj = A * dinv[:, None] * dinv[None, :]

    def init_linear(k, dout, din):
        kw, kb = jax.random.split(k)
        std = math.sqrt(2.0 / (din + dout))
        W = std * jax.random.normal(kw, (dout, din), jnp.float32)
        b = 0.01 * jax.random.normal(kb, (dout,), jnp.float32)
        return W, b

    raw_params = {
        "fc0": init_linear(k0, nhidden, nfeat),
        "fc1": init_linear(k1, nclass, nhidden),
        "conv": [init_linear(kc[i], nhidden, nhidden) for i in range(nlayers)],
    }

    # ---- layout prep (once): lanes padded to 128, rows to the shared row tile ----
    n_pad, row_tile = _row_layout(N)
    DF = _pad_feature_dim(nfeat)
    DH = _pad_feature_dim(nhidden + 1)   # +1 spare lane hosts the fused spmm denominator
    DC = _pad_feature_dim(nclass)

    x_pad = jnp.zeros((n_pad, DF), jnp.float32).at[:N, :nfeat].set(x)
    adj_pad = jnp.zeros((n_pad, n_pad), jnp.float32).at[:N, :N].set(adj)
    adj_bf16 = adj_pad.astype(jnp.bfloat16)    # halves HBM traffic for the N^2 operand
    # TODO(synk): bf16 adjacency/cat streaming trades a small precision loss for
    #   ~2x HBM bandwidth on the dominant operand; validate per dataset.

    params = prepare_params(raw_params, c=c, nfeat=nfeat, nhidden=nhidden,
                            nclass=nclass, DF=DF, DH=DH, DC=DC)

    @jax.jit
    def run(xp, ap, pp):
        return hgcn_forward(xp, ap, pp, c=c, alpha=alpha, beta=beta,
                            nlayers=nlayers, final_agg=final_agg,
                            nhidden=nhidden, nclass=nclass, row_tile=row_tile)

    out_pad = jax.block_until_ready(run(x_pad, adj_bf16, params))
    out = out_pad[:N, :nclass]
    assert out.shape == (N, nclass)
    assert bool(jnp.all(jnp.isfinite(out)))
    print("KERNEL_OK")
</pallas_src>

<mosaic_0001>
module attributes {stable_mosaic.version = 11 : i64} {
  func.func @kernel(%arg0: i32, %arg1: i32, %arg2: memref<16x128xf32, #tpu.memory_space<vmem>>, %arg3: memref<128x128xf32, #tpu.memory_space<vmem>>, %arg4: memref<1x128xf32, #tpu.memory_space<vmem>>, %arg5: memref<1x1xf32, #tpu.memory_space<smem>>, %arg6: memref<16x128xf32, #tpu.memory_space<vmem>>, %arg7: memref<16x128xbf16, #tpu.memory_space<vmem>>, %arg8: memref<16x128xf32, #tpu.memory_space<vmem>>, %arg9: memref<16x1xf32, #tpu.memory_space<vmem>>) attributes {dimension_semantics = [#tpu.dimension_semantics<parallel>, #tpu.dimension_semantics<arbitrary>], iteration_bounds = array<i64: 2, 1>, scalar_prefetch = 0 : i64, scratch_operands = 2 : i64, tpu.core_type = #tpu.core_type<tc>, window_params = [{transform_indices = @transform_0, window_bounds = array<i64: 16, 128>}, {transform_indices = @transform_1, window_bounds = array<i64: 128, 128>}, {pipeline_mode = #tpu.pipeline_mode<synchronous>, transform_indices = @transform_2, window_bounds = array<i64: 1, 128>}, {transform_indices = @transform_3, window_bounds = array<i64: 1, 1>}, {transform_indices = @transform_4, window_bounds = array<i64: 16, 128>}, {transform_indices = @transform_5, window_bounds = array<i64: 16, 128>}]} {
    %c0_i32 = arith.constant 0 : i32
    %0 = arith.cmpi eq, %arg1, %c0_i32 : i32
    %1 = arith.extui %0 : i1 to i32
    %c0_i32_0 = arith.constant 0 : i32
    %2 = arith.cmpi ne, %1, %c0_i32_0 : i32
    scf.if %2 {
      %cst_15 = arith.constant 0.000000e+00 : f32
      %18 = vector.broadcast %cst_15 : f32 to vector<16x128xf32>
      %c0_16 = arith.constant 0 : index
      %c0_17 = arith.constant 0 : index
      %19 = vector.load %arg8[%c0_16, %c0_17] : memref<16x128xf32, #tpu.memory_space<vmem>>, vector<16x128xf32>
      tpu.vector_store %arg8[%c0_16, %c0_17], %18 {strides = array<i32>} : memref<16x128xf32, #tpu.memory_space<vmem>>, vector<16x128xf32>,
      %cst_18 = arith.constant 0.000000e+00 : f32
      %20 = vector.broadcast %cst_18 : f32 to vector<16x1xf32>
      %c0_19 = arith.constant 0 : index
      %c0_20 = arith.constant 0 : index
      %21 = vector.load %arg9[%c0_19, %c0_20] : memref<16x1xf32, #tpu.memory_space<vmem>>, vector<16x1xf32>
      tpu.vector_store %arg9[%c0_19, %c0_20], %20 {strides = array<i32>} : memref<16x1xf32, #tpu.memory_space<vmem>>, vector<16x1xf32>,
    } else {
    }
    %c0 = arith.constant 0 : index
    %c0_1 = arith.constant 0 : index
    %3 = vector.load %arg2[%c0, %c0_1] : memref<16x128xf32, #tpu.memory_space<vmem>>, vector<16x128xf32>
    %c0_2 = arith.constant 0 : index
    %c0_3 = arith.constant 0 : index
    %4 = vector.load %arg8[%c0_2, %c0_3] : memref<16x128xf32, #tpu.memory_space<vmem>>, vector<16x128xf32>
    %c0_4 = arith.constant 0 : index
    %c0_5 = arith.constant 0 : index
    %5 = vector.load %arg3[%c0_4, %c0_5] : memref<128x128xf32, #tpu.memory_space<vmem>>, vector<128x128xf32>
    %cst = arith.constant dense<0.000000e+00> : vector<16x128xf32>
    %6 = tpu.matmul %3, %5, %cst {dimension_numbers = #tpu.dot_dimension_numbers<[1], [0], [0], [1], [0, 0, 1, 1], [], []>} : vector<16x128xf32>, vector<128x128xf32>, vector<16x128xf32> -> vector<16x128xf32>
    %7 = arith.addf %4, %6 : vector<16x128xf32>
    %c0_6 = arith.constant 0 : index
    %c0_7 = arith.constant 0 : index
    %8 = vector.load %arg8[%c0_6, %c0_7] : memref<16x128xf32, #tpu.memory_space<vmem>>, vector<16x128xf32>
    tpu.vector_store %arg8[%c0_6, %c0_7], %7 {strides = array<i32>} : memref<16x128xf32, #tpu.memory_space<vmem>>, vector<16x128xf32>,
    %c0_8 = arith.constant 0 : index
    %c0_9 = arith.constant 0 : index
    %9 = vector.load %arg9[%c0_8, %c0_9] : memref<16x1xf32, #tpu.memory_space<vmem>>, vector<16x1xf32>
    %10 = arith.mulf %3, %3 : vector<16x128xf32>
    %cst_10 = arith.constant dense<0.000000e+00> : vector<16xf32>
    %11 = vector.multi_reduction <add>, %10, %cst_10 [1] : vector<16x128xf32> to vector<16xf32>
    %12 = vector.shape_cast %11 : vector<16xf32> to vector<16x1xf32>
    %13 = arith.addf %9, %12 : vector<16x1xf32>
    %c0_11 = arith.constant 0 : index
    %c0_12 = arith.constant 0 : index
    %14 = vector.load %arg9[%c0_11, %c0_12] : memref<16x1xf32, #tpu.memory_space<vmem>>, vector<16x1xf32>
    tpu.vector_store %arg9[%c0_11, %c0_12], %13 {strides = array<i32>} : memref<16x1xf32, #tpu.memory_space<vmem>>, vector<16x1xf32>,
    %c0_i32_13 = arith.constant 0 : i32
    %15 = arith.cmpi eq, %arg1, %c0_i32_13 : i32
    %16 = arith.extui %15 : i1 to i32
    %c0_i32_14 = arith.constant 0 : i32
    %17 = arith.cmpi ne, %16, %c0_i32_14 : i32
    scf.if %17 {
      %c0_15 = arith.constant 0 : index
      %c0_16 = arith.constant 0 : index
      %18 = vector.load %arg8[%c0_15, %c0_16] : memref<16x128xf32, #tpu.memory_space<vmem>>, vector<16x128xf32>
      %c0_17 = arith.constant 0 : index
      %c0_18 = arith.constant 0 : index
      %19 = vector.load %arg9[%c0_17, %c0_18] : memref<16x1xf32, #tpu.memory_space<vmem>>, vector<16x1xf32>
      %cst_19 = arith.constant 1.000000e-15 : f32
      %20 = vector.broadcast %cst_19 : f32 to vector<16x1xf32>
      %21 = arith.maximumf %19, %20 : vector<16x1xf32>
      %22 = math.sqrt %21 : vector<16x1xf32>
      %23 = arith.mulf %18, %18 : vector<16x128xf32>
      %cst_20 = arith.constant dense<0.000000e+00> : vector<16xf32>
      %24 = vector.multi_reduction <add>, %23, %cst_20 [1] : vector<16x128xf32> to vector<16xf32>
      %25 = vector.shape_cast %24 : vector<16xf32> to vector<16x1xf32>
      %cst_21 = arith.constant 1.000000e-15 : f32
      %26 = vector.broadcast %cst_21 : f32 to vector<16x1xf32>
      %27 = arith.maximumf %25, %26 : vector<16x1xf32>
      %28 = math.sqrt %27 : vector<16x1xf32>
      %29 = arith.divf %28, %22 : vector<16x1xf32>
      %cst_22 = arith.constant 1.000000e+00 : f32
      %30 = vector.broadcast %cst_22 : f32 to vector<16x1xf32>
      %31 = arith.mulf %30, %22 : vector<16x1xf32>
      %cst_23 = arith.constant -0.99999988 : f32
      %cst_24 = arith.constant 0.99999988 : f32
      %32 = vector.broadcast %cst_23 : f32 to vector<16x1xf32>
      %33 = arith.maximumf %32, %31 : vector<16x1xf32>
      %34 = vector.broadcast %cst_24 : f32 to vector<16x1xf32>
      %35 = arith.minimumf %34, %33 : vector<16x1xf32>
      %36 = math.log1p %35 : vector<16x1xf32>
      %cst_25 = arith.constant 0.000000e+00 : f32
      %37 = vector.broadcast %cst_25 : f32 to vector<16x1xf32>
      %38 = arith.subf %37, %35 : vector<16x1xf32>
      %39 = math.log1p %38 : vector<16x1xf32>
      %40 = arith.subf %36, %39 : vector<16x1xf32>
      %cst_26 = arith.constant 5.000000e-01 : f32
      %41 = vector.broadcast %cst_26 : f32 to vector<16x1xf32>
      %42 = arith.mulf %41, %40 : vector<16x1xf32>
      %43 = arith.mulf %29, %42 : vector<16x1xf32>
      %44 = math.tanh %43 : vector<16x1xf32>
      %45 = vector.broadcast %44 : vector<16x1xf32> to vector<16x128xf32>
      %46 = arith.mulf %45, %18 : vector<16x128xf32>
      %cst_27 = arith.constant 1.000000e+00 : f32
      %47 = vector.broadcast %cst_27 : f32 to vector<16x1xf32>
      %48 = arith.mulf %28, %47 : vector<16x1xf32>
      %49 = vector.broadcast %48 : vector<16x1xf32> to vector<16x128xf32>
      %50 = arith.divf %46, %49 : vector<16x128xf32>
      %51 = arith.mulf %28, %28 : vector<16x1xf32>
      %cst_28 = arith.constant 1.000000e-15 : f32
      %52 = vector.broadcast %cst_28 : f32 to vector<16x1xf32>
      %53 = arith.cmpf ole, %51, %52 : vector<16x1xf32>
      %cst_29 = arith.constant 0.000000e+00 : f32
      %54 = vector.broadcast %cst_29 : f32 to vector<16x128xf32>
      %55 = vector.shape_cast %53 : vector<16x1xi1> to vector<16x1xi1>
      %56 = vector.broadcast %55 : vector<16x1xi1> to vector<16x128xi1>
      %57 = arith.select %56, %54, %50 : vector<16x128xi1>, vector<16x128xf32>
      %c0_30 = arith.constant 0 : index
      %c0_31 = arith.constant 0 : index
      %58 = vector.load %arg4[%c0_30, %c0_31] : memref<1x128xf32, #tpu.memory_space<vmem>>, vector<1x128xf32>
      %c0_32 = arith.constant 0 : index
      %c0_33 = arith.constant 0 : index
      %59 = memref.load %arg5[%c0_32, %c0_33] : memref<1x1xf32, #tpu.memory_space<smem>>
      %60 = arith.mulf %57, %57 : vector<16x128xf32>
      %cst_34 = arith.constant dense<0.000000e+00> : vector<16xf32>
      %61 = vector.multi_reduction <add>, %60, %cst_34 [1] : vector<16x128xf32> to vector<16xf32>
      %62 = vector.shape_cast %61 : vector<16xf32> to vector<16x1xf32>
      %63 = vector.broadcast %58 : vector<1x128xf32> to vector<16x128xf32>
      %64 = arith.mulf %57, %63 : vector<16x128xf32>
      %cst_35 = arith.constant dense<0.000000e+00> : vector<16xf32>
      %65 = vector.multi_reduction <add>, %64, %cst_35 [1] : vector<16x128xf32> to vector<16xf32>
      %66 = vector.shape_cast %65 : vector<16xf32> to vector<16x1xf32>
      %cst_36 = arith.constant 2.000000e+00 : f32
      %67 = vector.broadcast %cst_36 : f32 to vector<16x1xf32>
      %68 = arith.mulf %67, %66 : vector<16x1xf32>
      %cst_37 = arith.constant 1.000000e+00 : f32
      %69 = vector.broadcast %cst_37 : f32 to vector<16x1xf32>
      %70 = arith.addf %69, %68 : vector<16x1xf32>
      %cst_38 = arith.constant 1.000000e+00 : f32
      %71 = arith.mulf %cst_38, %59 : f32
      %72 = vector.broadcast %71 : f32 to vector<16x1xf32>
      %73 = arith.addf %70, %72 : vector<16x1xf32>
      %74 = vector.broadcast %73 : vector<16x1xf32> to vector<16x128xf32>
      %75 = arith.mulf %74, %57 : vector<16x128xf32>
      %cst_39 = arith.constant 1.000000e+00 : f32
      %76 = vector.broadcast %cst_39 : f32 to vector<16x1xf32>
      %77 = arith.mulf %76, %62 : vector<16x1xf32>
      %cst_40 = arith.constant 1.000000e+00 : f32
      %78 = vector.broadcast %cst_40 : f32 to vector<16x1xf32>
      %79 = arith.subf %78, %77 : vector<16x1xf32>
      %80 = vector.broadcast %79 : vector<16x1xf32> to vector<16x128xf32>
      %81 = vector.broadcast %58 : vector<1x128xf32> to vector<16x128xf32>
      %82 = arith.mulf %80, %81 : vector<16x128xf32>
      %83 = arith.addf %75, %82 : vector<16x128xf32>
      %cst_41 = arith.constant 2.000000e+00 : f32
      %84 = vector.broadcast %cst_41 : f32 to vector<16x1xf32>
      %85 = arith.mulf %84, %66 : vector<16x1xf32>
      %cst_42 = arith.constant 1.000000e+00 : f32
      %86 = vector.broadcast %cst_42 : f32 to vector<16x1xf32>
      %87 = arith.addf %86, %85 : vector<16x1xf32>
      %cst_43 = arith.constant 1.000000e+00 : f32
      %88 = vector.broadcast %cst_43 : f32 to vector<16x1xf32>
      %89 = arith.mulf %88, %62 : vector<16x1xf32>
      %90 = vector.broadcast %59 : f32 to vector<16x1xf32>
      %91 = arith.mulf %89, %90 : vector<16x1xf32>
      %92 = arith.addf %87, %91 : vector<16x1xf32>
      %cst_44 = arith.constant 1.000000e-15 : f32
      %93 = vector.broadcast %cst_44 : f32 to vector<16x1xf32>
      %94 = arith.maximumf %92, %93 : vector<16x1xf32>
      %95 = vector.broadcast %94 : vector<16x1xf32> to vector<16x128xf32>
      %96 = arith.divf %83, %95 : vector<16x128xf32>
      %97 = arith.mulf %96, %96 : vector<16x128xf32>
      %cst_45 = arith.constant dense<0.000000e+00> : vector<16xf32>
      %98 = vector.multi_reduction <add>, %97, %cst_45 [1] : vector<16x128xf32> to vector<16xf32>
      %99 = vector.shape_cast %98 : vector<16xf32> to vector<16x1xf32>
      %cst_46 = arith.constant 1.000000e-15 : f32
      %100 = vector.broadcast %cst_46 : f32 to vector<16x1xf32>
      %101 = arith.maximumf %99, %100 : vector<16x1xf32>
      %102 = math.sqrt %101 : vector<16x1xf32>
      %cst_47 = arith.constant 0.999989986 : f32
      %103 = vector.broadcast %cst_47 : f32 to vector<16x1xf32>
      %104 = arith.divf %103, %102 : vector<16x1xf32>
      %105 = vector.broadcast %104 : vector<16x1xf32> to vector<16x128xf32>
      %106 = arith.mulf %96, %105 : vector<16x128xf32>
      %cst_48 = arith.constant 0.999989986 : f32
      %107 = vector.broadcast %cst_48 : f32 to vector<16x1xf32>
      %108 = arith.cmpf ogt, %102, %107 : vector<16x1xf32>
      %109 = vector.shape_cast %108 : vector<16x1xi1> to vector<16x1xi1>
      %110 = vector.broadcast %109 : vector<16x1xi1> to vector<16x128xi1>
      %111 = arith.select %110, %106, %96 : vector<16x128xi1>, vector<16x128xf32>
      %cst_49 = arith.constant 0.000000e+00 : f32
      %112 = vector.broadcast %cst_49 : f32 to vector<16x128xf32>
      %113 = arith.maximumf %111, %112 : vector<16x128xf32>
      %114 = arith.mulf %113, %113 : vector<16x128xf32>
      %cst_50 = arith.constant dense<0.000000e+00> : vector<16xf32>
      %115 = vector.multi_reduction <add>, %114, %cst_50 [1] : vector<16x128xf32> to vector<16xf32>
      %116 = vector.shape_cast %115 : vector<16xf32> to vector<16x1xf32>
      %cst_51 = arith.constant 1.000000e+00 : f32
      %117 = vector.broadcast %cst_51 : f32 to vector<16x1xf32>
      %118 = arith.mulf %117, %116 : vector<16x1xf32>
      %cst_52 = arith.constant 1.000000e+00 : f32
      %119 = vector.broadcast %cst_52 : f32 to vector<16x1xf32>
      %120 = arith.subf %119, %118 : vector<16x1xf32>
      %cst_53 = arith.constant 1.000000e-15 : f32
      %121 = vector.broadcast %cst_53 : f32 to vector<16x1xf32>
      %122 = arith.maximumf %120, %121 : vector<16x1xf32>
      %cst_54 = arith.constant 2.000000e+00 : f32
      %123 = vector.broadcast %cst_54 : f32 to vector<16x1xf32>
      %124 = arith.divf %123, %122 : vector<16x1xf32>
      %125 = arith.mulf %3, %3 : vector<16x128xf32>
      %cst_55 = arith.constant dense<0.000000e+00> : vector<16xf32>
      %126 = vector.multi_reduction <add>, %125, %cst_55 [1] : vector<16x128xf32> to vector<16xf32>
      %127 = vector.shape_cast %126 : vector<16xf32> to vector<16x1xf32>
      %cst_56 = arith.constant 1.000000e+00 : f32
      %128 = vector.broadcast %cst_56 : f32 to vector<16x1xf32>
      %129 = arith.mulf %128, %127 : vector<16x1xf32>
      %cst_57 = arith.constant 1.000000e+00 : f32
      %130 = vector.broadcast %cst_57 : f32 to vector<16x1xf32>
      %131 = arith.subf %130, %129 : vector<16x1xf32>
      %cst_58 = arith.constant 1.000000e-15 : f32
      %132 = vector.broadcast %cst_58 : f32 to vector<16x1xf32>
      %133 = arith.maximumf %131, %132 : vector<16x1xf32>
      %cst_59 = arith.constant 2.000000e+00 : f32
      %134 = vector.broadcast %cst_59 : f32 to vector<16x1xf32>
      %135 = arith.divf %134, %133 : vector<16x1xf32>
      %cst_60 = arith.constant 1.000000e+00 : f32
      %136 = vector.broadcast %cst_60 : f32 to vector<16x1xf32>
      %137 = arith.subf %124, %136 : vector<16x1xf32>
      %cst_61 = arith.constant 0.405465096 : f32
      %138 = vector.broadcast %cst_61 : f32 to vector<16x1xf32>
      %139 = arith.mulf %138, %137 : vector<16x1xf32>
      %cst_62 = arith.constant 1.000000e+00 : f32
      %140 = vector.broadcast %cst_62 : f32 to vector<16x1xf32>
      %141 = arith.subf %135, %140 : vector<16x1xf32>
      %cst_63 = arith.constant 0.594534874 : f32
      %142 = vector.broadcast %cst_63 : f32 to vector<16x1xf32>
      %143 = arith.mulf %142, %141 : vector<16x1xf32>
      %144 = arith.addf %139, %143 : vector<16x1xf32>
      %cst_64 = arith.constant 0.405465096 : f32
      %145 = vector.broadcast %cst_64 : f32 to vector<16x1xf32>
      %146 = arith.mulf %145, %124 : vector<16x1xf32>
      %147 = vector.broadcast %146 : vector<16x1xf32> to vector<16x128xf32>
      %148 = arith.mulf %147, %113 : vector<16x128xf32>
      %cst_65 = arith.constant 0.594534874 : f32
      %149 = vector.broadcast %cst_65 : f32 to vector<16x1xf32>
      %150 = arith.mulf %149, %135 : vector<16x1xf32>
      %151 = vector.broadcast %150 : vector<16x1xf32> to vector<16x128xf32>
      %152 = arith.mulf %151, %3 : vector<16x128xf32>
      %153 = arith.addf %148, %152 : vector<16x128xf32>
      %cst_66 = arith.constant 0.000000e+00 : f32
      %154 = vector.broadcast %cst_66 : f32 to vector<16x1xf32>
      %155 = arith.cmpf oge, %144, %154 : vector<16x1xf32>
      %cst_67 = arith.constant 1.000000e+00 : f32
      %cst_68 = arith.constant -1.000000e+00 : f32
      %156 = vector.broadcast %cst_67 : f32 to vector<16x1xf32>
      %157 = vector.broadcast %cst_68 : f32 to vector<16x1xf32>
      %158 = arith.select %155, %156, %157 : vector<16x1xi1>, vector<16x1xf32>
      %159 = math.absf %144 : vector<16x1xf32>
      %cst_69 = arith.constant 1.000000e-10 : f32
      %160 = vector.broadcast %cst_69 : f32 to vector<16x1xf32>
      %161 = arith.maximumf %159, %160 : vector<16x1xf32>
      %162 = arith.mulf %158, %161 : vector<16x1xf32>
      %163 = vector.broadcast %162 : vector<16x1xf32> to vector<16x128xf32>
      %164 = arith.divf %153, %163 : vector<16x128xf32>
      %165 = arith.mulf %164, %164 : vector<16x128xf32>
      %cst_70 = arith.constant dense<0.000000e+00> : vector<16xf32>
      %166 = vector.multi_reduction <add>, %165, %cst_70 [1] : vector<16x128xf32> to vector<16xf32>
      %167 = vector.shape_cast %166 : vector<16xf32> to vector<16x1xf32>
      %cst_71 = arith.constant 1.000000e-15 : f32
      %168 = vector.broadcast %cst_71 : f32 to vector<16x1xf32>
      %169 = arith.maximumf %167, %168 : vector<16x1xf32>
      %170 = math.sqrt %169 : vector<16x1xf32>
      %cst_72 = arith.constant 1.000000e+00 : f32
      %171 = vector.broadcast %cst_72 : f32 to vector<16x1xf32>
      %172 = arith.mulf %171, %170 : vector<16x1xf32>
      %cst_73 = arith.constant -0.99999988 : f32
      %cst_74 = arith.constant 0.99999988 : f32
      %173 = vector.broadcast %cst_73 : f32 to vector<16x1xf32>
      %174 = arith.maximumf %173, %172 : vector<16x1xf32>
      %175 = vector.broadcast %cst_74 : f32 to vector<16x1xf32>
      %176 = arith.minimumf %175, %174 : vector<16x1xf32>
      %177 = math.log1p %176 : vector<16x1xf32>
      %cst_75 = arith.constant 0.000000e+00 : f32
      %178 = vector.broadcast %cst_75 : f32 to vector<16x1xf32>
      %179 = arith.subf %178, %176 : vector<16x1xf32>
      %180 = math.log1p %179 : vector<16x1xf32>
      %181 = arith.subf %177, %180 : vector<16x1xf32>
      %cst_76 = arith.constant 5.000000e-01 : f32
      %182 = vector.broadcast %cst_76 : f32 to vector<16x1xf32>
      %183 = arith.mulf %182, %181 : vector<16x1xf32>
      %cst_77 = arith.constant 5.000000e-01 : f32
      %184 = vector.broadcast %cst_77 : f32 to vector<16x1xf32>
      %185 = arith.mulf %184, %183 : vector<16x1xf32>
      %186 = math.tanh %185 : vector<16x1xf32>
      %187 = vector.broadcast %186 : vector<16x1xf32> to vector<16x128xf32>
      %188 = arith.mulf %187, %164 : vector<16x128xf32>
      %cst_78 = arith.constant 1.000000e+00 : f32
      %189 = vector.broadcast %cst_78 : f32 to vector<16x1xf32>
      %190 = arith.mulf %170, %189 : vector<16x1xf32>
      %191 = vector.broadcast %190 : vector<16x1xf32> to vector<16x128xf32>
      %192 = arith.divf %188, %191 : vector<16x128xf32>
      %193 = arith.mulf %192, %192 : vector<16x128xf32>
      %cst_79 = arith.constant dense<0.000000e+00> : vector<16xf32>
      %194 = vector.multi_reduction <add>, %193, %cst_79 [1] : vector<16x128xf32> to vector<16xf32>
      %195 = vector.shape_cast %194 : vector<16xf32> to vector<16x1xf32>
      %cst_80 = arith.constant 1.000000e-15 : f32
      %196 = vector.broadcast %cst_80 : f32 to vector<16x1xf32>
      %197 = arith.maximumf %195, %196 : vector<16x1xf32>
      %198 = math.sqrt %197 : vector<16x1xf32>
      %cst_81 = arith.constant 0.999989986 : f32
      %199 = vector.broadcast %cst_81 : f32 to vector<16x1xf32>
      %200 = arith.divf %199, %198 : vector<16x1xf32>
      %201 = vector.broadcast %200 : vector<16x1xf32> to vector<16x128xf32>
      %202 = arith.mulf %192, %201 : vector<16x128xf32>
      %cst_82 = arith.constant 0.999989986 : f32
      %203 = vector.broadcast %cst_82 : f32 to vector<16x1xf32>
      %204 = arith.cmpf ogt, %198, %203 : vector<16x1xf32>
      %205 = vector.shape_cast %204 : vector<16x1xi1> to vector<16x1xi1>
      %206 = vector.broadcast %205 : vector<16x1xi1> to vector<16x128xi1>
      %207 = arith.select %206, %202, %192 : vector<16x128xi1>, vector<16x128xf32>
      %208 = arith.mulf %207, %207 : vector<16x128xf32>
      %cst_83 = arith.constant dense<0.000000e+00> : vector<16xf32>
      %209 = vector.multi_reduction <add>, %208, %cst_83 [1] : vector<16x128xf32> to vector<16xf32>
      %210 = vector.shape_cast %209 : vector<16xf32> to vector<16x1xf32>
      %cst_84 = arith.constant 1.000000e+00 : f32
      %211 = vector.broadcast %cst_84 : f32 to vector<16x1xf32>
      %212 = arith.mulf %211, %210 : vector<16x1xf32>
      %cst_85 = arith.constant 1.000000e+00 : f32
      %213 = vector.broadcast %cst_85 : f32 to vector<16x1xf32>
      %214 = arith.subf %213, %212 : vector<16x1xf32>
      %cst_86 = arith.constant 1.000000e-15 : f32
      %215 = vector.broadcast %cst_86 : f32 to vector<16x1xf32>
      %216 = arith.maximumf %214, %215 : vector<16x1xf32>
      %cst_87 = arith.constant 2.000000e+00 : f32
      %217 = vector.broadcast %cst_87 : f32 to vector<16x1xf32>
      %218 = arith.divf %217, %216 : vector<16x1xf32>
      %219 = tpu.iota {dimensions = array<i32: 1>} : vector<16x128xi32>
      %c32_i32 = arith.constant 32 : i32
      %220 = vector.broadcast %c32_i32 : i32 to vector<16x128xi32>
      %221 = arith.cmpi eq, %219, %220 : vector<16x128xi32>
      %222 = arith.extui %221 : vector<16x128xi1> to vector<16x128xi32>
      %223 = arith.sitofp %222 : vector<16x128xi32> to vector<16x128xf32>
      %224 = vector.broadcast %218 : vector<16x1xf32> to vector<16x128xf32>
      %225 = arith.mulf %224, %207 : vector<16x128xf32>
      %cst_88 = arith.constant 1.000000e+00 : f32
      %226 = vector.broadcast %cst_88 : f32 to vector<16x1xf32>
      %227 = arith.subf %218, %226 : vector<16x1xf32>
      %228 = vector.broadcast %227 : vector<16x1xf32> to vector<16x128xf32>
      %229 = arith.mulf %228, %223 : vector<16x128xf32>
      %230 = arith.addf %225, %229 : vector<16x128xf32>
      %c0_89 = arith.constant 0 : index
      %c0_90 = arith.constant 0 : index
      %231 = vector.load %arg6[%c0_89, %c0_90] : memref<16x128xf32, #tpu.memory_space<vmem>>, vector<16x128xf32>
      tpu.vector_store %arg6[%c0_89, %c0_90], %207 {strides = array<i32>} : memref<16x128xf32, #tpu.memory_space<vmem>>, vector<16x128xf32>,
      %232 = arith.truncf %230 : vector<16x128xf32> to vector<16x128xbf16>
      %c0_91 = arith.constant 0 : index
      %c0_92 = arith.constant 0 : index
      %233 = vector.load %arg7[%c0_91, %c0_92] : memref<16x128xbf16, #tpu.memory_space<vmem>>, vector<16x128xbf16>
      tpu.vector_store %arg7[%c0_91, %c0_92], %232 {strides = array<i32>} : memref<16x128xbf16, #tpu.memory_space<vmem>>, vector<16x128xbf16>,
    } else {
    }
    return
  }
  func.func @transform_0(%arg0: i32, %arg1: i32) -> (i32, i32) {
    %c0_i32 = arith.constant 0 : i32
    return %arg0, %arg1 : i32, i32
  }
  func.func @transform_1(%arg0: i32, %arg1: i32) -> (i32, i32) {
    %c0_i32 = arith.constant 0 : i32
    %c0_i32_0 = arith.constant 0 : i32
    return %arg1, %c0_i32 : i32, i32
  }
  func.func @transform_2(%arg0: i32, %arg1: i32) -> (i32, i32) {
    %c0_i32 = arith.constant 0 : i32
    %c0_i32_0 = arith.constant 0 : i32
    %c0_i32_1 = arith.constant 0 : i32
    return %c0_i32, %c0_i32_0 : i32, i32
  }
  func.func @transform_3(%arg0: i32, %arg1: i32) -> (i32, i32) {
    %c0_i32 = arith.constant 0 : i32
    %c0_i32_0 = arith.constant 0 : i32
    %c0_i32_1 = arith.constant 0 : i32
    return %c0_i32, %c0_i32_0 : i32, i32
  }
  func.func @transform_4(%arg0: i32, %arg1: i32) -> (i32, i32) {
    %c0_i32 = arith.constant 0 : i32
    %c0_i32_0 = arith.constant 0 : i32
    return %arg0, %c0_i32 : i32, i32
  }
  func.func @transform_5(%arg0: i32, %arg1: i32) -> (i32, i32) {
    %c0_i32 = arith.constant 0 : i32
    %c0_i32_0 = arith.constant 0 : i32
    return %arg0, %c0_i32 : i32, i32
  }
}

module attributes {stable_mosaic.version = 11 : i64} {
  func.func @kernel(%arg0: i32, %arg1: i32, %arg2: memref<16x128xf32, #tpu.memory_space<vmem>>, %arg3: memref<128x128xf32, #tpu.memory_space<vmem>>, %arg4: memref<1x128xf32, #tpu.memory_space<vmem>>, %arg5: memref<1x1xf32, #tpu.memory_space<smem>>, %arg6: memref<16x128xf32, #tpu.memory_space<vmem>>, %arg7: memref<16x128xf32, #tpu.memory_space<vmem>>, %arg8: memref<16x1xf32, #tpu.memory_space<vmem>>) attributes {dimension_semantics = [#tpu.dimension_semantics<parallel>, #tpu.dimension_semantics<arbitrary>], iteration_bounds = array<i64: 2, 1>, scalar_prefetch = 0 : i64, scratch_operands = 2 : i64, tpu.core_type = #tpu.core_type<tc>, window_params = [{transform_indices = @transform_0, window_bounds = array<i64: 16, 128>}, {transform_indices = @transform_1, window_bounds = array<i64: 128, 128>}, {pipeline_mode = #tpu.pipeline_mode<synchronous>, transform_indices = @transform_2, window_bounds = array<i64: 1, 128>}, {transform_indices = @transform_3, window_bounds = array<i64: 1, 1>}, {transform_indices = @transform_4, window_bounds = array<i64: 16, 128>}]} {
    %c0_i32 = arith.constant 0 : i32
    %0 = arith.cmpi eq, %arg1, %c0_i32 : i32
    %1 = arith.extui %0 : i1 to i32
    %c0_i32_0 = arith.constant 0 : i32
    %2 = arith.cmpi ne, %1, %c0_i32_0 : i32
    scf.if %2 {
      %cst_15 = arith.constant 0.000000e+00 : f32
      %18 = vector.broadcast %cst_15 : f32 to vector<16x128xf32>
      %c0_16 = arith.constant 0 : index
      %c0_17 = arith.constant 0 : index
      %19 = vector.load %arg7[%c0_16, %c0_17] : memref<16x128xf32, #tpu.memory_space<vmem>>, vector<16x128xf32>
      tpu.vector_store %arg7[%c0_16, %c0_17], %18 {strides = array<i32>} : memref<16x128xf32, #tpu.memory_space<vmem>>, vector<16x128xf32>,
      %cst_18 = arith.constant 0.000000e+00 : f32
      %20 = vector.broadcast %cst_18 : f32 to vector<16x1xf32>
      %c0_19 = arith.constant 0 : index
      %c0_20 = arith.constant 0 : index
      %21 = vector.load %arg8[%c0_19, %c0_20] : memref<16x1xf32, #tpu.memory_space<vmem>>, vector<16x1xf32>
      tpu.vector_store %arg8[%c0_19, %c0_20], %20 {strides = array<i32>} : memref<16x1xf32, #tpu.memory_space<vmem>>, vector<16x1xf32>,
    } else {
    }
    %c0 = arith.constant 0 : index
    %c0_1 = arith.constant 0 : index
    %3 = vector.load %arg2[%c0, %c0_1] : memref<16x128xf32, #tpu.memory_space<vmem>>, vector<16x128xf32>
    %c0_2 = arith.constant 0 : index
    %c0_3 = arith.constant 0 : index
    %4 = vector.load %arg7[%c0_2, %c0_3] : memref<16x128xf32, #tpu.memory_space<vmem>>, vector<16x128xf32>
    %c0_4 = arith.constant 0 : index
    %c0_5 = arith.constant 0 : index
    %5 = vector.load %arg3[%c0_4, %c0_5] : memref<128x128xf32, #tpu.memory_space<vmem>>, vector<128x128xf32>
    %cst = arith.constant dense<0.000000e+00> : vector<16x128xf32>
    %6 = tpu.matmul %3, %5, %cst {dimension_numbers = #tpu.dot_dimension_numbers<[1], [0], [0], [1], [0, 0, 1, 1], [], []>} : vector<16x128xf32>, vector<128x128xf32>, vector<16x128xf32> -> vector<16x128xf32>
    %7 = arith.addf %4, %6 : vector<16x128xf32>
    %c0_6 = arith.constant 0 : index
    %c0_7 = arith.constant 0 : index
    %8 = vector.load %arg7[%c0_6, %c0_7] : memref<16x128xf32, #tpu.memory_space<vmem>>, vector<16x128xf32>
    tpu.vector_store %arg7[%c0_6, %c0_7], %7 {strides = array<i32>} : memref<16x128xf32, #tpu.memory_space<vmem>>, vector<16x128xf32>,
    %c0_8 = arith.constant 0 : index
    %c0_9 = arith.constant 0 : index
    %9 = vector.load %arg8[%c0_8, %c0_9] : memref<16x1xf32, #tpu.memory_space<vmem>>, vector<16x1xf32>
    %10 = arith.mulf %3, %3 : vector<16x128xf32>
    %cst_10 = arith.constant dense<0.000000e+00> : vector<16xf32>
    %11 = vector.multi_reduction <add>, %10, %cst_10 [1] : vector<16x128xf32> to vector<16xf32>
    %12 = vector.shape_cast %11 : vector<16xf32> to vector<16x1xf32>
    %13 = arith.addf %9, %12 : vector<16x1xf32>
    %c0_11 = arith.constant 0 : index
    %c0_12 = arith.constant 0 : index
    %14 = vector.load %arg8[%c0_11, %c0_12] : memref<16x1xf32, #tpu.memory_space<vmem>>, vector<16x1xf32>
    tpu.vector_store %arg8[%c0_11, %c0_12], %13 {strides = array<i32>} : memref<16x1xf32, #tpu.memory_space<vmem>>, vector<16x1xf32>,
    %c0_i32_13 = arith.constant 0 : i32
    %15 = arith.cmpi eq, %arg1, %c0_i32_13 : i32
    %16 = arith.extui %15 : i1 to i32
    %c0_i32_14 = arith.constant 0 : i32
    %17 = arith.cmpi ne, %16, %c0_i32_14 : i32
    scf.if %17 {
      %c0_15 = arith.constant 0 : index
      %c0_16 = arith.constant 0 : index
      %18 = vector.load %arg7[%c0_15, %c0_16] : memref<16x128xf32, #tpu.memory_space<vmem>>, vector<16x128xf32>
      %c0_17 = arith.constant 0 : index
      %c0_18 = arith.constant 0 : index
      %19 = vector.load %arg8[%c0_17, %c0_18] : memref<16x1xf32, #tpu.memory_space<vmem>>, vector<16x1xf32>
      %cst_19 = arith.constant 1.000000e-15 : f32
      %20 = vector.broadcast %cst_19 : f32 to vector<16x1xf32>
      %21 = arith.maximumf %19, %20 : vector<16x1xf32>
      %22 = math.sqrt %21 : vector<16x1xf32>
      %23 = arith.mulf %18, %18 : vector<16x128xf32>
      %cst_20 = arith.constant dense<0.000000e+00> : vector<16xf32>
      %24 = vector.multi_reduction <add>, %23, %cst_20 [1] : vector<16x128xf32> to vector<16xf32>
      %25 = vector.shape_cast %24 : vector<16xf32> to vector<16x1xf32>
      %cst_21 = arith.constant 1.000000e-15 : f32
      %26 = vector.broadcast %cst_21 : f32 to vector<16x1xf32>
      %27 = arith.maximumf %25, %26 : vector<16x1xf32>
      %28 = math.sqrt %27 : vector<16x1xf32>
      %29 = arith.divf %28, %22 : vector<16x1xf32>
      %cst_22 = arith.constant 1.000000e+00 : f32
      %30 = vector.broadcast %cst_22 : f32 to vector<16x1xf32>
      %31 = arith.mulf %30, %22 : vector<16x1xf32>
      %cst_23 = arith.constant -0.99999988 : f32
      %cst_24 = arith.constant 0.99999988 : f32
      %32 = vector.broadcast %cst_23 : f32 to vector<16x1xf32>
      %33 = arith.maximumf %32, %31 : vector<16x1xf32>
      %34 = vector.broadcast %cst_24 : f32 to vector<16x1xf32>
      %35 = arith.minimumf %34, %33 : vector<16x1xf32>
      %36 = math.log1p %35 : vector<16x1xf32>
      %cst_25 = arith.constant 0.000000e+00 : f32
      %37 = vector.broadcast %cst_25 : f32 to vector<16x1xf32>
      %38 = arith.subf %37, %35 : vector<16x1xf32>
      %39 = math.log1p %38 : vector<16x1xf32>
      %40 = arith.subf %36, %39 : vector<16x1xf32>
      %cst_26 = arith.constant 5.000000e-01 : f32
      %41 = vector.broadcast %cst_26 : f32 to vector<16x1xf32>
      %42 = arith.mulf %41, %40 : vector<16x1xf32>
      %43 = arith.mulf %29, %42 : vector<16x1xf32>
      %44 = math.tanh %43 : vector<16x1xf32>
      %45 = vector.broadcast %44 : vector<16x1xf32> to vector<16x128xf32>
      %46 = arith.mulf %45, %18 : vector<16x128xf32>
      %cst_27 = arith.constant 1.000000e+00 : f32
      %47 = vector.broadcast %cst_27 : f32 to vector<16x1xf32>
      %48 = arith.mulf %28, %47 : vector<16x1xf32>
      %49 = vector.broadcast %48 : vector<16x1xf32> to vector<16x128xf32>
      %50 = arith.divf %46, %49 : vector<16x128xf32>
      %51 = arith.mulf %28, %28 : vector<16x1xf32>
      %cst_28 = arith.constant 1.000000e-15 : f32
      %52 = vector.broadcast %cst_28 : f32 to vector<16x1xf32>
      %53 = arith.cmpf ole, %51, %52 : vector<16x1xf32>
      %cst_29 = arith.constant 0.000000e+00 : f32
      %54 = vector.broadcast %cst_29 : f32 to vector<16x128xf32>
      %55 = vector.shape_cast %53 : vector<16x1xi1> to vector<16x1xi1>
      %56 = vector.broadcast %55 : vector<16x1xi1> to vector<16x128xi1>
      %57 = arith.select %56, %54, %50 : vector<16x128xi1>, vector<16x128xf32>
      %c0_30 = arith.constant 0 : index
      %c0_31 = arith.constant 0 : index
      %58 = vector.load %arg4[%c0_30, %c0_31] : memref<1x128xf32, #tpu.memory_space<vmem>>, vector<1x128xf32>
      %c0_32 = arith.constant 0 : index
      %c0_33 = arith.constant 0 : index
      %59 = memref.load %arg5[%c0_32, %c0_33] : memref<1x1xf32, #tpu.memory_space<smem>>
      %60 = arith.mulf %57, %57 : vector<16x128xf32>
      %cst_34 = arith.constant dense<0.000000e+00> : vector<16xf32>
      %61 = vector.multi_reduction <add>, %60, %cst_34 [1] : vector<16x128xf32> to vector<16xf32>
      %62 = vector.shape_cast %61 : vector<16xf32> to vector<16x1xf32>
      %63 = vector.broadcast %58 : vector<1x128xf32> to vector<16x128xf32>
      %64 = arith.mulf %57, %63 : vector<16x128xf32>
      %cst_35 = arith.constant dense<0.000000e+00> : vector<16xf32>
      %65 = vector.multi_reduction <add>, %64, %cst_35 [1] : vector<16x128xf32> to vector<16xf32>
      %66 = vector.shape_cast %65 : vector<16xf32> to vector<16x1xf32>
      %cst_36 = arith.constant 2.000000e+00 : f32
      %67 = vector.broadcast %cst_36 : f32 to vector<16x1xf32>
      %68 = arith.mulf %67, %66 : vector<16x1xf32>
      %cst_37 = arith.constant 1.000000e+00 : f32
      %69 = vector.broadcast %cst_37 : f32 to vector<16x1xf32>
      %70 = arith.addf %69, %68 : vector<16x1xf32>
      %cst_38 = arith.constant 1.000000e+00 : f32
      %71 = arith.mulf %cst_38, %59 : f32
      %72 = vector.broadcast %71 : f32 to vector<16x1xf32>
      %73 = arith.addf %70, %72 : vector<16x1xf32>
      %74 = vector.broadcast %73 : vector<16x1xf32> to vector<16x128xf32>
      %75 = arith.mulf %74, %57 : vector<16x128xf32>
      %cst_39 = arith.constant 1.000000e+00 : f32
      %76 = vector.broadcast %cst_39 : f32 to vector<16x1xf32>
      %77 = arith.mulf %76, %62 : vector<16x1xf32>
      %cst_40 = arith.constant 1.000000e+00 : f32
      %78 = vector.broadcast %cst_40 : f32 to vector<16x1xf32>
      %79 = arith.subf %78, %77 : vector<16x1xf32>
      %80 = vector.broadcast %79 : vector<16x1xf32> to vector<16x128xf32>
      %81 = vector.broadcast %58 : vector<1x128xf32> to vector<16x128xf32>
      %82 = arith.mulf %80, %81 : vector<16x128xf32>
      %83 = arith.addf %75, %82 : vector<16x128xf32>
      %cst_41 = arith.constant 2.000000e+00 : f32
      %84 = vector.broadcast %cst_41 : f32 to vector<16x1xf32>
      %85 = arith.mulf %84, %66 : vector<16x1xf32>
      %cst_42 = arith.constant 1.000000e+00 : f32
      %86 = vector.broadcast %cst_42 : f32 to vector<16x1xf32>
      %87 = arith.addf %86, %85 : vector<16x1xf32>
      %cst_43 = arith.constant 1.000000e+00 : f32
      %88 = vector.broadcast %cst_43 : f32 to vector<16x1xf32>
      %89 = arith.mulf %88, %62 : vector<16x1xf32>
      %90 = vector.broadcast %59 : f32 to vector<16x1xf32>
      %91 = arith.mulf %89, %90 : vector<16x1xf32>
      %92 = arith.addf %87, %91 : vector<16x1xf32>
      %cst_44 = arith.constant 1.000000e-15 : f32
      %93 = vector.broadcast %cst_44 : f32 to vector<16x1xf32>
      %94 = arith.maximumf %92, %93 : vector<16x1xf32>
      %95 = vector.broadcast %94 : vector<16x1xf32> to vector<16x128xf32>
      %96 = arith.divf %83, %95 : vector<16x128xf32>
      %97 = arith.mulf %96, %96 : vector<16x128xf32>
      %cst_45 = arith.constant dense<0.000000e+00> : vector<16xf32>
      %98 = vector.multi_reduction <add>, %97, %cst_45 [1] : vector<16x128xf32> to vector<16xf32>
      %99 = vector.shape_cast %98 : vector<16xf32> to vector<16x1xf32>
      %cst_46 = arith.constant 1.000000e-15 : f32
      %100 = vector.broadcast %cst_46 : f32 to vector<16x1xf32>
      %101 = arith.maximumf %99, %100 : vector<16x1xf32>
      %102 = math.sqrt %101 : vector<16x1xf32>
      %cst_47 = arith.constant 0.999989986 : f32
      %103 = vector.broadcast %cst_47 : f32 to vector<16x1xf32>
      %104 = arith.divf %103, %102 : vector<16x1xf32>
      %105 = vector.broadcast %104 : vector<16x1xf32> to vector<16x128xf32>
      %106 = arith.mulf %96, %105 : vector<16x128xf32>
      %cst_48 = arith.constant 0.999989986 : f32
      %107 = vector.broadcast %cst_48 : f32 to vector<16x1xf32>
      %108 = arith.cmpf ogt, %102, %107 : vector<16x1xf32>
      %109 = vector.shape_cast %108 : vector<16x1xi1> to vector<16x1xi1>
      %110 = vector.broadcast %109 : vector<16x1xi1> to vector<16x128xi1>
      %111 = arith.select %110, %106, %96 : vector<16x128xi1>, vector<16x128xf32>
      %112 = tpu.iota {dimensions = array<i32: 1>} : vector<16x128xi32>
      %c8_i32 = arith.constant 8 : i32
      %113 = vector.broadcast %c8_i32 : i32 to vector<16x128xi32>
      %114 = arith.cmpi slt, %112, %113 : vector<16x128xi32>
      %cst_49 = arith.constant -1.000000e+30 : f32
      %115 = vector.broadcast %cst_49 : f32 to vector<16x128xf32>
      %116 = arith.select %114, %111, %115 : vector<16x128xi1>, vector<16x128xf32>
      %cst_50 = arith.constant dense<0xFF800000> : vector<16xf32>
      %117 = vector.multi_reduction <maximumf>, %116, %cst_50 [1] : vector<16x128xf32> to vector<16xf32>
      %118 = vector.shape_cast %117 : vector<16xf32> to vector<16x1xf32>
      %119 = vector.broadcast %118 : vector<16x1xf32> to vector<16x128xf32>
      %120 = arith.subf %116, %119 : vector<16x128xf32>
      %121 = math.exp %120 : vector<16x128xf32>
      %cst_51 = arith.constant dense<0.000000e+00> : vector<16xf32>
      %122 = vector.multi_reduction <add>, %121, %cst_51 [1] : vector<16x128xf32> to vector<16xf32>
      %123 = vector.shape_cast %122 : vector<16xf32> to vector<16x1xf32>
      %124 = math.log %123 : vector<16x1xf32>
      %125 = vector.broadcast %124 : vector<16x1xf32> to vector<16x128xf32>
      %126 = arith.subf %120, %125 : vector<16x128xf32>
      %c0_52 = arith.constant 0 : index
      %c0_53 = arith.constant 0 : index
      %127 = vector.load %arg6[%c0_52, %c0_53] : memref<16x128xf32, #tpu.memory_space<vmem>>, vector<16x128xf32>
      tpu.vector_store %arg6[%c0_52, %c0_53], %126 {strides = array<i32>} : memref<16x128xf32, #tpu.memory_space<vmem>>, vector<16x128xf32>,
    } else {
    }
    return
  }
  func.func @transform_0(%arg0: i32, %arg1: i32) -> (i32, i32) {
    %c0_i32 = arith.constant 0 : i32
    return %arg0, %arg1 : i32, i32
  }
  func.func @transform_1(%arg0: i32, %arg1: i32) -> (i32, i32) {
    %c0_i32 = arith.constant 0 : i32
    %c0_i32_0 = arith.constant 0 : i32
    return %arg1, %c0_i32 : i32, i32
  }
  func.func @transform_2(%arg0: i32, %arg1: i32) -> (i32, i32) {
    %c0_i32 = arith.constant 0 : i32
    %c0_i32_0 = arith.constant 0 : i32
    %c0_i32_1 = arith.constant 0 : i32
    return %c0_i32, %c0_i32_0 : i32, i32
  }
  func.func @transform_3(%arg0: i32, %arg1: i32) -> (i32, i32) {
    %c0_i32 = arith.constant 0 : i32
    %c0_i32_0 = arith.constant 0 : i32
    %c0_i32_1 = arith.constant 0 : i32
    return %c0_i32, %c0_i32_0 : i32, i32
  }
  func.func @transform_4(%arg0: i32, %arg1: i32) -> (i32, i32) {
    %c0_i32 = arith.constant 0 : i32
    %c0_i32_0 = arith.constant 0 : i32
    return %arg0, %c0_i32 : i32, i32
  }
}

module attributes {stable_mosaic.version = 11 : i64} {
  func.func @kernel(%arg0: i32, %arg1: i32, %arg2: memref<16x128xf32, #tpu.memory_space<vmem>>, %arg3: memref<128x128xf32, #tpu.memory_space<vmem>>, %arg4: memref<1x128xf32, #tpu.memory_space<vmem>>, %arg5: memref<1x1xf32, #tpu.memory_space<smem>>, %arg6: memref<16x128xf32, #tpu.memory_space<vmem>>, %arg7: memref<16x128xbf16, #tpu.memory_space<vmem>>, %arg8: memref<16x128xf32, #tpu.memory_space<vmem>>, %arg9: memref<16x1xf32, #tpu.memory_space<vmem>>) attributes {dimension_semantics = [#tpu.dimension_semantics<parallel>, #tpu.dimension_semantics<arbitrary>], iteration_bounds = array<i64: 2, 1>, scalar_prefetch = 0 : i64, scratch_operands = 2 : i64, tpu.core_type = #tpu.core_type<tc>, window_params = [{transform_indices = @transform_0, window_bounds = array<i64: 16, 128>}, {transform_indices = @transform_1, window_bounds = array<i64: 128, 128>}, {pipeline_mode = #tpu.pipeline_mode<synchronous>, transform_indices = @transform_2, window_bounds = array<i64: 1, 128>}, {transform_indices = @transform_3, window_bounds = array<i64: 1, 1>}, {transform_indices = @transform_4, window_bounds = array<i64: 16, 128>}, {transform_indices = @transform_5, window_bounds = array<i64: 16, 128>}]} {
    %c0_i32 = arith.constant 0 : i32
    %0 = arith.cmpi eq, %arg1, %c0_i32 : i32
    %1 = arith.extui %0 : i1 to i32
    %c0_i32_0 = arith.constant 0 : i32
    %2 = arith.cmpi ne, %1, %c0_i32_0 : i32
    scf.if %2 {
      %cst_15 = arith.constant 0.000000e+00 : f32
      %18 = vector.broadcast %cst_15 : f32 to vector<16x128xf32>
      %c0_16 = arith.constant 0 : index
      %c0_17 = arith.constant 0 : index
      %19 = vector.load %arg8[%c0_16, %c0_17] : memref<16x128xf32, #tpu.memory_space<vmem>>, vector<16x128xf32>
      tpu.vector_store %arg8[%c0_16, %c0_17], %18 {strides = array<i32>} : memref<16x128xf32, #tpu.memory_space<vmem>>, vector<16x128xf32>,
      %cst_18 = arith.constant 0.000000e+00 : f32
      %20 = vector.broadcast %cst_18 : f32 to vector<16x1xf32>
      %c0_19 = arith.constant 0 : index
      %c0_20 = arith.constant 0 : index
      %21 = vector.load %arg9[%c0_19, %c0_20] : memref<16x1xf32, #tpu.memory_space<vmem>>, vector<16x1xf32>
      tpu.vector_store %arg9[%c0_19, %c0_20], %20 {strides = array<i32>} : memref<16x1xf32, #tpu.memory_space<vmem>>, vector<16x1xf32>,
    } else {
    }
    %c0 = arith.constant 0 : index
    %c0_1 = arith.constant 0 : index
    %3 = vector.load %arg2[%c0, %c0_1] : memref<16x128xf32, #tpu.memory_space<vmem>>, vector<16x128xf32>
    %c0_2 = arith.constant 0 : index
    %c0_3 = arith.constant 0 : index
    %4 = vector.load %arg8[%c0_2, %c0_3] : memref<16x128xf32, #tpu.memory_space<vmem>>, vector<16x128xf32>
    %c0_4 = arith.constant 0 : index
    %c0_5 = arith.constant 0 : index
    %5 = vector.load %arg3[%c0_4, %c0_5] : memref<128x128xf32, #tpu.memory_space<vmem>>, vector<128x128xf32>
    %cst = arith.constant dense<0.000000e+00> : vector<16x128xf32>
    %6 = tpu.matmul %3, %5, %cst {dimension_numbers = #tpu.dot_dimension_numbers<[1], [0], [0], [1], [0, 0, 1, 1], [], []>} : vector<16x128xf32>, vector<128x128xf32>, vector<16x128xf32> -> vector<16x128xf32>
    %7 = arith.addf %4, %6 : vector<16x128xf32>
    %c0_6 = arith.constant 0 : index
    %c0_7 = arith.constant 0 : index
    %8 = vector.load %arg8[%c0_6, %c0_7] : memref<16x128xf32, #tpu.memory_space<vmem>>, vector<16x128xf32>
    tpu.vector_store %arg8[%c0_6, %c0_7], %7 {strides = array<i32>} : memref<16x128xf32, #tpu.memory_space<vmem>>, vector<16x128xf32>,
    %c0_8 = arith.constant 0 : index
    %c0_9 = arith.constant 0 : index
    %9 = vector.load %arg9[%c0_8, %c0_9] : memref<16x1xf32, #tpu.memory_space<vmem>>, vector<16x1xf32>
    %10 = arith.mulf %3, %3 : vector<16x128xf32>
    %cst_10 = arith.constant dense<0.000000e+00> : vector<16xf32>
    %11 = vector.multi_reduction <add>, %10, %cst_10 [1] : vector<16x128xf32> to vector<16xf32>
    %12 = vector.shape_cast %11 : vector<16xf32> to vector<16x1xf32>
    %13 = arith.addf %9, %12 : vector<16x1xf32>
    %c0_11 = arith.constant 0 : index
    %c0_12 = arith.constant 0 : index
    %14 = vector.load %arg9[%c0_11, %c0_12] : memref<16x1xf32, #tpu.memory_space<vmem>>, vector<16x1xf32>
    tpu.vector_store %arg9[%c0_11, %c0_12], %13 {strides = array<i32>} : memref<16x1xf32, #tpu.memory_space<vmem>>, vector<16x1xf32>,
    %c0_i32_13 = arith.constant 0 : i32
    %15 = arith.cmpi eq, %arg1, %c0_i32_13 : i32
    %16 = arith.extui %15 : i1 to i32
    %c0_i32_14 = arith.constant 0 : i32
    %17 = arith.cmpi ne, %16, %c0_i32_14 : i32
    scf.if %17 {
      %c0_15 = arith.constant 0 : index
      %c0_16 = arith.constant 0 : index
      %18 = vector.load %arg8[%c0_15, %c0_16] : memref<16x128xf32, #tpu.memory_space<vmem>>, vector<16x128xf32>
      %c0_17 = arith.constant 0 : index
      %c0_18 = arith.constant 0 : index
      %19 = vector.load %arg9[%c0_17, %c0_18] : memref<16x1xf32, #tpu.memory_space<vmem>>, vector<16x1xf32>
      %cst_19 = arith.constant 1.000000e-15 : f32
      %20 = vector.broadcast %cst_19 : f32 to vector<16x1xf32>
      %21 = arith.maximumf %19, %20 : vector<16x1xf32>
      %22 = math.sqrt %21 : vector<16x1xf32>
      %23 = arith.mulf %18, %18 : vector<16x128xf32>
      %cst_20 = arith.constant dense<0.000000e+00> : vector<16xf32>
      %24 = vector.multi_reduction <add>, %23, %cst_20 [1] : vector<16x128xf32> to vector<16xf32>
      %25 = vector.shape_cast %24 : vector<16xf32> to vector<16x1xf32>
      %cst_21 = arith.constant 1.000000e-15 : f32
      %26 = vector.broadcast %cst_21 : f32 to vector<16x1xf32>
      %27 = arith.maximumf %25, %26 : vector<16x1xf32>
      %28 = math.sqrt %27 : vector<16x1xf32>
      %29 = arith.divf %28, %22 : vector<16x1xf32>
      %cst_22 = arith.constant 1.000000e+00 : f32
      %30 = vector.broadcast %cst_22 : f32 to vector<16x1xf32>
      %31 = arith.mulf %30, %22 : vector<16x1xf32>
      %cst_23 = arith.constant -0.99999988 : f32
      %cst_24 = arith.constant 0.99999988 : f32
      %32 = vector.broadcast %cst_23 : f32 to vector<16x1xf32>
      %33 = arith.maximumf %32, %31 : vector<16x1xf32>
      %34 = vector.broadcast %cst_24 : f32 to vector<16x1xf32>
      %35 = arith.minimumf %34, %33 : vector<16x1xf32>
      %36 = math.log1p %35 : vector<16x1xf32>
      %cst_25 = arith.constant 0.000000e+00 : f32
      %37 = vector.broadcast %cst_25 : f32 to vector<16x1xf32>
      %38 = arith.subf %37, %35 : vector<16x1xf32>
      %39 = math.log1p %38 : vector<16x1xf32>
      %40 = arith.subf %36, %39 : vector<16x1xf32>
      %cst_26 = arith.constant 5.000000e-01 : f32
      %41 = vector.broadcast %cst_26 : f32 to vector<16x1xf32>
      %42 = arith.mulf %41, %40 : vector<16x1xf32>
      %43 = arith.mulf %29, %42 : vector<16x1xf32>
      %44 = math.tanh %43 : vector<16x1xf32>
      %45 = vector.broadcast %44 : vector<16x1xf32> to vector<16x128xf32>
      %46 = arith.mulf %45, %18 : vector<16x128xf32>
      %cst_27 = arith.constant 1.000000e+00 : f32
      %47 = vector.broadcast %cst_27 : f32 to vector<16x1xf32>
      %48 = arith.mulf %28, %47 : vector<16x1xf32>
      %49 = vector.broadcast %48 : vector<16x1xf32> to vector<16x128xf32>
      %50 = arith.divf %46, %49 : vector<16x128xf32>
      %51 = arith.mulf %28, %28 : vector<16x1xf32>
      %cst_28 = arith.constant 1.000000e-15 : f32
      %52 = vector.broadcast %cst_28 : f32 to vector<16x1xf32>
      %53 = arith.cmpf ole, %51, %52 : vector<16x1xf32>
      %cst_29 = arith.constant 0.000000e+00 : f32
      %54 = vector.broadcast %cst_29 : f32 to vector<16x128xf32>
      %55 = vector.shape_cast %53 : vector<16x1xi1> to vector<16x1xi1>
      %56 = vector.broadcast %55 : vector<16x1xi1> to vector<16x128xi1>
      %57 = arith.select %56, %54, %50 : vector<16x128xi1>, vector<16x128xf32>
      %c0_30 = arith.constant 0 : index
      %c0_31 = arith.constant 0 : index
      %58 = vector.load %arg4[%c0_30, %c0_31] : memref<1x128xf32, #tpu.memory_space<vmem>>, vector<1x128xf32>
      %c0_32 = arith.constant 0 : index
      %c0_33 = arith.constant 0 : index
      %59 = memref.load %arg5[%c0_32, %c0_33] : memref<1x1xf32, #tpu.memory_space<smem>>
      %60 = arith.mulf %57, %57 : vector<16x128xf32>
      %cst_34 = arith.constant dense<0.000000e+00> : vector<16xf32>
      %61 = vector.multi_reduction <add>, %60, %cst_34 [1] : vector<16x128xf32> to vector<16xf32>
      %62 = vector.shape_cast %61 : vector<16xf32> to vector<16x1xf32>
      %63 = vector.broadcast %58 : vector<1x128xf32> to vector<16x128xf32>
      %64 = arith.mulf %57, %63 : vector<16x128xf32>
      %cst_35 = arith.constant dense<0.000000e+00> : vector<16xf32>
      %65 = vector.multi_reduction <add>, %64, %cst_35 [1] : vector<16x128xf32> to vector<16xf32>
      %66 = vector.shape_cast %65 : vector<16xf32> to vector<16x1xf32>
      %cst_36 = arith.constant 2.000000e+00 : f32
      %67 = vector.broadcast %cst_36 : f32 to vector<16x1xf32>
      %68 = arith.mulf %67, %66 : vector<16x1xf32>
      %cst_37 = arith.constant 1.000000e+00 : f32
      %69 = vector.broadcast %cst_37 : f32 to vector<16x1xf32>
      %70 = arith.addf %69, %68 : vector<16x1xf32>
      %cst_38 = arith.constant 1.000000e+00 : f32
      %71 = arith.mulf %cst_38, %59 : f32
      %72 = vector.broadcast %71 : f32 to vector<16x1xf32>
      %73 = arith.addf %70, %72 : vector<16x1xf32>
      %74 = vector.broadcast %73 : vector<16x1xf32> to vector<16x128xf32>
      %75 = arith.mulf %74, %57 : vector<16x128xf32>
      %cst_39 = arith.constant 1.000000e+00 : f32
      %76 = vector.broadcast %cst_39 : f32 to vector<16x1xf32>
      %77 = arith.mulf %76, %62 : vector<16x1xf32>
      %cst_40 = arith.constant 1.000000e+00 : f32
      %78 = vector.broadcast %cst_40 : f32 to vector<16x1xf32>
      %79 = arith.subf %78, %77 : vector<16x1xf32>
      %80 = vector.broadcast %79 : vector<16x1xf32> to vector<16x128xf32>
      %81 = vector.broadcast %58 : vector<1x128xf32> to vector<16x128xf32>
      %82 = arith.mulf %80, %81 : vector<16x128xf32>
      %83 = arith.addf %75, %82 : vector<16x128xf32>
      %cst_41 = arith.constant 2.000000e+00 : f32
      %84 = vector.broadcast %cst_41 : f32 to vector<16x1xf32>
      %85 = arith.mulf %84, %66 : vector<16x1xf32>
      %cst_42 = arith.constant 1.000000e+00 : f32
      %86 = vector.broadcast %cst_42 : f32 to vector<16x1xf32>
      %87 = arith.addf %86, %85 : vector<16x1xf32>
      %cst_43 = arith.constant 1.000000e+00 : f32
      %88 = vector.broadcast %cst_43 : f32 to vector<16x1xf32>
      %89 = arith.mulf %88, %62 : vector<16x1xf32>
      %90 = vector.broadcast %59 : f32 to vector<16x1xf32>
      %91 = arith.mulf %89, %90 : vector<16x1xf32>
      %92 = arith.addf %87, %91 : vector<16x1xf32>
      %cst_44 = arith.constant 1.000000e-15 : f32
      %93 = vector.broadcast %cst_44 : f32 to vector<16x1xf32>
      %94 = arith.maximumf %92, %93 : vector<16x1xf32>
      %95 = vector.broadcast %94 : vector<16x1xf32> to vector<16x128xf32>
      %96 = arith.divf %83, %95 : vector<16x128xf32>
      %97 = arith.mulf %96, %96 : vector<16x128xf32>
      %cst_45 = arith.constant dense<0.000000e+00> : vector<16xf32>
      %98 = vector.multi_reduction <add>, %97, %cst_45 [1] : vector<16x128xf32> to vector<16xf32>
      %99 = vector.shape_cast %98 : vector<16xf32> to vector<16x1xf32>
      %cst_46 = arith.constant 1.000000e-15 : f32
      %100 = vector.broadcast %cst_46 : f32 to vector<16x1xf32>
      %101 = arith.maximumf %99, %100 : vector<16x1xf32>
      %102 = math.sqrt %101 : vector<16x1xf32>
      %cst_47 = arith.constant 0.999989986 : f32
      %103 = vector.broadcast %cst_47 : f32 to vector<16x1xf32>
      %104 = arith.divf %103, %102 : vector<16x1xf32>
      %105 = vector.broadcast %104 : vector<16x1xf32> to vector<16x128xf32>
      %106 = arith.mulf %96, %105 : vector<16x128xf32>
      %cst_48 = arith.constant 0.999989986 : f32
      %107 = vector.broadcast %cst_48 : f32 to vector<16x1xf32>
      %108 = arith.cmpf ogt, %102, %107 : vector<16x1xf32>
      %109 = vector.shape_cast %108 : vector<16x1xi1> to vector<16x1xi1>
      %110 = vector.broadcast %109 : vector<16x1xi1> to vector<16x128xi1>
      %111 = arith.select %110, %106, %96 : vector<16x128xi1>, vector<16x128xf32>
      %cst_49 = arith.constant 0.000000e+00 : f32
      %112 = vector.broadcast %cst_49 : f32 to vector<16x128xf32>
      %113 = arith.maximumf %111, %112 : vector<16x128xf32>
      %114 = arith.mulf %113, %113 : vector<16x128xf32>
      %cst_50 = arith.constant dense<0.000000e+00> : vector<16xf32>
      %115 = vector.multi_reduction <add>, %114, %cst_50 [1] : vector<16x128xf32> to vector<16xf32>
      %116 = vector.shape_cast %115 : vector<16xf32> to vector<16x1xf32>
      %cst_51 = arith.constant 1.000000e+00 : f32
      %117 = vector.broadcast %cst_51 : f32 to vector<16x1xf32>
      %118 = arith.mulf %117, %116 : vector<16x1xf32>
      %cst_52 = arith.constant 1.000000e+00 : f32
      %119 = vector.broadcast %cst_52 : f32 to vector<16x1xf32>
      %120 = arith.subf %119, %118 : vector<16x1xf32>
      %cst_53 = arith.constant 1.000000e-15 : f32
      %121 = vector.broadcast %cst_53 : f32 to vector<16x1xf32>
      %122 = arith.maximumf %120, %121 : vector<16x1xf32>
      %cst_54 = arith.constant 2.000000e+00 : f32
      %123 = vector.broadcast %cst_54 : f32 to vector<16x1xf32>
      %124 = arith.divf %123, %122 : vector<16x1xf32>
      %125 = tpu.iota {dimensions = array<i32: 1>} : vector<16x128xi32>
      %c32_i32 = arith.constant 32 : i32
      %126 = vector.broadcast %c32_i32 : i32 to vector<16x128xi32>
      %127 = arith.cmpi eq, %125, %126 : vector<16x128xi32>
      %128 = arith.extui %127 : vector<16x128xi1> to vector<16x128xi32>
      %129 = arith.sitofp %128 : vector<16x128xi32> to vector<16x128xf32>
      %130 = vector.broadcast %124 : vector<16x1xf32> to vector<16x128xf32>
      %131 = arith.mulf %130, %113 : vector<16x128xf32>
      %cst_55 = arith.constant 1.000000e+00 : f32
      %132 = vector.broadcast %cst_55 : f32 to vector<16x1xf32>
      %133 = arith.subf %124, %132 : vector<16x1xf32>
      %134 = vector.broadcast %133 : vector<16x1xf32> to vector<16x128xf32>
      %135 = arith.mulf %134, %129 : vector<16x128xf32>
      %136 = arith.addf %131, %135 : vector<16x128xf32>
      %c0_56 = arith.constant 0 : index
      %c0_57 = arith.constant 0 : index
      %137 = vector.load %arg6[%c0_56, %c0_57] : memref<16x128xf32, #tpu.memory_space<vmem>>, vector<16x128xf32>
      tpu.vector_store %arg6[%c0_56, %c0_57], %113 {strides = array<i32>} : memref<16x128xf32, #tpu.memory_space<vmem>>, vector<16x128xf32>,
      %138 = arith.truncf %136 : vector<16x128xf32> to vector<16x128xbf16>
      %c0_58 = arith.constant 0 : index
      %c0_59 = arith.constant 0 : index
      %139 = vector.load %arg7[%c0_58, %c0_59] : memref<16x128xbf16, #tpu.memory_space<vmem>>, vector<16x128xbf16>
      tpu.vector_store %arg7[%c0_58, %c0_59], %138 {strides = array<i32>} : memref<16x128xbf16, #tpu.memory_space<vmem>>, vector<16x128xbf16>,
    } else {
    }
    return
  }
  func.func @transform_0(%arg0: i32, %arg1: i32) -> (i32, i32) {
    %c0_i32 = arith.constant 0 : i32
    return %arg0, %arg1 : i32, i32
  }
  func.func @transform_1(%arg0: i32, %arg1: i32) -> (i32, i32) {
    %c0_i32 = arith.constant 0 : i32
    %c0_i32_0 = arith.constant 0 : i32
    return %arg1, %c0_i32 : i32, i32
  }
  func.func @transform_2(%arg0: i32, %arg1: i32) -> (i32, i32) {
    %c0_i32 = arith.constant 0 : i32
    %c0_i32_0 = arith.constant 0 : i32
    %c0_i32_1 = arith.constant 0 : i32
    return %c0_i32, %c0_i32_0 : i32, i32
  }
  func.func @transform_3(%arg0: i32, %arg1: i32) -> (i32, i32) {
    %c0_i32 = arith.constant 0 : i32
    %c0_i32_0 = arith.constant 0 : i32
    %c0_i32_1 = arith.constant 0 : i32
    return %c0_i32, %c0_i32_0 : i32, i32
  }
  func.func @transform_4(%arg0: i32, %arg1: i32) -> (i32, i32) {
    %c0_i32 = arith.constant 0 : i32
    %c0_i32_0 = arith.constant 0 : i32
    return %arg0, %c0_i32 : i32, i32
  }
  func.func @transform_5(%arg0: i32, %arg1: i32) -> (i32, i32) {
    %c0_i32 = arith.constant 0 : i32
    %c0_i32_0 = arith.constant 0 : i32
    return %arg0, %c0_i32 : i32, i32
  }
}

module attributes {stable_mosaic.version = 11 : i64} {
  func.func @kernel(%arg0: i32, %arg1: i32, %arg2: memref<32x128xbf16, #tpu.memory_space<vmem>>, %arg3: memref<16x32xbf16, #tpu.memory_space<vmem>>, %arg4: memref<16x128xf32, #tpu.memory_space<vmem>>, %arg5: memref<16x128xf32, #tpu.memory_space<vmem>>, %arg6: memref<16x128xf32, #tpu.memory_space<vmem>>) attributes {dimension_semantics = [#tpu.dimension_semantics<parallel>, #tpu.dimension_semantics<arbitrary>], iteration_bounds = array<i64: 2, 1>, scalar_prefetch = 0 : i64, scratch_operands = 1 : i64, tpu.core_type = #tpu.core_type<tc>, window_params = [{transform_indices = @transform_0, window_bounds = array<i64: 32, 128>}, {transform_indices = @transform_1, window_bounds = array<i64: 16, 32>}, {transform_indices = @transform_2, window_bounds = array<i64: 16, 128>}, {transform_indices = @transform_3, window_bounds = array<i64: 16, 128>}]} {
    %c0_i32 = arith.constant 0 : i32
    %0 = arith.cmpi eq, %arg1, %c0_i32 : i32
    %1 = arith.extui %0 : i1 to i32
    %c0_i32_0 = arith.constant 0 : i32
    %2 = arith.cmpi ne, %1, %c0_i32_0 : i32
    scf.if %2 {
      %cst_10 = arith.constant 0.000000e+00 : f32
      %12 = vector.broadcast %cst_10 : f32 to vector<16x128xf32>
      %c0_11 = arith.constant 0 : index
      %c0_12 = arith.constant 0 : index
      %13 = vector.load %arg6[%c0_11, %c0_12] : memref<16x128xf32, #tpu.memory_space<vmem>>, vector<16x128xf32>
      tpu.vector_store %arg6[%c0_11, %c0_12], %12 {strides = array<i32>} : memref<16x128xf32, #tpu.memory_space<vmem>>, vector<16x128xf32>,
    } else {
    }
    %c0 = arith.constant 0 : index
    %c0_1 = arith.constant 0 : index
    %3 = vector.load %arg6[%c0, %c0_1] : memref<16x128xf32, #tpu.memory_space<vmem>>, vector<16x128xf32>
    %c0_2 = arith.constant 0 : index
    %c0_3 = arith.constant 0 : index
    %4 = vector.load %arg3[%c0_2, %c0_3] : memref<16x32xbf16, #tpu.memory_space<vmem>>, vector<16x32xbf16>
    %c0_4 = arith.constant 0 : index
    %c0_5 = arith.constant 0 : index
    %5 = vector.load %arg2[%c0_4, %c0_5] : memref<32x128xbf16, #tpu.memory_space<vmem>>, vector<32x128xbf16>
    %cst = arith.constant dense<0.000000e+00> : vector<16x128xf32>
    %6 = tpu.matmul %4, %5, %cst {dimension_numbers = #tpu.dot_dimension_numbers<[1], [0], [0], [1], [0, 0, 1, 1], [], []>} : vector<16x32xbf16>, vector<32x128xbf16>, vector<16x128xf32> -> vector<16x128xf32>
    %7 = arith.addf %3, %6 : vector<16x128xf32>
    %c0_6 = arith.constant 0 : index
    %c0_7 = arith.constant 0 : index
    %8 = vector.load %arg6[%c0_6, %c0_7] : memref<16x128xf32, #tpu.memory_space<vmem>>, vector<16x128xf32>
    tpu.vector_store %arg6[%c0_6, %c0_7], %7 {strides = array<i32>} : memref<16x128xf32, #tpu.memory_space<vmem>>, vector<16x128xf32>,
    %c0_i32_8 = arith.constant 0 : i32
    %9 = arith.cmpi eq, %arg1, %c0_i32_8 : i32
    %10 = arith.extui %9 : i1 to i32
    %c0_i32_9 = arith.constant 0 : i32
    %11 = arith.cmpi ne, %10, %c0_i32_9 : i32
    scf.if %11 {
      %c0_10 = arith.constant 0 : index
      %c0_11 = arith.constant 0 : index
      %12 = vector.load %arg6[%c0_10, %c0_11] : memref<16x128xf32, #tpu.memory_space<vmem>>, vector<16x128xf32>
      %13 = tpu.iota {dimensions = array<i32: 1>} : vector<16x128xi32>
      %c32_i32 = arith.constant 32 : i32
      %14 = vector.broadcast %c32_i32 : i32 to vector<16x128xi32>
      %15 = arith.cmpi slt, %13, %14 : vector<16x128xi32>
      %16 = arith.extui %15 : vector<16x128xi1> to vector<16x128xi32>
      %17 = arith.sitofp %16 : vector<16x128xi32> to vector<16x128xf32>
      %18 = arith.mulf %12, %17 : vector<16x128xf32>
      %19 = vector.extract_strided_slice %12 {offsets = [0, 32], sizes = [16, 1], strides = [1, 1]} : vector<16x128xf32> to vector<16x1xf32>
      %cst_12 = arith.constant 0.000000e+00 : f32
      %20 = vector.broadcast %cst_12 : f32 to vector<16x1xf32>
      %21 = arith.cmpf oge, %19, %20 : vector<16x1xf32>
      %cst_13 = arith.constant 1.000000e+00 : f32
      %cst_14 = arith.constant -1.000000e+00 : f32
      %22 = vector.broadcast %cst_13 : f32 to vector<16x1xf32>
      %23 = vector.broadcast %cst_14 : f32 to vector<16x1xf32>
      %24 = arith.select %21, %22, %23 : vector<16x1xi1>, vector<16x1xf32>
      %25 = math.absf %19 : vector<16x1xf32>
      %cst_15 = arith.constant 1.000000e-10 : f32
      %26 = vector.broadcast %cst_15 : f32 to vector<16x1xf32>
      %27 = arith.maximumf %25, %26 : vector<16x1xf32>
      %28 = arith.mulf %24, %27 : vector<16x1xf32>
      %29 = vector.broadcast %28 : vector<16x1xf32> to vector<16x128xf32>
      %30 = arith.divf %18, %29 : vector<16x128xf32>
      %31 = arith.mulf %30, %30 : vector<16x128xf32>
      %cst_16 = arith.constant dense<0.000000e+00> : vector<16xf32>
      %32 = vector.multi_reduction <add>, %31, %cst_16 [1] : vector<16x128xf32> to vector<16xf32>
      %33 = vector.shape_cast %32 : vector<16xf32> to vector<16x1xf32>
      %cst_17 = arith.constant 1.000000e-15 : f32
      %34 = vector.broadcast %cst_17 : f32 to vector<16x1xf32>
      %35 = arith.maximumf %33, %34 : vector<16x1xf32>
      %36 = math.sqrt %35 : vector<16x1xf32>
      %cst_18 = arith.constant 1.000000e+00 : f32
      %37 = vector.broadcast %cst_18 : f32 to vector<16x1xf32>
      %38 = arith.mulf %37, %36 : vector<16x1xf32>
      %cst_19 = arith.constant -0.99999988 : f32
      %cst_20 = arith.constant 0.99999988 : f32
      %39 = vector.broadcast %cst_19 : f32 to vector<16x1xf32>
      %40 = arith.maximumf %39, %38 : vector<16x1xf32>
      %41 = vector.broadcast %cst_20 : f32 to vector<16x1xf32>
      %42 = arith.minimumf %41, %40 : vector<16x1xf32>
      %43 = math.log1p %42 : vector<16x1xf32>
      %cst_21 = arith.constant 0.000000e+00 : f32
      %44 = vector.broadcast %cst_21 : f32 to vector<16x1xf32>
      %45 = arith.subf %44, %42 : vector<16x1xf32>
      %46 = math.log1p %45 : vector<16x1xf32>
      %47 = arith.subf %43, %46 : vector<16x1xf32>
      %cst_22 = arith.constant 5.000000e-01 : f32
      %48 = vector.broadcast %cst_22 : f32 to vector<16x1xf32>
      %49 = arith.mulf %48, %47 : vector<16x1xf32>
      %cst_23 = arith.constant 5.000000e-01 : f32
      %50 = vector.broadcast %cst_23 : f32 to vector<16x1xf32>
      %51 = arith.mulf %50, %49 : vector<16x1xf32>
      %52 = math.tanh %51 : vector<16x1xf32>
      %53 = vector.broadcast %52 : vector<16x1xf32> to vector<16x128xf32>
      %54 = arith.mulf %53, %30 : vector<16x128xf32>
      %cst_24 = arith.constant 1.000000e+00 : f32
      %55 = vector.broadcast %cst_24 : f32 to vector<16x1xf32>
      %56 = arith.mulf %36, %55 : vector<16x1xf32>
      %57 = vector.broadcast %56 : vector<16x1xf32> to vector<16x128xf32>
      %58 = arith.divf %54, %57 : vector<16x128xf32>
      %59 = arith.mulf %58, %58 : vector<16x128xf32>
      %cst_25 = arith.constant dense<0.000000e+00> : vector<16xf32>
      %60 = vector.multi_reduction <add>, %59, %cst_25 [1] : vector<16x128xf32> to vector<16xf32>
      %61 = vector.shape_cast %60 : vector<16xf32> to vector<16x1xf32>
      %cst_26 = arith.constant 1.000000e-15 : f32
      %62 = vector.broadcast %cst_26 : f32 to vector<16x1xf32>
      %63 = arith.maximumf %61, %62 : vector<16x1xf32>
      %64 = math.sqrt %63 : vector<16x1xf32>
      %cst_27 = arith.constant 0.999989986 : f32
      %65 = vector.broadcast %cst_27 : f32 to vector<16x1xf32>
      %66 = arith.divf %65, %64 : vector<16x1xf32>
      %67 = vector.broadcast %66 : vector<16x1xf32> to vector<16x128xf32>
      %68 = arith.mulf %58, %67 : vector<16x128xf32>
      %cst_28 = arith.constant 0.999989986 : f32
      %69 = vector.broadcast %cst_28 : f32 to vector<16x1xf32>
      %70 = arith.cmpf ogt, %64, %69 : vector<16x1xf32>
      %71 = vector.shape_cast %70 : vector<16x1xi1> to vector<16x1xi1>
      %72 = vector.broadcast %71 : vector<16x1xi1> to vector<16x128xi1>
      %73 = arith.select %72, %68, %58 : vector<16x128xi1>, vector<16x128xf32>
      %c0_29 = arith.constant 0 : index
      %c0_30 = arith.constant 0 : index
      %74 = vector.load %arg4[%c0_29, %c0_30] : memref<16x128xf32, #tpu.memory_space<vmem>>, vector<16x128xf32>
      %75 = arith.mulf %73, %73 : vector<16x128xf32>
      %cst_31 = arith.constant dense<0.000000e+00> : vector<16xf32>
      %76 = vector.multi_reduction <add>, %75, %cst_31 [1] : vector<16x128xf32> to vector<16xf32>
      %77 = vector.shape_cast %76 : vector<16xf32> to vector<16x1xf32>
      %cst_32 = arith.constant 1.000000e+00 : f32
      %78 = vector.broadcast %cst_32 : f32 to vector<16x1xf32>
      %79 = arith.mulf %78, %77 : vector<16x1xf32>
      %cst_33 = arith.constant 1.000000e+00 : f32
      %80 = vector.broadcast %cst_33 : f32 to vector<16x1xf32>
      %81 = arith.subf %80, %79 : vector<16x1xf32>
      %cst_34 = arith.constant 1.000000e-15 : f32
      %82 = vector.broadcast %cst_34 : f32 to vector<16x1xf32>
      %83 = arith.maximumf %81, %82 : vector<16x1xf32>
      %cst_35 = arith.constant 2.000000e+00 : f32
      %84 = vector.broadcast %cst_35 : f32 to vector<16x1xf32>
      %85 = arith.divf %84, %83 : vector<16x1xf32>
      %86 = arith.mulf %74, %74 : vector<16x128xf32>
      %cst_36 = arith.constant dense<0.000000e+00> : vector<16xf32>
      %87 = vector.multi_reduction <add>, %86, %cst_36 [1] : vector<16x128xf32> to vector<16xf32>
      %88 = vector.shape_cast %87 : vector<16xf32> to vector<16x1xf32>
      %cst_37 = arith.constant 1.000000e+00 : f32
      %89 = vector.broadcast %cst_37 : f32 to vector<16x1xf32>
      %90 = arith.mulf %89, %88 : vector<16x1xf32>
      %cst_38 = arith.constant 1.000000e+00 : f32
      %91 = vector.broadcast %cst_38 : f32 to vector<16x1xf32>
      %92 = arith.subf %91, %90 : vector<16x1xf32>
      %cst_39 = arith.constant 1.000000e-15 : f32
      %93 = vector.broadcast %cst_39 : f32 to vector<16x1xf32>
      %94 = arith.maximumf %92, %93 : vector<16x1xf32>
      %cst_40 = arith.constant 2.000000e+00 : f32
      %95 = vector.broadcast %cst_40 : f32 to vector<16x1xf32>
      %96 = arith.divf %95, %94 : vector<16x1xf32>
      %cst_41 = arith.constant 1.000000e+00 : f32
      %97 = vector.broadcast %cst_41 : f32 to vector<16x1xf32>
      %98 = arith.subf %85, %97 : vector<16x1xf32>
      %cst_42 = arith.constant 0.899999976 : f32
      %99 = vector.broadcast %cst_42 : f32 to vector<16x1xf32>
      %100 = arith.mulf %99, %98 : vector<16x1xf32>
      %cst_43 = arith.constant 1.000000e+00 : f32
      %101 = vector.broadcast %cst_43 : f32 to vector<16x1xf32>
      %102 = arith.subf %96, %101 : vector<16x1xf32>
      %cst_44 = arith.constant 1.000000e-01 : f32
      %103 = vector.broadcast %cst_44 : f32 to vector<16x1xf32>
      %104 = arith.mulf %103, %102 : vector<16x1xf32>
      %105 = arith.addf %100, %104 : vector<16x1xf32>
      %cst_45 = arith.constant 0.899999976 : f32
      %106 = vector.broadcast %cst_45 : f32 to vector<16x1xf32>
      %107 = arith.mulf %106, %85 : vector<16x1xf32>
      %108 = vector.broadcast %107 : vector<16x1xf32> to vector<16x128xf32>
      %109 = arith.mulf %108, %73 : vector<16x128xf32>
      %cst_46 = arith.constant 1.000000e-01 : f32
      %110 = vector.broadcast %cst_46 : f32 to vector<16x1xf32>
      %111 = arith.mulf %110, %96 : vector<16x1xf32>
      %112 = vector.broadcast %111 : vector<16x1xf32> to vector<16x128xf32>
      %113 = arith.mulf %112, %74 : vector<16x128xf32>
      %114 = arith.addf %109, %113 : vector<16x128xf32>
      %cst_47 = arith.constant 0.000000e+00 : f32
      %115 = vector.broadcast %cst_47 : f32 to vector<16x1xf32>
      %116 = arith.cmpf oge, %105, %115 : vector<16x1xf32>
      %cst_48 = arith.constant 1.000000e+00 : f32
      %cst_49 = arith.constant -1.000000e+00 : f32
      %117 = vector.broadcast %cst_48 : f32 to vector<16x1xf32>
      %118 = vector.broadcast %cst_49 : f32 to vector<16x1xf32>
      %119 = arith.select %116, %117, %118 : vector<16x1xi1>, vector<16x1xf32>
      %120 = math.absf %105 : vector<16x1xf32>
      %cst_50 = arith.constant 1.000000e-10 : f32
      %121 = vector.broadcast %cst_50 : f32 to vector<16x1xf32>
      %122 = arith.maximumf %120, %121 : vector<16x1xf32>
      %123 = arith.mulf %119, %122 : vector<16x1xf32>
      %124 = vector.broadcast %123 : vector<16x1xf32> to vector<16x128xf32>
      %125 = arith.divf %114, %124 : vector<16x128xf32>
      %126 = arith.mulf %125, %125 : vector<16x128xf32>
      %cst_51 = arith.constant dense<0.000000e+00> : vector<16xf32>
      %127 = vector.multi_reduction <add>, %126, %cst_51 [1] : vector<16x128xf32> to vector<16xf32>
      %128 = vector.shape_cast %127 : vector<16xf32> to vector<16x1xf32>
      %cst_52 = arith.constant 1.000000e-15 : f32
      %129 = vector.broadcast %cst_52 : f32 to vector<16x1xf32>
      %130 = arith.maximumf %128, %129 : vector<16x1xf32>
      %131 = math.sqrt %130 : vector<16x1xf32>
      %cst_53 = arith.constant 1.000000e+00 : f32
      %132 = vector.broadcast %cst_53 : f32 to vector<16x1xf32>
      %133 = arith.mulf %132, %131 : vector<16x1xf32>
      %cst_54 = arith.constant -0.99999988 : f32
      %cst_55 = arith.constant 0.99999988 : f32
      %134 = vector.broadcast %cst_54 : f32 to vector<16x1xf32>
      %135 = arith.maximumf %134, %133 : vector<16x1xf32>
      %136 = vector.broadcast %cst_55 : f32 to vector<16x1xf32>
      %137 = arith.minimumf %136, %135 : vector<16x1xf32>
      %138 = math.log1p %137 : vector<16x1xf32>
      %cst_56 = arith.constant 0.000000e+00 : f32
      %139 = vector.broadcast %cst_56 : f32 to vector<16x1xf32>
      %140 = arith.subf %139, %137 : vector<16x1xf32>
      %141 = math.log1p %140 : vector<16x1xf32>
      %142 = arith.subf %138, %141 : vector<16x1xf32>
      %cst_57 = arith.constant 5.000000e-01 : f32
      %143 = vector.broadcast %cst_57 : f32 to vector<16x1xf32>
      %144 = arith.mulf %143, %142 : vector<16x1xf32>
      %cst_58 = arith.constant 5.000000e-01 : f32
      %145 = vector.broadcast %cst_58 : f32 to vector<16x1xf32>
      %146 = arith.mulf %145, %144 : vector<16x1xf32>
      %147 = math.tanh %146 : vector<16x1xf32>
      %148 = vector.broadcast %147 : vector<16x1xf32> to vector<16x128xf32>
      %149 = arith.mulf %148, %125 : vector<16x128xf32>
      %cst_59 = arith.constant 1.000000e+00 : f32
      %150 = vector.broadcast %cst_59 : f32 to vector<16x1xf32>
      %151 = arith.mulf %131, %150 : vector<16x1xf32>
      %152 = vector.broadcast %151 : vector<16x1xf32> to vector<16x128xf32>
      %153 = arith.divf %149, %152 : vector<16x128xf32>
      %154 = arith.mulf %153, %153 : vector<16x128xf32>
      %cst_60 = arith.constant dense<0.000000e+00> : vector<16xf32>
      %155 = vector.multi_reduction <add>, %154, %cst_60 [1] : vector<16x128xf32> to vector<16xf32>
      %156 = vector.shape_cast %155 : vector<16xf32> to vector<16x1xf32>
      %cst_61 = arith.constant 1.000000e-15 : f32
      %157 = vector.broadcast %cst_61 : f32 to vector<16x1xf32>
      %158 = arith.maximumf %156, %157 : vector<16x1xf32>
      %159 = math.sqrt %158 : vector<16x1xf32>
      %cst_62 = arith.constant 0.999989986 : f32
      %160 = vector.broadcast %cst_62 : f32 to vector<16x1xf32>
      %161 = arith.divf %160, %159 : vector<16x1xf32>
      %162 = vector.broadcast %161 : vector<16x1xf32> to vector<16x128xf32>
      %163 = arith.mulf %153, %162 : vector<16x128xf32>
      %cst_63 = arith.constant 0.999989986 : f32
      %164 = vector.broadcast %cst_63 : f32 to vector<16x1xf32>
      %165 = arith.cmpf ogt, %159, %164 : vector<16x1xf32>
      %166 = vector.shape_cast %165 : vector<16x1xi1> to vector<16x1xi1>
      %167 = vector.broadcast %166 : vector<16x1xi1> to vector<16x128xi1>
      %168 = arith.select %167, %163, %153 : vector<16x128xi1>, vector<16x128xf32>
      %c0_64 = arith.constant 0 : index
      %c0_65 = arith.constant 0 : index
      %169 = vector.load %arg5[%c0_64, %c0_65] : memref<16x128xf32, #tpu.memory_space<vmem>>, vector<16x128xf32>
      tpu.vector_store %arg5[%c0_64, %c0_65], %168 {strides = array<i32>} : memref<16x128xf32, #tpu.memory_space<vmem>>, vector<16x128xf32>,
    } else {
    }
    return
  }
  func.func @transform_0(%arg0: i32, %arg1: i32) -> (i32, i32) {
    %c0_i32 = arith.constant 0 : i32
    %c0_i32_0 = arith.constant 0 : i32
    return %arg1, %c0_i32 : i32, i32
  }
  func.func @transform_1(%arg0: i32, %arg1: i32) -> (i32, i32) {
    %c0_i32 = arith.constant 0 : i32
    return %arg0, %arg1 : i32, i32
  }
  func.func @transform_2(%arg0: i32, %arg1: i32) -> (i32, i32) {
    %c0_i32 = arith.constant 0 : i32
    %c0_i32_0 = arith.constant 0 : i32
    return %arg0, %c0_i32 : i32, i32
  }
  func.func @transform_3(%arg0: i32, %arg1: i32) -> (i32, i32) {
    %c0_i32 = arith.constant 0 : i32
    %c0_i32_0 = arith.constant 0 : i32
    return %arg0, %c0_i32 : i32, i32
  }
}

</mosaic_0001>

<llo_original>
// kernel: run.5
$region0: #{run.5}
  #allocation0 [shape = 'u32[]', space=smem, size = 0x4, offset = 0x4, fixed_abs, tag = 'smem constant byte address 0x4 - core index']
  #allocation1 [shape = 'u32[72,128]{1,0:T(1,128)}', space=vmem, size = 0x9000, scoped, tag = 'internal scratch']
  #allocation2 [shape = 'f32[16,128]{1,0:T(8,128)}', space=vmem, size = 0x2000, scoped, tag = 'scratch operand']
  #allocation3 [shape = 'f32[16,1]{1,0:T(8,128)}', space=vmem, size = 0x2000, scoped, tag = 'scratch operand']
  #allocation4 [shape = 'f32[1,1]{1,0:T(1,128)S(6)}', space=smem, size = 0x200, scoped, tag = 'scoped memory for run.5']
  %s0 = inlined_call_operand.hbm [shape: f32[32,128], index: 0, kind: input, shape index: {}]
  %s1 = inlined_call_operand.hbm [shape: f32[128,128], index: 1, kind: input, shape index: {}]
  %s2 = inlined_call_operand.vmem [shape: f32[1,128], index: 2, kind: input, shape index: {}]
  %s3 = inlined_call_operand.<no memory space> [shape: f32[1,1], index: 3, kind: input, shape index: {}]
  %s4 = inlined_call_operand.vmem [shape: f32[32,128], index: 4, kind: output, shape index: {0}]
  %s5 = inlined_call_operand.vmem [shape: bf16[32,128], index: 5, kind: output, shape index: {1}]
  %6 = xla_tuple %s4, %s5
  %s7 = sld [smem:[#allocation0]]
  $region73: #{run.5} parent=0
    _
  %s9 = ssub.s32 1, %s7
  %s10 = scalar_select 0, %s9, %s7
  %11 = sst [smem:[#allocation4]] %s3
  $region1: #{run.5} parent=0
    #allocation5 [shape = 'u8[16384]{0}', space=vmem, size = 0x4000, scoped, tag = 'input window, operand 0']
    #allocation6 [shape = 's32[2]{0}', space=sflag, size = 0x8, scoped, tag = 'scoped memory for run.5']
    #allocation7 [shape = 'u8[65536]{0}', space=vmem, size = 0x10000, scoped, tag = 'input window, operand 1, single buffered']
    #allocation8 [shape = 's32[1]{0}', space=sflag, size = 0x4, scoped, tag = 'scoped memory for run.5']
    %12 = vsyncpa [#allocation6], 0
    %s13 = scalar_lea.sflag [#allocation6], 1
    %14 = vsyncpa %s13, 0
    %15 = vsyncpa [#allocation8], 0
    loop: start=0, step=1, limit=4
    $region2: #{run.5} parent=1 // loop_pre_header
      _
    $region3: #{run.5} parent=1 // loop_header
      %s17 = sphi 0, %s21
      %p18 = scmp.ge.s32.totalorder %s17, 4
      %s24 = sphi 0, %s36
      %s25 = sphi 0, %s32
      %s26 = sphi 0, %s24
      %s27 = sphi 0, %s25
      %s28 = sphi 0, %s26
      %s29 = sphi 0, %s27
      %s41 = sphi 0, %s43
      %s44 = sphi 0, %s41
      %s45 = sphi 0, %s44
      %s61 = sphi 0, %s45
      %s67 = sphi 0, %s69
      %s70 = sphi 0, %s67
      %s71 = sphi 0, %s70
      %s87 = sphi 0, %s71
      %s91 = sphi 0, %s91
      %s93 = sphi 0, %s91
      %s94 = sphi 0, %s93
      %s108 = sphi 0, %s94
      %s112 = sphi 0, %s112
      %s114 = sphi 0, %s112
      %s115 = sphi 0, %s114
      %s129 = sphi 0, %s115
      %s135 = sphi 0, %s137
      %s138 = sphi 0, %s135
      %s139 = sphi 0, %s138
      %s155 = sphi 0, %s139
      %s161 = sphi 0, %s163
      %s164 = sphi 0, %s161
      %s165 = sphi 0, %s164
      %s181 = sphi 0, %s165
    $region4: #{run.5} parent=1 // loop_header_branch
      %20 = sbr.rel (%p18) target = $region8
    $region5: #{run.5} parent=1 // loop_body
      %s22 = ssub.s32 %s17, 1
      %s23 = ssub.s32 %s17, 2
      %s30 = sadd.s32 1, %s25
      %p31 = scmp.ge.s32.totalorder %s30, 1
      %s32 = scalar_select %p31, 0, %s30
      %s33 = sadd.s32 1, %s24
      %s34 = scalar_select %p31, %s33, %s24
      %p35 = scmp.ge.s32.totalorder %s34, 2
      %s36 = scalar_select %p35, 0, %s34
      %s37 = ssub.s32 %s24, %s36
      %s38 = ssub.s32 %s25, %s32
      %s39 = sor.u32 %s37, %s38
      %p40 = scmp.eq.s32.totalorder %s39, 0
      %s42 = sadd.s32 %s41, 1
      %s43 = scalar_select %p40, %s41, %s42
      %p46 = pneg %p40
      %p47 = scmp.eq.s32.totalorder %s17, 1
      %p48 = por %p46, %p47
      %p49 = scmp.ne.s32.totalorder %s41, %s44
      %p50 = scmp.eq.s32.totalorder %s17, 0
      %p51 = por %p49, %p50
      %p52 = scmp.ne.s32.totalorder %s41, %s44
      %p53 = scmp.eq.s32.totalorder %s22, 1
      %p54 = por %p52, %p53
      %p55 = scmp.ne.s32.totalorder %s44, %s45
      %p56 = scmp.eq.s32.totalorder %s22, 0
      %p57 = por %p55, %p56
      %p58 = scmp.ne.s32.totalorder %s44, %s45
      %p59 = scmp.eq.s32.totalorder %s23, 1
      %p60 = por %p58, %p59
      %p62 = scmp.ne.s32.totalorder %s45, %s61
      %p63 = scmp.eq.s32.totalorder %s23, 0
      %p64 = por %p62, %p63
      %s65 = ssub.s32 %s25, %s32
      %p66 = scmp.eq.s32.totalorder %s65, 0
      %s68 = sadd.s32 %s67, 1
      %s69 = scalar_select %p66, %s67, %s68
      %p72 = pneg %p66
      %p73 = scmp.eq.s32.totalorder %s17, 1
      %p74 = por %p72, %p73
      %p75 = scmp.ne.s32.totalorder %s67, %s70
      %p76 = scmp.eq.s32.totalorder %s17, 0
      %p77 = por %p75, %p76
      %p78 = scmp.ne.s32.totalorder %s67, %s70
      %p79 = scmp.eq.s32.totalorder %s22, 1
      %p80 = por %p78, %p79
      %p81 = scmp.ne.s32.totalorder %s70, %s71
      %p82 = scmp.eq.s32.totalorder %s22, 0
      %p83 = por %p81, %p82
      %p84 = scmp.ne.s32.totalorder %s70, %s71
      %p85 = scmp.eq.s32.totalorder %s23, 1
      %p86 = por %p84, %p85
      %p88 = scmp.ne.s32.totalorder %s71, %s87
      %p89 = scmp.eq.s32.totalorder %s23, 0
      %p90 = por %p88, %p89
      %s92 = sadd.s32 %s91, 1
      %p95 = scmp.eq.s32.totalorder %s17, 1
      %p96 = scmp.ne.s32.totalorder %s91, %s93
      %p97 = scmp.eq.s32.totalorder %s17, 0
      %p98 = por %p96, %p97
      %p99 = scmp.ne.s32.totalorder %s91, %s93
      %p100 = scmp.eq.s32.totalorder %s22, 1
      %p101 = por %p99, %p100
      %p102 = scmp.ne.s32.totalorder %s93, %s94
      %p103 = scmp.eq.s32.totalorder %s22, 0
      %p104 = por %p102, %p103
      %p105 = scmp.ne.s32.totalorder %s93, %s94
      %p106 = scmp.eq.s32.totalorder %s23, 1
      %p107 = por %p105, %p106
      %p109 = scmp.ne.s32.totalorder %s94, %s108
      %p110 = scmp.eq.s32.totalorder %s23, 0
      %p111 = por %p109, %p110
      %s113 = sadd.s32 %s112, 1
      %p116 = scmp.eq.s32.totalorder %s17, 1
      %p117 = scmp.ne.s32.totalorder %s112, %s114
      %p118 = scmp.eq.s32.totalorder %s17, 0
      %p119 = por %p117, %p118
      %p120 = scmp.ne.s32.totalorder %s112, %s114
      %p121 = scmp.eq.s32.totalorder %s22, 1
      %p122 = por %p120, %p121
      %p123 = scmp.ne.s32.totalorder %s114, %s115
      %p124 = scmp.eq.s32.totalorder %s22, 0
      %p125 = por %p123, %p124
      %p126 = scmp.ne.s32.totalorder %s114, %s115
      %p127 = scmp.eq.s32.totalorder %s23, 1
      %p128 = por %p126, %p127
      %p130 = scmp.ne.s32.totalorder %s115, %s129
      %p131 = scmp.eq.s32.totalorder %s23, 0
      %p132 = por %p130, %p131
      %s133 = ssub.s32 %s24, %s36
      %p134 = scmp.eq.s32.totalorder %s133, 0
      %s136 = sadd.s32 %s135, 1
      %s137 = scalar_select %p134, %s135, %s136
      %p140 = pneg %p134
      %p141 = scmp.eq.s32.totalorder %s17, 1
      %p142 = por %p140, %p141
      %p143 = scmp.ne.s32.totalorder %s135, %s138
      %p144 = scmp.eq.s32.totalorder %s17, 0
      %p145 = por %p143, %p144
      %p146 = scmp.ne.s32.totalorder %s135, %s138
      %p147 = scmp.eq.s32.totalorder %s22, 1
      %p148 = por %p146, %p147
      %p149 = scmp.ne.s32.totalorder %s138, %s139
      %p150 = scmp.eq.s32.totalorder %s22, 0
      %p151 = por %p149, %p150
      %p152 = scmp.ne.s32.totalorder %s138, %s139
      %p153 = scmp.eq.s32.totalorder %s23, 1
      %p154 = por %p152, %p153
      %p156 = scmp.ne.s32.totalorder %s139, %s155
      %p157 = scmp.eq.s32.totalorder %s23, 0
      %p158 = por %p156, %p157
      %s159 = ssub.s32 %s24, %s36
      %p160 = scmp.eq.s32.totalorder %s159, 0
      %s162 = sadd.s32 %s161, 1
      %s163 = scalar_select %p160, %s161, %s162
      %p166 = pneg %p160
      %p167 = scmp.eq.s32.totalorder %s17, 1
      %p168 = por %p166, %p167
      %p169 = scmp.ne.s32.totalorder %s161, %s164
      %p170 = scmp.eq.s32.totalorder %s17, 0
      %p171 = por %p169, %p170
      %p172 = scmp.ne.s32.totalorder %s161, %s164
      %p173 = scmp.eq.s32.totalorder %s22, 1
      %p174 = por %p172, %p173
      %p175 = scmp.ne.s32.totalorder %s164, %s165
      %p176 = scmp.eq.s32.totalorder %s22, 0
      %p177 = por %p175, %p176
      %p178 = scmp.ne.s32.totalorder %s164, %s165
      %p179 = scmp.eq.s32.totalorder %s23, 1
      %p180 = por %p178, %p179
      %p182 = scmp.ne.s32.totalorder %s165, %s181
      %p183 = scmp.eq.s32.totalorder %s23, 0
      %p184 = por %p182, %p183
      %p185 = scmp.le.s32.totalorder 1, %s17
      %p186 = scmp.lt.s32.totalorder %s17, 3
      %p187 = pnand %p185, %p186
      %p188 = pneg %p187
      // Predicated region
      $region9: #{run.5} parent=5 // pred_check
        _
      $region10: #{run.5} parent=5 // pred_check_branch
        %190 = sbr.rel (%p187) target = $region12
      $region11: #{run.5} parent=5 // pred_region
        %s191 = ssub.s32 %s17, 1
        // Predicated region
        $region13: #{run.5} parent=11 // pred_check
          %p192 = pneg %p83
        $region14: #{run.5} parent=11 // pred_check_branch
          %194 = sbr.rel (%p192) target = $region16
        $region15: #{run.5} parent=11 // pred_region
          %s195 = smul.u32 16, %s27
          %197 = vsyncadd [#allocation8], 0
          %s198 = smul.addr %s195, 8
          %s199 = scalar_lea.hbm %s1, %s198
          %s200 = sshll.u32 %s199, 4
          %s201 = int_to_ptr.hbm [resolvable:$true] %s200
          %s202 = sshll.u32 [#allocation7], 4
          %s203 = int_to_ptr.vmem [resolvable:$true] %s202
          %208 = dma.hbm_to_vmem [thread:$0]  %s201, 2048, %s203, [#allocation8], 128, 128, 8
        $region16: #{run.5} parent=11 // pred_fallthru
          _
        // Predicated region
        $region17: #{run.5} parent=11 // pred_check
          %p209 = pneg %p104
        $region18: #{run.5} parent=11 // pred_check_branch
          %211 = sbr.rel (%p209) target = $region20
        $region19: #{run.5} parent=11 // pred_region
          _
        $region20: #{run.5} parent=11 // pred_fallthru
          _
        // Predicated region
        $region21: #{run.5} parent=11 // pred_check
          %p212 = pneg %p125
        $region22: #{run.5} parent=11 // pred_check_branch
          %214 = sbr.rel (%p212) target = $region24
        $region23: #{run.5} parent=11 // pred_region
          _
        $region24: #{run.5} parent=11 // pred_fallthru
          _
      $region12: #{run.5} parent=5 // pred_fallthru
        _
      %p215 = scmp.lt.s32.totalorder %s17, 2
      // Predicated region
      $region25: #{run.5} parent=5 // pred_check
        %p216 = pneg %p215
      $region26: #{run.5} parent=5 // pred_check_branch
        %218 = sbr.rel (%p216) target = $region28
      $region27: #{run.5} parent=5 // pred_region
        // Predicated region
        $region29: #{run.5} parent=27 // pred_check
          %p219 = pneg %p51
        $region30: #{run.5} parent=27 // pred_check_branch
          %221 = sbr.rel (%p219) target = $region32
        $region31: #{run.5} parent=27 // pred_region
          %s222 = sand.u32 %s41, 1
          %s223 = scalar_lea.sflag [#allocation6], %s222
          %s224 = sand.u32 %s41, 1
          %s225 = smul.addr %s224, 16
          %s226 = scalar_lea.vmem [#allocation5], %s225
          %s227 = smul.u32 2, %s24
          %229 = vsyncadd %s223, 0
          %s230 = sadd.s32 %s25, %s227
          %s231 = smul.addr %s230, 8
          %s232 = scalar_lea.hbm %s0, %s231
          %s233 = sshll.u32 %s232, 4
          %s234 = int_to_ptr.hbm [resolvable:$true] %s233
          %s235 = sshll.u32 %s226, 4
          %s236 = int_to_ptr.vmem [resolvable:$true] %s235
          %241 = dma.hbm_to_vmem [thread:$0]  %s234, 256, %s236, %s223, 128, 128, 8
        $region32: #{run.5} parent=27 // pred_fallthru
          _
      $region28: #{run.5} parent=5 // pred_fallthru
        _
      %p242 = scmp.le.s32.totalorder 1, %s17
      %p243 = scmp.lt.s32.totalorder %s17, 3
      %p244 = pnand %p242, %p243
      %p245 = pneg %p244
      // Predicated region
      $region33: #{run.5} parent=5 // pred_check
        _
      $region34: #{run.5} parent=5 // pred_check_branch
        %247 = sbr.rel (%p244) target = $region36
      $region35: #{run.5} parent=5 // pred_region
        %s248 = ssub.s32 %s17, 1
        %s249 = sand.u32 %s44, 1
        %s250 = scalar_lea.sflag [#allocation6], %s249
        %s251 = sand.u32 %s44, 1
        %s252 = smul.addr %s251, 16
        %s253 = scalar_lea.vmem [#allocation5], %s252
        // Predicated region
        $region37: #{run.5} parent=35 // pred_check
          %p254 = pneg %p57
        $region38: #{run.5} parent=35 // pred_check_branch
          %256 = sbr.rel (%p254) target = $region40
        $region39: #{run.5} parent=35 // pred_region
          %258 = dma.done %s250, 256
        $region40: #{run.5} parent=35 // pred_fallthru
          _
        // Predicated region
        $region41: #{run.5} parent=35 // pred_check
          %p259 = pneg %p83
        $region42: #{run.5} parent=35 // pred_check_branch
          %261 = sbr.rel (%p259) target = $region44
        $region43: #{run.5} parent=35 // pred_region
          %263 = dma.done [#allocation8], 2048
        $region44: #{run.5} parent=35 // pred_fallthru
          _
        %s264 = sand.u32 %s44, 1
        %s265 = scalar_lea.sflag [#allocation6], %s264
        %s266 = sand.u32 %s44, 1
        %s267 = smul.addr %s266, 16
        %s268 = scalar_lea.vmem [#allocation5], %s267
        %p269 = pneg %p57
        %p270 = pneg %p54
        %p271 = pneg %p83
        %p272 = pneg %p80
        %p273 = pneg %p104
        %p274 = pneg %p101
        %p275 = pneg %p125
        %p276 = pneg %p122
        %p277 = pneg %p151
        %p278 = pneg %p148
        %s279 = smul.u32 2, %s26
        %p280 = scmp.lt.s32.totalorder %s279, 3
        %s281 = scalar_select %p280, %s279, 3
        %s282 = smul.addr %s281, 8
        %s283 = scalar_lea.vmem %s4, %s282
        %p284 = pneg %p177
        %p285 = pneg %p174
        %s286 = smul.u32 2, %s26
        %p287 = scmp.lt.s32.totalorder %s286, 3
        %s288 = scalar_select %p287, %s286, 3
        %s289 = smul.addr %s288, 4
        %s290 = scalar_lea.vmem %s5, %s289
        %s291 = smul.u32 2, %s26
        %s292 = smul.u32 16, %s27
        %s293 = smul.u32 2, %s26
        %p294 = scmp.lt.s32.totalorder %s293, 3
        %s295 = scalar_select %p294, %s293, 3
        %s296 = smul.addr %s295, 8
        %s297 = scalar_lea.vmem %s4, %s296
        %s298 = smul.u32 2, %s26
        %s299 = smul.u32 2, %s26
        %p300 = scmp.lt.s32.totalorder %s299, 3
        %s301 = scalar_select %p300, %s299, 3
        %s302 = smul.addr %s301, 4
        %s303 = scalar_lea.vmem %s5, %s302
        %s304 = smul.u32 2, %s26
        %p305 = scmp.eq.s32.totalorder %s27, 0
        // Predicated region
        $region45: #{run.5} parent=35 // pred_check
          %p306 = pneg %p305
        $region46: #{run.5} parent=35 // pred_check_branch
          %308 = sbr.rel (%p306) target = $region48
        $region47: #{run.5} parent=35 // pred_region
          %309 = vst [vmem:[#allocation2] sm:$0xff] 0.0
          %310 = vst [vmem:[#allocation2 + $0x8] sm:$0xff] 0.0
          %vm311 = vcmask 7168
          %312 = vst.msk [vmem:[#allocation3] sm:$0xff] %vm311, 0.0
          %313 = vst.msk [vmem:[#allocation3 + $0x8] sm:$0xff] %vm311, 0.0
        $region48: #{run.5} parent=35 // pred_fallthru
          _
        %v314 = vld [vmem:[%s253] sm:$0xff]
        %v315 = vld [vmem:[%s253 + $0x8] sm:$0xff]
        %v316 = vld [vmem:[#allocation2] sm:$0xff]
        %v317 = vld [vmem:[#allocation2 + $0x8] sm:$0xff]
        %v318 = vld [vmem:[#allocation7] sm:$0xff]
        %v319 = vld [vmem:[#allocation7 + $0x8] sm:$0xff]
        %v320 = vld [vmem:[#allocation7 + $0x10] sm:$0xff]
        %v321 = vld [vmem:[#allocation7 + $0x18] sm:$0xff]
        %v322 = vld [vmem:[#allocation7 + $0x20] sm:$0xff]
        %v323 = vld [vmem:[#allocation7 + $0x28] sm:$0xff]
        %v324 = vld [vmem:[#allocation7 + $0x30] sm:$0xff]
        %v325 = vld [vmem:[#allocation7 + $0x38] sm:$0xff]
        %v326 = vld [vmem:[#allocation7 + $0x40] sm:$0xff]
        %v327 = vld [vmem:[#allocation7 + $0x48] sm:$0xff]
        %v328 = vld [vmem:[#allocation7 + $0x50] sm:$0xff]
        %v329 = vld [vmem:[#allocation7 + $0x58] sm:$0xff]
        %v330 = vld [vmem:[#allocation7 + $0x60] sm:$0xff]
        %v331 = vld [vmem:[#allocation7 + $0x68] sm:$0xff]
        %v332 = vld [vmem:[#allocation7 + $0x70] sm:$0xff]
        %v333 = vld [vmem:[#allocation7 + $0x78] sm:$0xff]
        %334 = vmatpush.msra.mxu0 %v333
        %335 = vmatpush.msra.mxu0 %v332
        %336 = vmatpush.msra.mxu0 %v331
        %337 = vmatpush.msra.mxu0 %v330
        %338 = vmatpush.msra.mxu0 %v329
        %339 = vmatpush.msra.mxu0 %v328
        %340 = vmatpush.msra.mxu0 %v327
        %341 = vmatpush.msra.mxu0 %v326
        %342 = vmatpush.msra.mxu0 %v325
        %343 = vmatpush.msra.mxu0 %v324
        %344 = vmatpush.msra.mxu0 %v323
        %345 = vmatpush.msra.mxu0 %v322
        %346 = vmatpush.msra.mxu0 %v321
        %347 = vmatpush.msra.mxu0 %v320
        %348 = vmatpush.msra.mxu0 %v319
        %349 = vmatpush.msra.mxu0 %v318
        %350 = vmatmul.f32.gmra.mxu0 %v314
        %v351 = vpop.f32.mrf.mxu0
        %v352 = vadd.f32 0.0, %v351
        %353 = vmatmul.f32.gmra.mxu0 %v315
        %v354 = vpop.f32.mrf.mxu0
        %v355 = vadd.f32 0.0, %v354
        %356 = vdwg.mxu0
        %v357 = vadd.f32 %v316, %v352
        %v358 = vadd.f32 %v317, %v355
        %359 = vst [vmem:[#allocation2] sm:$0xff] %v357
        %360 = vst [vmem:[#allocation2 + $0x8] sm:$0xff] %v358
        %v361 = vld [vmem:[#allocation3] sm:$0xff]
        %v362 = vld [vmem:[#allocation3 + $0x8] sm:$0xff]
        %v363 = vmul.f32 %v314, %v314
        %v364 = vmul.f32 %v315, %v315
        %365 = vadd.xlane.f32.xlu0 %v363
        %v366 = vpop.xlane.xlu0 %365
        %367 = vadd.xlane.f32.xlu0 %v364
        %v368 = vpop.xlane.xlu0 %367
        %v369 = vadd.f32 %v361, %v366
        %v370 = vadd.f32 %v362, %v368
        %vm371 = vcmask 7168
        %372 = vst.msk [vmem:[#allocation3] sm:$0xff] %vm371, %v369
        %373 = vst.msk [vmem:[#allocation3 + $0x8] sm:$0xff] %vm371, %v370
        // Predicated region
        $region49: #{run.5} parent=35 // pred_check
          %p374 = pneg %p305
        $region50: #{run.5} parent=35 // pred_check_branch
          %376 = sbr.rel (%p374) target = $region52
        $region51: #{run.5} parent=35 // pred_region
          %v377 = vld [vmem:[#allocation2] sm:$0xff]
          %v378 = vld [vmem:[#allocation2 + $0x8] sm:$0xff]
          %v379 = vld [vmem:[#allocation3] sm:$0xff]
          %v380 = vld [vmem:[#allocation3 + $0x8] sm:$0xff]
          %v381 = vmax.f32 %v379, 1e-15
          %v382 = vmax.f32 %v380, 1e-15
          %v383 = vrsqrt.pop %v381
          %v384 = vmul.f32 %v383, %v381
          %v385 = vmul.f32 %v384, %v383
          %v386 = vmul.f32 0.5, %v385
          %v387 = vsub.f32 1.5, %v386
          %v388 = vmul.f32 %v383, %v387
          %v389 = vmul.f32 %v381, %v388
          %vm390 = vcmp.eq.f32.partialorder %v381, inf
          %v391 = vsel %vm390, %v381, %v389
          %vm392 = vcmp.eq.f32.partialorder %v381, 0.0
          %v393 = vand.u32 %v381, 2147483648
          %v394 = vsel %vm392, %v393, %v391
          %v395 = vrsqrt.pop %v382
          %v396 = vmul.f32 %v395, %v382
          %v397 = vmul.f32 %v396, %v395
          %v398 = vmul.f32 0.5, %v397
          %v399 = vsub.f32 1.5, %v398
          %v400 = vmul.f32 %v395, %v399
          %v401 = vmul.f32 %v382, %v400
          %vm402 = vcmp.eq.f32.partialorder %v382, inf
          %v403 = vsel %vm402, %v382, %v401
          %vm404 = vcmp.eq.f32.partialorder %v382, 0.0
          %v405 = vand.u32 %v382, 2147483648
          %v406 = vsel %vm404, %v405, %v403
          %v407 = vmul.f32 %v377, %v377
          %v408 = vmul.f32 %v378, %v378
          %409 = vadd.xlane.f32.xlu0 %v407
          %v410 = vpop.xlane.xlu0 %409
          %411 = vadd.xlane.f32.xlu0 %v408
          %v412 = vpop.xlane.xlu0 %411
          %v413 = vmax.f32 %v410, 1e-15
          %v414 = vmax.f32 %v412, 1e-15
          %v415 = vrsqrt.pop %v413
          %v416 = vmul.f32 %v415, %v413
          %v417 = vmul.f32 %v416, %v415
          %v418 = vmul.f32 0.5, %v417
          %v419 = vsub.f32 1.5, %v418
          %v420 = vmul.f32 %v415, %v419
          %v421 = vmul.f32 %v413, %v420
          %vm422 = vcmp.eq.f32.partialorder %v413, inf
          %v423 = vsel %vm422, %v413, %v421
          %vm424 = vcmp.eq.f32.partialorder %v413, 0.0
          %v425 = vand.u32 %v413, 2147483648
          %v426 = vsel %vm424, %v425, %v423
          %v427 = vrsqrt.pop %v414
          %v428 = vmul.f32 %v427, %v414
          %v429 = vmul.f32 %v428, %v427
          %v430 = vmul.f32 0.5, %v429
          %v431 = vsub.f32 1.5, %v430
          %v432 = vmul.f32 %v427, %v431
          %v433 = vmul.f32 %v414, %v432
          %vm434 = vcmp.eq.f32.partialorder %v414, inf
          %v435 = vsel %vm434, %v414, %v433
          %vm436 = vcmp.eq.f32.partialorder %v414, 0.0
          %v437 = vand.u32 %v414, 2147483648
          %v438 = vsel %vm436, %v437, %v435
          %v439 = vrcp.pop %v394
          %v440 = vmul.f32 %v394, %v439
          %v441 = vsub.f32 1.0, %v440
          %v442 = vmul.f32 %v439, %v441
          %v443 = vadd.f32 %v439, %v442
          %vm444 = vweird.f32 %v394
          %vm445 = vweird.f32 %v439
          %vm446 = vmor %vm444, %vm445
          %v447 = vsel %vm446, %v439, %v443
          %v448 = vand.u32 2147483647, %v394
          %vm449 = vcmp.eq.f32.partialorder %v448, 8.507059e+37
          %v450 = vand.u32 %v394, 2147483648
          %v451 = vor.u32 1.1754944e-38, %v450
          %v452 = vsel %vm449, %v451, %v447
          %v453 = vmul.f32 %v426, %v452
          %v454 = vrcp.pop %v406
          %v455 = vmul.f32 %v406, %v454
          %v456 = vsub.f32 1.0, %v455
          %v457 = vmul.f32 %v454, %v456
          %v458 = vadd.f32 %v454, %v457
          %vm459 = vweird.f32 %v406
          %vm460 = vweird.f32 %v454
          %vm461 = vmor %vm459, %vm460
          %v462 = vsel %vm461, %v454, %v458
          %v463 = vand.u32 2147483647, %v406
          %vm464 = vcmp.eq.f32.partialorder %v463, 8.507059e+37
          %v465 = vand.u32 %v406, 2147483648
          %v466 = vor.u32 1.1754944e-38, %v465
          %v467 = vsel %vm464, %v466, %v462
          %v468 = vmul.f32 %v438, %v467
          %v469 = vmax.f32 %v394, -0.9999999
          %v470 = vmax.f32 %v406, -0.9999999
          %v471 = vmin.f32 %v469, 0.9999999
          %v472 = vmin.f32 %v470, 0.9999999
          %v473 = vadd.f32 %v471, 1.0
          %v474 = vlog2.pop %v473
          %v475 = vmul.f32 %v474, 0.6931472
          %v476 = vmul.f32 -0.5, %v471
          %v477 = vadd.f32 %v476, 1.0
          %v478 = vmul.f32 %v477, %v471
          %v479 = vand.u32 2147483647, %v471
          %vm480 = vcmp.lt.f32.partialorder %v479, 0.0004427343
          %v481 = vsel %vm480, %v478, %v475
          %v482 = vadd.f32 %v472, 1.0
          %v483 = vlog2.pop %v482
          %v484 = vmul.f32 %v483, 0.6931472
          %v485 = vmul.f32 -0.5, %v472
          %v486 = vadd.f32 %v485, 1.0
          %v487 = vmul.f32 %v486, %v472
          %v488 = vand.u32 2147483647, %v472
          %vm489 = vcmp.lt.f32.partialorder %v488, 0.0004427343
          %v490 = vsel %vm489, %v487, %v484
          %v491 = vsub.f32 0.0, %v471
          %v492 = vsub.f32 0.0, %v472
          %v493 = vadd.f32 %v491, 1.0
          %v494 = vlog2.pop %v493
          %v495 = vmul.f32 %v494, 0.6931472
          %v496 = vmul.f32 -0.5, %v491
          %v497 = vadd.f32 %v496, 1.0
          %v498 = vmul.f32 %v497, %v491
          %v499 = vand.u32 2147483647, %v491
          %vm500 = vcmp.lt.f32.partialorder %v499, 0.0004427343
          %v501 = vsel %vm500, %v498, %v495
          %v502 = vadd.f32 %v492, 1.0
          %v503 = vlog2.pop %v502
          %v504 = vmul.f32 %v503, 0.6931472
          %v505 = vmul.f32 -0.5, %v492
          %v506 = vadd.f32 %v505, 1.0
          %v507 = vmul.f32 %v506, %v492
          %v508 = vand.u32 2147483647, %v492
          %vm509 = vcmp.lt.f32.partialorder %v508, 0.0004427343
          %v510 = vsel %vm509, %v507, %v504
          %v511 = vsub.f32 %v481, %v501
          %v512 = vsub.f32 %v490, %v510
          %v513 = vmul.f32 %v511, 0.5
          %v514 = vmul.f32 %v512, 0.5
          %v515 = vmul.f32 %v453, %v513
          %v516 = vmul.f32 %v468, %v514
          %v517 = vtanh.pop %v515
          %v518 = vtanh.pop %v516
          %520 = vset.pattern.permute.xlu0 0
          %521 = vperm.xlu0 %520, %v517
          %v522 = vpop.permute.xlu0 %521
          %525 = vset.pattern.permute.xlu0 0
          %526 = vperm.xlu0 %525, %v518
          %v527 = vpop.permute.xlu0 %526
          %v529 = vmul.f32 %v522, %v377
          %v530 = vmul.f32 %v527, %v378
          %v531 = vrcp.pop %v426
          %v532 = vmul.f32 %v426, %v531
          %v533 = vsub.f32 1.0, %v532
          %v534 = vmul.f32 %v531, %v533
          %v535 = vadd.f32 %v531, %v534
          %vm536 = vweird.f32 %v426
          %vm537 = vweird.f32 %v531
          %vm538 = vmor %vm536, %vm537
          %v539 = vsel %vm538, %v531, %v535
          %v540 = vand.u32 2147483647, %v426
          %vm541 = vcmp.eq.f32.partialorder %v540, 8.507059e+37
          %v542 = vand.u32 %v426, 2147483648
          %v543 = vor.u32 1.1754944e-38, %v542
          %v544 = vsel %vm541, %v543, %v539
          %v545 = vmul.f32 %v529, %v544
          %v546 = vrcp.pop %v438
          %v547 = vmul.f32 %v438, %v546
          %v548 = vsub.f32 1.0, %v547
          %v549 = vmul.f32 %v546, %v548
          %v550 = vadd.f32 %v546, %v549
          %vm551 = vweird.f32 %v438
          %vm552 = vweird.f32 %v546
          %vm553 = vmor %vm551, %vm552
          %v554 = vsel %vm553, %v546, %v550
          %v555 = vand.u32 2147483647, %v438
          %vm556 = vcmp.eq.f32.partialorder %v555, 8.507059e+37
          %v557 = vand.u32 %v438, 2147483648
          %v558 = vor.u32 1.1754944e-38, %v557
          %v559 = vsel %vm556, %v558, %v554
          %v560 = vmul.f32 %v530, %v559
          %v561 = vmul.f32 %v426, %v426
          %v562 = vmul.f32 %v438, %v438
          %vm563 = vcmp.le.f32.partialorder %v561, 1e-15
          %vm564 = vcmp.le.f32.partialorder %v562, 1e-15
          %v565 = vsel %vm563, 1, 0
          %v566 = vsel %vm564, 1, 0
          %vm567 = vcmp.eq.s32.totalorder %v565, 1
          %vm568 = vcmp.eq.s32.totalorder %v566, 1
          %v569 = vsel %vm567, 0.0, %v545
          %v570 = vsel %vm568, 0.0, %v560
          %v571 = vld [vmem:[%s2] sm:$0x1]
          %s572 = sld [smem:[#allocation4]]
          %v573 = vmul.f32 %v569, %v569
          %v574 = vmul.f32 %v570, %v570
          %575 = vadd.xlane.f32.xlu0 %v573
          %v576 = vpop.xlane.xlu0 %575
          %577 = vadd.xlane.f32.xlu0 %v574
          %v578 = vpop.xlane.xlu0 %577
          %v580 = vperm.slane %v571, 0
          %v582 = vmul.f32 %v569, %v580
          %v583 = vmul.f32 %v570, %v580
          %584 = vadd.xlane.f32.xlu0 %v582
          %v585 = vpop.xlane.xlu0 %584
          %586 = vadd.xlane.f32.xlu0 %v583
          %v587 = vpop.xlane.xlu0 %586
          %v588 = vmul.f32 %v585, 2.0
          %v589 = vmul.f32 %v587, 2.0
          %v590 = vadd.f32 %v588, 1.0
          %v591 = vadd.f32 %v589, 1.0
          %v592 = vstv %s572
          %v593 = vadd.f32 %v590, %v592
          %v594 = vadd.f32 %v591, %v592
          %v595 = vmul.f32 %v593, %v569
          %v596 = vmul.f32 %v594, %v570
          %v597 = vsub.f32 1.0, %v576
          %v598 = vsub.f32 1.0, %v578
          %v599 = vmul.f32 %v597, %v580
          %v600 = vmul.f32 %v598, %v580
          %v601 = vadd.f32 %v595, %v599
          %v602 = vadd.f32 %v596, %v600
          %v603 = vmul.f32 %v576, %v592
          %v604 = vmul.f32 %v578, %v592
          %v605 = vadd.f32 %v590, %v603
          %v606 = vadd.f32 %v591, %v604
          %v607 = vmax.f32 %v605, 1e-15
          %v608 = vmax.f32 %v606, 1e-15
          %v609 = vrcp.pop %v607
          %v610 = vmul.f32 %v607, %v609
          %v611 = vsub.f32 1.0, %v610
          %v612 = vmul.f32 %v609, %v611
          %v613 = vadd.f32 %v609, %v612
          %vm614 = vweird.f32 %v607
          %vm615 = vweird.f32 %v609
          %vm616 = vmor %vm614, %vm615
          %v617 = vsel %vm616, %v609, %v613
          %v618 = vand.u32 2147483647, %v607
          %vm619 = vcmp.eq.f32.partialorder %v618, 8.507059e+37
          %v620 = vand.u32 %v607, 2147483648
          %v621 = vor.u32 1.1754944e-38, %v620
          %v622 = vsel %vm619, %v621, %v617
          %v623 = vmul.f32 %v601, %v622
          %v624 = vrcp.pop %v608
          %v625 = vmul.f32 %v608, %v624
          %v626 = vsub.f32 1.0, %v625
          %v627 = vmul.f32 %v624, %v626
          %v628 = vadd.f32 %v624, %v627
          %vm629 = vweird.f32 %v608
          %vm630 = vweird.f32 %v624
          %vm631 = vmor %vm629, %vm630
          %v632 = vsel %vm631, %v624, %v628
          %v633 = vand.u32 2147483647, %v608
          %vm634 = vcmp.eq.f32.partialorder %v633, 8.507059e+37
          %v635 = vand.u32 %v608, 2147483648
          %v636 = vor.u32 1.1754944e-38, %v635
          %v637 = vsel %vm634, %v636, %v632
          %v638 = vmul.f32 %v602, %v637
          %v639 = vmul.f32 %v623, %v623
          %v640 = vmul.f32 %v638, %v638
          %641 = vadd.xlane.f32.xlu0 %v639
          %v642 = vpop.xlane.xlu0 %641
          %643 = vadd.xlane.f32.xlu0 %v640
          %v644 = vpop.xlane.xlu0 %643
          %v645 = vmax.f32 %v642, 1e-15
          %v646 = vmax.f32 %v644, 1e-15
          %v647 = vrsqrt.pop %v645
          %v648 = vmul.f32 %v647, %v645
          %v649 = vmul.f32 %v648, %v647
          %v650 = vmul.f32 0.5, %v649
          %v651 = vsub.f32 1.5, %v650
          %v652 = vmul.f32 %v647, %v651
          %v653 = vmul.f32 %v645, %v652
          %vm654 = vcmp.eq.f32.partialorder %v645, inf
          %v655 = vsel %vm654, %v645, %v653
          %vm656 = vcmp.eq.f32.partialorder %v645, 0.0
          %v657 = vand.u32 %v645, 2147483648
          %v658 = vsel %vm656, %v657, %v655
          %v659 = vrsqrt.pop %v646
          %v660 = vmul.f32 %v659, %v646
          %v661 = vmul.f32 %v660, %v659
          %v662 = vmul.f32 0.5, %v661
          %v663 = vsub.f32 1.5, %v662
          %v664 = vmul.f32 %v659, %v663
          %v665 = vmul.f32 %v646, %v664
          %vm666 = vcmp.eq.f32.partialorder %v646, inf
          %v667 = vsel %vm666, %v646, %v665
          %vm668 = vcmp.eq.f32.partialorder %v646, 0.0
          %v669 = vand.u32 %v646, 2147483648
          %v670 = vsel %vm668, %v669, %v667
          %v671 = vrcp.pop %v658
          %v672 = vmul.f32 %v658, %v671
          %v673 = vsub.f32 1.0, %v672
          %v674 = vmul.f32 %v671, %v673
          %v675 = vadd.f32 %v671, %v674
          %vm676 = vweird.f32 %v658
          %vm677 = vweird.f32 %v671
          %vm678 = vmor %vm676, %vm677
          %v679 = vsel %vm678, %v671, %v675
          %v680 = vand.u32 2147483647, %v658
          %vm681 = vcmp.eq.f32.partialorder %v680, 8.507059e+37
          %v682 = vand.u32 %v658, 2147483648
          %v683 = vor.u32 1.1754944e-38, %v682
          %v684 = vsel %vm681, %v683, %v679
          %v685 = vmul.f32 0.99999, %v684
          %v686 = vrcp.pop %v670
          %v687 = vmul.f32 %v670, %v686
          %v688 = vsub.f32 1.0, %v687
          %v689 = vmul.f32 %v686, %v688
          %v690 = vadd.f32 %v686, %v689
          %vm691 = vweird.f32 %v670
          %vm692 = vweird.f32 %v686
          %vm693 = vmor %vm691, %vm692
          %v694 = vsel %vm693, %v686, %v690
          %v695 = vand.u32 2147483647, %v670
          %vm696 = vcmp.eq.f32.partialorder %v695, 8.507059e+37
          %v697 = vand.u32 %v670, 2147483648
          %v698 = vor.u32 1.1754944e-38, %v697
          %v699 = vsel %vm696, %v698, %v694
          %v700 = vmul.f32 0.99999, %v699
          %v701 = vmul.f32 %v623, %v685
          %v702 = vmul.f32 %v638, %v700
          %vm703 = vcmp.gt.f32.partialorder %v658, 0.99999
          %vm704 = vcmp.gt.f32.partialorder %v670, 0.99999
          %v705 = vsel %vm703, 1, 0
          %v706 = vsel %vm704, 1, 0
          %vm707 = vcmp.eq.s32.totalorder %v705, 1
          %vm708 = vcmp.eq.s32.totalorder %v706, 1
          %v709 = vsel %vm707, %v701, %v623
          %v710 = vsel %vm708, %v702, %v638
          %v711 = vmax.f32 %v709, 0.0
          %v712 = vmax.f32 %v710, 0.0
          %v713 = vmul.f32 %v711, %v711
          %v714 = vmul.f32 %v712, %v712
          %715 = vadd.xlane.f32.xlu0 %v713
          %v716 = vpop.xlane.xlu0 %715
          %717 = vadd.xlane.f32.xlu0 %v714
          %v718 = vpop.xlane.xlu0 %717
          %v719 = vsub.f32 1.0, %v716
          %v720 = vsub.f32 1.0, %v718
          %v721 = vmax.f32 %v719, 1e-15
          %v722 = vmax.f32 %v720, 1e-15
          %v723 = vrcp.pop %v721
          %v724 = vmul.f32 %v721, %v723
          %v725 = vsub.f32 1.0, %v724
          %v726 = vmul.f32 %v723, %v725
          %v727 = vadd.f32 %v723, %v726
          %vm728 = vweird.f32 %v721
          %vm729 = vweird.f32 %v723
          %vm730 = vmor %vm728, %vm729
          %v731 = vsel %vm730, %v723, %v727
          %v732 = vand.u32 2147483647, %v721
          %vm733 = vcmp.eq.f32.partialorder %v732, 8.507059e+37
          %v734 = vand.u32 %v721, 2147483648
          %v735 = vor.u32 1.1754944e-38, %v734
          %v736 = vsel %vm733, %v735, %v731
          %v737 = vmul.f32 2.0, %v736
          %v738 = vrcp.pop %v722
          %v739 = vmul.f32 %v722, %v738
          %v740 = vsub.f32 1.0, %v739
          %v741 = vmul.f32 %v738, %v740
          %v742 = vadd.f32 %v738, %v741
          %vm743 = vweird.f32 %v722
          %vm744 = vweird.f32 %v738
          %vm745 = vmor %vm743, %vm744
          %v746 = vsel %vm745, %v738, %v742
          %v747 = vand.u32 2147483647, %v722
          %vm748 = vcmp.eq.f32.partialorder %v747, 8.507059e+37
          %v749 = vand.u32 %v722, 2147483648
          %v750 = vor.u32 1.1754944e-38, %v749
          %v751 = vsel %vm748, %v750, %v746
          %v752 = vmul.f32 2.0, %v751
          %v753 = vlaneseq
          %v754 = vand.u32 %v753, 127
          %vm755 = vcmp.eq.s32.totalorder %v754, 32
          %v756 = vsel %vm755, 1, 0
          %v757 = vcvt.s32.f32 %v756
          %v758 = vmul.f32 %v737, %v711
          %v759 = vmul.f32 %v752, %v712
          %v760 = vsub.f32 %v737, 1.0
          %v761 = vsub.f32 %v752, 1.0
          %v762 = vmul.f32 %v760, %v757
          %v763 = vmul.f32 %v761, %v757
          %v764 = vadd.f32 %v758, %v762
          %v765 = vadd.f32 %v759, %v763
          %766 = vst [vmem:[%s297] sm:$0xff] %v711
          %767 = vst [vmem:[%s297 + $0x8] sm:$0xff] %v712
          %v768 = vpack.c.bf16 %v764, %v764
          %v769 = vpack.c.bf16 %v765, %v765
          %770 = vst [vmem:[%s303] sm:$0xf] %v768
          %771 = vst [vmem:[%s303 + $0x4] sm:$0xf] %v769
        $region52: #{run.5} parent=35 // pred_fallthru
          _
        %s772 = smul.u32 2, %s26
        %p773 = scmp.lt.s32.totalorder %s772, 3
        %s774 = scalar_select %p773, %s772, 3
        %s775 = smul.addr %s774, 8
        %s776 = scalar_lea.vmem %s4, %s775
        %s777 = smul.u32 2, %s26
        %p778 = scmp.lt.s32.totalorder %s777, 3
        %s779 = scalar_select %p778, %s777, 3
        %s780 = smul.addr %s779, 4
        %s781 = scalar_lea.vmem %s5, %s780
        // Predicated region
        $region53: #{run.5} parent=35 // pred_check
          %p782 = pneg %p148
        $region54: #{run.5} parent=35 // pred_check_branch
          %784 = sbr.rel (%p782) target = $region56
        $region55: #{run.5} parent=35 // pred_region
          %s785 = smul.u32 2, %s26
        $region56: #{run.5} parent=35 // pred_fallthru
          _
        // Predicated region
        $region57: #{run.5} parent=35 // pred_check
          %p786 = pneg %p174
        $region58: #{run.5} parent=35 // pred_check_branch
          %788 = sbr.rel (%p786) target = $region60
        $region59: #{run.5} parent=35 // pred_region
          %s789 = smul.u32 2, %s26
        $region60: #{run.5} parent=35 // pred_fallthru
          _
      $region36: #{run.5} parent=5 // pred_fallthru
        _
      %p790 = scmp.le.s32.totalorder 2, %s17
      // Predicated region
      $region61: #{run.5} parent=5 // pred_check
        %p791 = pneg %p790
      $region62: #{run.5} parent=5 // pred_check_branch
        %793 = sbr.rel (%p791) target = $region64
      $region63: #{run.5} parent=5 // pred_region
        %s794 = ssub.s32 %s17, 2
        // Predicated region
        $region65: #{run.5} parent=63 // pred_check
          %p795 = pneg %p154
        $region66: #{run.5} parent=63 // pred_check_branch
          %797 = sbr.rel (%p795) target = $region68
        $region67: #{run.5} parent=63 // pred_region
          %s798 = smul.u32 2, %s28
          %p799 = scmp.lt.s32.totalorder %s798, 3
          %s800 = scalar_select %p799, %s798, 3
          %s801 = smul.addr %s800, 8
          %s802 = scalar_lea.vmem %s4, %s801
        $region68: #{run.5} parent=63 // pred_fallthru
          _
        // Predicated region
        $region69: #{run.5} parent=63 // pred_check
          %p803 = pneg %p180
        $region70: #{run.5} parent=63 // pred_check_branch
          %805 = sbr.rel (%p803) target = $region72
        $region71: #{run.5} parent=63 // pred_region
          %s806 = smul.u32 2, %s28
          %p807 = scmp.lt.s32.totalorder %s806, 3
          %s808 = scalar_select %p807, %s806, 3
          %s809 = smul.addr %s808, 4
          %s810 = scalar_lea.vmem %s5, %s809
        $region72: #{run.5} parent=63 // pred_fallthru
          _
      $region64: #{run.5} parent=5 // pred_fallthru
        _
    $region6: #{run.5} parent=1 // loop_footer
      %s21 = sadd.s32 1, %s17
    $region7: #{run.5} parent=1 // loop_footer_branch
      %16 = sbr.rel target = $region3
    $region8: #{run.5} parent=1 // loop_exit
      _
    %811 = vsyncpa [#allocation6], 1
    %s812 = scalar_lea.sflag [#allocation6], 1
    %813 = vsyncpa %s812, 1
    %814 = vsyncpa [#allocation8], 1

// kernel: run.7
$region0: #{run.7}
  #allocation0 [shape = 'u32[]', space=smem, size = 0x4, offset = 0x4, fixed_abs, tag = 'smem constant byte address 0x4 - core index']
  #allocation1 [shape = 'u32[72,128]{1,0:T(1,128)}', space=vmem, size = 0x9000, scoped, tag = 'internal scratch']
  #allocation2 [shape = 'f32[16,128]{1,0:T(8,128)}', space=vmem, size = 0x2000, scoped, tag = 'scratch operand']
  #allocation3 [shape = 'f32[16,1]{1,0:T(8,128)}', space=vmem, size = 0x2000, scoped, tag = 'scratch operand']
  #allocation4 [shape = 'f32[1,1]{1,0:T(1,128)S(6)}', space=smem, size = 0x200, scoped, tag = 'scoped memory for run.7']
  %s0 = inlined_call_operand.vmem [shape: f32[32,128], index: 0, kind: input, shape index: {}]
  %s1 = inlined_call_operand.hbm [shape: f32[128,128], index: 1, kind: input, shape index: {}]
  %s2 = inlined_call_operand.vmem [shape: f32[1,128], index: 2, kind: input, shape index: {}]
  %s3 = inlined_call_operand.<no memory space> [shape: f32[1,1], index: 3, kind: input, shape index: {}]
  %s4 = inlined_call_operand.hbm [shape: f32[32,128], index: 4, kind: output, shape index: {0}]
  %s5 = inlined_call_operand.vmem [shape: bf16[32,128], index: 5, kind: output, shape index: {1}]
  %6 = xla_tuple %s4, %s5
  %s7 = sld [smem:[#allocation0]]
  $region69: #{run.7} parent=0
    _
  %s9 = ssub.s32 1, %s7
  %s10 = scalar_select 0, %s9, %s7
  %11 = sst [smem:[#allocation4]] %s3
  $region1: #{run.7} parent=0
    #allocation5 [shape = 'u8[65536]{0}', space=vmem, size = 0x10000, scoped, tag = 'input window, operand 1, single buffered']
    #allocation6 [shape = 's32[2]{0}', space=sflag, size = 0x8, scoped, tag = 'scoped memory for run.7']
    #allocation7 [shape = 's32[2]{0}', space=sflag, size = 0x8, scoped, tag = 'scoped memory for run.7']
    #allocation8 [shape = 'u8[16384]{0}', space=vmem, size = 0x4000, scoped, tag = 'output window, operand 0']
    %12 = vsyncpa [#allocation6], 0
    %13 = vsyncpa [#allocation7], 0
    %s14 = scalar_lea.sflag [#allocation7], 1
    %15 = vsyncpa %s14, 0
    loop: start=0, step=1, limit=4
    $region2: #{run.7} parent=1 // loop_pre_header
      _
    $region3: #{run.7} parent=1 // loop_header
      %s17 = sphi 0, %s21
      %p18 = scmp.ge.s32.totalorder %s17, 4
      %s24 = sphi 0, %s36
      %s25 = sphi 0, %s32
      %s26 = sphi 0, %s24
      %s27 = sphi 0, %s25
      %s28 = sphi 0, %s26
      %s29 = sphi 0, %s27
      %s41 = sphi 0, %s43
      %s44 = sphi 0, %s41
      %s45 = sphi 0, %s44
      %s61 = sphi 0, %s45
      %s67 = sphi 0, %s69
      %s70 = sphi 0, %s67
      %s71 = sphi 0, %s70
      %s87 = sphi 0, %s71
      %s91 = sphi 0, %s91
      %s93 = sphi 0, %s91
      %s94 = sphi 0, %s93
      %s108 = sphi 0, %s94
      %s112 = sphi 0, %s112
      %s114 = sphi 0, %s112
      %s115 = sphi 0, %s114
      %s129 = sphi 0, %s115
      %s135 = sphi 0, %s137
      %s138 = sphi 0, %s135
      %s139 = sphi 0, %s138
      %s155 = sphi 0, %s139
      %s161 = sphi 0, %s163
      %s164 = sphi 0, %s161
      %s165 = sphi 0, %s164
      %s181 = sphi 0, %s165
    $region4: #{run.7} parent=1 // loop_header_branch
      %20 = sbr.rel (%p18) target = $region8
    $region5: #{run.7} parent=1 // loop_body
      %s22 = ssub.s32 %s17, 1
      %s23 = ssub.s32 %s17, 2
      %s30 = sadd.s32 1, %s25
      %p31 = scmp.ge.s32.totalorder %s30, 1
      %s32 = scalar_select %p31, 0, %s30
      %s33 = sadd.s32 1, %s24
      %s34 = scalar_select %p31, %s33, %s24
      %p35 = scmp.ge.s32.totalorder %s34, 2
      %s36 = scalar_select %p35, 0, %s34
      %s37 = ssub.s32 %s24, %s36
      %s38 = ssub.s32 %s25, %s32
      %s39 = sor.u32 %s37, %s38
      %p40 = scmp.eq.s32.totalorder %s39, 0
      %s42 = sadd.s32 %s41, 1
      %s43 = scalar_select %p40, %s41, %s42
      %p46 = pneg %p40
      %p47 = scmp.eq.s32.totalorder %s17, 1
      %p48 = por %p46, %p47
      %p49 = scmp.ne.s32.totalorder %s41, %s44
      %p50 = scmp.eq.s32.totalorder %s17, 0
      %p51 = por %p49, %p50
      %p52 = scmp.ne.s32.totalorder %s41, %s44
      %p53 = scmp.eq.s32.totalorder %s22, 1
      %p54 = por %p52, %p53
      %p55 = scmp.ne.s32.totalorder %s44, %s45
      %p56 = scmp.eq.s32.totalorder %s22, 0
      %p57 = por %p55, %p56
      %p58 = scmp.ne.s32.totalorder %s44, %s45
      %p59 = scmp.eq.s32.totalorder %s23, 1
      %p60 = por %p58, %p59
      %p62 = scmp.ne.s32.totalorder %s45, %s61
      %p63 = scmp.eq.s32.totalorder %s23, 0
      %p64 = por %p62, %p63
      %s65 = ssub.s32 %s25, %s32
      %p66 = scmp.eq.s32.totalorder %s65, 0
      %s68 = sadd.s32 %s67, 1
      %s69 = scalar_select %p66, %s67, %s68
      %p72 = pneg %p66
      %p73 = scmp.eq.s32.totalorder %s17, 1
      %p74 = por %p72, %p73
      %p75 = scmp.ne.s32.totalorder %s67, %s70
      %p76 = scmp.eq.s32.totalorder %s17, 0
      %p77 = por %p75, %p76
      %p78 = scmp.ne.s32.totalorder %s67, %s70
      %p79 = scmp.eq.s32.totalorder %s22, 1
      %p80 = por %p78, %p79
      %p81 = scmp.ne.s32.totalorder %s70, %s71
      %p82 = scmp.eq.s32.totalorder %s22, 0
      %p83 = por %p81, %p82
      %p84 = scmp.ne.s32.totalorder %s70, %s71
      %p85 = scmp.eq.s32.totalorder %s23, 1
      %p86 = por %p84, %p85
      %p88 = scmp.ne.s32.totalorder %s71, %s87
      %p89 = scmp.eq.s32.totalorder %s23, 0
      %p90 = por %p88, %p89
      %s92 = sadd.s32 %s91, 1
      %p95 = scmp.eq.s32.totalorder %s17, 1
      %p96 = scmp.ne.s32.totalorder %s91, %s93
      %p97 = scmp.eq.s32.totalorder %s17, 0
      %p98 = por %p96, %p97
      %p99 = scmp.ne.s32.totalorder %s91, %s93
      %p100 = scmp.eq.s32.totalorder %s22, 1
      %p101 = por %p99, %p100
      %p102 = scmp.ne.s32.totalorder %s93, %s94
      %p103 = scmp.eq.s32.totalorder %s22, 0
      %p104 = por %p102, %p103
      %p105 = scmp.ne.s32.totalorder %s93, %s94
      %p106 = scmp.eq.s32.totalorder %s23, 1
      %p107 = por %p105, %p106
      %p109 = scmp.ne.s32.totalorder %s94, %s108
      %p110 = scmp.eq.s32.totalorder %s23, 0
      %p111 = por %p109, %p110
      %s113 = sadd.s32 %s112, 1
      %p116 = scmp.eq.s32.totalorder %s17, 1
      %p117 = scmp.ne.s32.totalorder %s112, %s114
      %p118 = scmp.eq.s32.totalorder %s17, 0
      %p119 = por %p117, %p118
      %p120 = scmp.ne.s32.totalorder %s112, %s114
      %p121 = scmp.eq.s32.totalorder %s22, 1
      %p122 = por %p120, %p121
      %p123 = scmp.ne.s32.totalorder %s114, %s115
      %p124 = scmp.eq.s32.totalorder %s22, 0
      %p125 = por %p123, %p124
      %p126 = scmp.ne.s32.totalorder %s114, %s115
      %p127 = scmp.eq.s32.totalorder %s23, 1
      %p128 = por %p126, %p127
      %p130 = scmp.ne.s32.totalorder %s115, %s129
      %p131 = scmp.eq.s32.totalorder %s23, 0
      %p132 = por %p130, %p131
      %s133 = ssub.s32 %s24, %s36
      %p134 = scmp.eq.s32.totalorder %s133, 0
      %s136 = sadd.s32 %s135, 1
      %s137 = scalar_select %p134, %s135, %s136
      %p140 = pneg %p134
      %p141 = scmp.eq.s32.totalorder %s17, 1
      %p142 = por %p140, %p141
      %p143 = scmp.ne.s32.totalorder %s135, %s138
      %p144 = scmp.eq.s32.totalorder %s17, 0
      %p145 = por %p143, %p144
      %p146 = scmp.ne.s32.totalorder %s135, %s138
      %p147 = scmp.eq.s32.totalorder %s22, 1
      %p148 = por %p146, %p147
      %p149 = scmp.ne.s32.totalorder %s138, %s139
      %p150 = scmp.eq.s32.totalorder %s22, 0
      %p151 = por %p149, %p150
      %p152 = scmp.ne.s32.totalorder %s138, %s139
      %p153 = scmp.eq.s32.totalorder %s23, 1
      %p154 = por %p152, %p153
      %p156 = scmp.ne.s32.totalorder %s139, %s155
      %p157 = scmp.eq.s32.totalorder %s23, 0
      %p158 = por %p156, %p157
      %s159 = ssub.s32 %s24, %s36
      %p160 = scmp.eq.s32.totalorder %s159, 0
      %s162 = sadd.s32 %s161, 1
      %s163 = scalar_select %p160, %s161, %s162
      %p166 = pneg %p160
      %p167 = scmp.eq.s32.totalorder %s17, 1
      %p168 = por %p166, %p167
      %p169 = scmp.ne.s32.totalorder %s161, %s164
      %p170 = scmp.eq.s32.totalorder %s17, 0
      %p171 = por %p169, %p170
      %p172 = scmp.ne.s32.totalorder %s161, %s164
      %p173 = scmp.eq.s32.totalorder %s22, 1
      %p174 = por %p172, %p173
      %p175 = scmp.ne.s32.totalorder %s164, %s165
      %p176 = scmp.eq.s32.totalorder %s22, 0
      %p177 = por %p175, %p176
      %p178 = scmp.ne.s32.totalorder %s164, %s165
      %p179 = scmp.eq.s32.totalorder %s23, 1
      %p180 = por %p178, %p179
      %p182 = scmp.ne.s32.totalorder %s165, %s181
      %p183 = scmp.eq.s32.totalorder %s23, 0
      %p184 = por %p182, %p183
      %p185 = scmp.le.s32.totalorder 1, %s17
      %p186 = scmp.lt.s32.totalorder %s17, 3
      %p187 = pnand %p185, %p186
      %p188 = pneg %p187
      // Predicated region
      $region9: #{run.7} parent=5 // pred_check
        _
      $region10: #{run.7} parent=5 // pred_check_branch
        %190 = sbr.rel (%p187) target = $region12
      $region11: #{run.7} parent=5 // pred_region
        %s191 = ssub.s32 %s17, 1
        // Predicated region
        $region13: #{run.7} parent=11 // pred_check
          %p192 = pneg %p83
        $region14: #{run.7} parent=11 // pred_check_branch
          %194 = sbr.rel (%p192) target = $region16
        $region15: #{run.7} parent=11 // pred_region
          %s195 = smul.u32 16, %s27
          %197 = vsyncadd [#allocation6], 0
          %s198 = smul.addr %s195, 8
          %s199 = scalar_lea.hbm %s1, %s198
          %s200 = sshll.u32 %s199, 4
          %s201 = int_to_ptr.hbm [resolvable:$true] %s200
          %s202 = sshll.u32 [#allocation5], 4
          %s203 = int_to_ptr.vmem [resolvable:$true] %s202
          %208 = dma.hbm_to_vmem [thread:$0]  %s201, 2048, %s203, [#allocation6], 128, 128, 8
        $region16: #{run.7} parent=11 // pred_fallthru
          _
        // Predicated region
        $region17: #{run.7} parent=11 // pred_check
          %p209 = pneg %p104
        $region18: #{run.7} parent=11 // pred_check_branch
          %211 = sbr.rel (%p209) target = $region20
        $region19: #{run.7} parent=11 // pred_region
          _
        $region20: #{run.7} parent=11 // pred_fallthru
          _
        // Predicated region
        $region21: #{run.7} parent=11 // pred_check
          %p212 = pneg %p125
        $region22: #{run.7} parent=11 // pred_check_branch
          %214 = sbr.rel (%p212) target = $region24
        $region23: #{run.7} parent=11 // pred_region
          _
        $region24: #{run.7} parent=11 // pred_fallthru
          _
      $region12: #{run.7} parent=5 // pred_fallthru
        _
      %p215 = scmp.lt.s32.totalorder %s17, 2
      // Predicated region
      $region25: #{run.7} parent=5 // pred_check
        %p216 = pneg %p215
      $region26: #{run.7} parent=5 // pred_check_branch
        %218 = sbr.rel (%p216) target = $region28
      $region27: #{run.7} parent=5 // pred_region
        // Predicated region
        $region29: #{run.7} parent=27 // pred_check
          %p219 = pneg %p51
        $region30: #{run.7} parent=27 // pred_check_branch
          %221 = sbr.rel (%p219) target = $region32
        $region31: #{run.7} parent=27 // pred_region
          %s222 = smul.u32 2, %s24
          %p223 = scmp.lt.s32.totalorder %s222, 3
          %s224 = scalar_select %p223, %s222, 3
          %p225 = scmp.lt.s32.totalorder %s25, 0
          %s226 = scalar_select %p225, %s25, 0
          %s227 = sadd.s32 %s226, %s224
          %s228 = smul.addr %s227, 8
          %s229 = scalar_lea.vmem %s0, %s228
          %s230 = smul.u32 2, %s24
        $region32: #{run.7} parent=27 // pred_fallthru
          _
      $region28: #{run.7} parent=5 // pred_fallthru
        _
      %p231 = scmp.le.s32.totalorder 1, %s17
      %p232 = scmp.lt.s32.totalorder %s17, 3
      %p233 = pnand %p231, %p232
      %p234 = pneg %p233
      // Predicated region
      $region33: #{run.7} parent=5 // pred_check
        _
      $region34: #{run.7} parent=5 // pred_check_branch
        %236 = sbr.rel (%p233) target = $region36
      $region35: #{run.7} parent=5 // pred_region
        %s237 = ssub.s32 %s17, 1
        // Predicated region
        $region37: #{run.7} parent=35 // pred_check
          %p238 = pneg %p83
        $region38: #{run.7} parent=35 // pred_check_branch
          %240 = sbr.rel (%p238) target = $region40
        $region39: #{run.7} parent=35 // pred_region
          %242 = dma.done [#allocation6], 2048
        $region40: #{run.7} parent=35 // pred_fallthru
          _
        %s243 = smul.u32 2, %s26
        %p244 = scmp.lt.s32.totalorder %s243, 3
        %s245 = scalar_select %p244, %s243, 3
        %p246 = scmp.lt.s32.totalorder %s27, 0
        %s247 = scalar_select %p246, %s27, 0
        %s248 = sadd.s32 %s247, %s245
        %s249 = smul.addr %s248, 8
        %s250 = scalar_lea.vmem %s0, %s249
        %p251 = pneg %p57
        %p252 = pneg %p54
        %p253 = pneg %p83
        %p254 = pneg %p80
        %p255 = pneg %p104
        %p256 = pneg %p101
        %p257 = pneg %p125
        %p258 = pneg %p122
        %p259 = pneg %p151
        %p260 = pneg %p148
        %s261 = sand.u32 %s138, 1
        %s262 = scalar_lea.sflag [#allocation7], %s261
        %s263 = sand.u32 %s138, 1
        %s264 = smul.addr %s263, 16
        %s265 = scalar_lea.vmem [#allocation8], %s264
        %p266 = pneg %p177
        %p267 = pneg %p174
        %s268 = smul.u32 2, %s26
        %p269 = scmp.lt.s32.totalorder %s268, 3
        %s270 = scalar_select %p269, %s268, 3
        %s271 = smul.addr %s270, 4
        %s272 = scalar_lea.vmem %s5, %s271
        %s273 = smul.u32 2, %s26
        %p274 = scmp.lt.s32.totalorder %s273, 3
        %s275 = scalar_select %p274, %s273, 3
        %p276 = scmp.lt.s32.totalorder %s27, 0
        %s277 = scalar_select %p276, %s27, 0
        %s278 = sadd.s32 %s277, %s275
        %s279 = smul.addr %s278, 8
        %s280 = scalar_lea.vmem %s0, %s279
        %s281 = smul.u32 2, %s26
        %s282 = smul.u32 16, %s27
        %s283 = smul.u32 2, %s26
        %s284 = smul.u32 2, %s26
        %p285 = scmp.lt.s32.totalorder %s284, 3
        %s286 = scalar_select %p285, %s284, 3
        %s287 = smul.addr %s286, 4
        %s288 = scalar_lea.vmem %s5, %s287
        %s289 = smul.u32 2, %s26
        %p290 = scmp.eq.s32.totalorder %s27, 0
        // Predicated region
        $region41: #{run.7} parent=35 // pred_check
          %p291 = pneg %p290
        $region42: #{run.7} parent=35 // pred_check_branch
          %293 = sbr.rel (%p291) target = $region44
        $region43: #{run.7} parent=35 // pred_region
          %294 = vst [vmem:[#allocation2] sm:$0xff] 0.0
          %295 = vst [vmem:[#allocation2 + $0x8] sm:$0xff] 0.0
          %vm296 = vcmask 7168
          %297 = vst.msk [vmem:[#allocation3] sm:$0xff] %vm296, 0.0
          %298 = vst.msk [vmem:[#allocation3 + $0x8] sm:$0xff] %vm296, 0.0
        $region44: #{run.7} parent=35 // pred_fallthru
          _
        %v299 = vld [vmem:[%s280] sm:$0xff]
        %v300 = vld [vmem:[%s280 + $0x8] sm:$0xff]
        %v301 = vld [vmem:[#allocation2] sm:$0xff]
        %v302 = vld [vmem:[#allocation2 + $0x8] sm:$0xff]
        %v303 = vld [vmem:[#allocation5] sm:$0xff]
        %v304 = vld [vmem:[#allocation5 + $0x8] sm:$0xff]
        %v305 = vld [vmem:[#allocation5 + $0x10] sm:$0xff]
        %v306 = vld [vmem:[#allocation5 + $0x18] sm:$0xff]
        %v307 = vld [vmem:[#allocation5 + $0x20] sm:$0xff]
        %v308 = vld [vmem:[#allocation5 + $0x28] sm:$0xff]
        %v309 = vld [vmem:[#allocation5 + $0x30] sm:$0xff]
        %v310 = vld [vmem:[#allocation5 + $0x38] sm:$0xff]
        %v311 = vld [vmem:[#allocation5 + $0x40] sm:$0xff]
        %v312 = vld [vmem:[#allocation5 + $0x48] sm:$0xff]
        %v313 = vld [vmem:[#allocation5 + $0x50] sm:$0xff]
        %v314 = vld [vmem:[#allocation5 + $0x58] sm:$0xff]
        %v315 = vld [vmem:[#allocation5 + $0x60] sm:$0xff]
        %v316 = vld [vmem:[#allocation5 + $0x68] sm:$0xff]
        %v317 = vld [vmem:[#allocation5 + $0x70] sm:$0xff]
        %v318 = vld [vmem:[#allocation5 + $0x78] sm:$0xff]
        %319 = vmatpush.msra.mxu0 %v318
        %320 = vmatpush.msra.mxu0 %v317
        %321 = vmatpush.msra.mxu0 %v316
        %322 = vmatpush.msra.mxu0 %v315
        %323 = vmatpush.msra.mxu0 %v314
        %324 = vmatpush.msra.mxu0 %v313
        %325 = vmatpush.msra.mxu0 %v312
        %326 = vmatpush.msra.mxu0 %v311
        %327 = vmatpush.msra.mxu0 %v310
        %328 = vmatpush.msra.mxu0 %v309
        %329 = vmatpush.msra.mxu0 %v308
        %330 = vmatpush.msra.mxu0 %v307
        %331 = vmatpush.msra.mxu0 %v306
        %332 = vmatpush.msra.mxu0 %v305
        %333 = vmatpush.msra.mxu0 %v304
        %334 = vmatpush.msra.mxu0 %v303
        %335 = vmatmul.f32.gmra.mxu0 %v299
        %v336 = vpop.f32.mrf.mxu0
        %v337 = vadd.f32 0.0, %v336
        %338 = vmatmul.f32.gmra.mxu0 %v300
        %v339 = vpop.f32.mrf.mxu0
        %v340 = vadd.f32 0.0, %v339
        %341 = vdwg.mxu0
        %v342 = vadd.f32 %v301, %v337
        %v343 = vadd.f32 %v302, %v340
        %344 = vst [vmem:[#allocation2] sm:$0xff] %v342
        %345 = vst [vmem:[#allocation2 + $0x8] sm:$0xff] %v343
        %v346 = vld [vmem:[#allocation3] sm:$0xff]
        %v347 = vld [vmem:[#allocation3 + $0x8] sm:$0xff]
        %v348 = vmul.f32 %v299, %v299
        %v349 = vmul.f32 %v300, %v300
        %350 = vadd.xlane.f32.xlu0 %v348
        %v351 = vpop.xlane.xlu0 %350
        %352 = vadd.xlane.f32.xlu0 %v349
        %v353 = vpop.xlane.xlu0 %352
        %v354 = vadd.f32 %v346, %v351
        %v355 = vadd.f32 %v347, %v353
        %vm356 = vcmask 7168
        %357 = vst.msk [vmem:[#allocation3] sm:$0xff] %vm356, %v354
        %358 = vst.msk [vmem:[#allocation3 + $0x8] sm:$0xff] %vm356, %v355
        // Predicated region
        $region45: #{run.7} parent=35 // pred_check
          %p359 = pneg %p290
        $region46: #{run.7} parent=35 // pred_check_branch
          %361 = sbr.rel (%p359) target = $region48
        $region47: #{run.7} parent=35 // pred_region
          %v362 = vld [vmem:[#allocation2] sm:$0xff]
          %v363 = vld [vmem:[#allocation2 + $0x8] sm:$0xff]
          %v364 = vld [vmem:[#allocation3] sm:$0xff]
          %v365 = vld [vmem:[#allocation3 + $0x8] sm:$0xff]
          %v366 = vmax.f32 %v364, 1e-15
          %v367 = vmax.f32 %v365, 1e-15
          %v368 = vrsqrt.pop %v366
          %v369 = vmul.f32 %v368, %v366
          %v370 = vmul.f32 %v369, %v368
          %v371 = vmul.f32 0.5, %v370
          %v372 = vsub.f32 1.5, %v371
          %v373 = vmul.f32 %v368, %v372
          %v374 = vmul.f32 %v366, %v373
          %vm375 = vcmp.eq.f32.partialorder %v366, inf
          %v376 = vsel %vm375, %v366, %v374
          %vm377 = vcmp.eq.f32.partialorder %v366, 0.0
          %v378 = vand.u32 %v366, 2147483648
          %v379 = vsel %vm377, %v378, %v376
          %v380 = vrsqrt.pop %v367
          %v381 = vmul.f32 %v380, %v367
          %v382 = vmul.f32 %v381, %v380
          %v383 = vmul.f32 0.5, %v382
          %v384 = vsub.f32 1.5, %v383
          %v385 = vmul.f32 %v380, %v384
          %v386 = vmul.f32 %v367, %v385
          %vm387 = vcmp.eq.f32.partialorder %v367, inf
          %v388 = vsel %vm387, %v367, %v386
          %vm389 = vcmp.eq.f32.partialorder %v367, 0.0
          %v390 = vand.u32 %v367, 2147483648
          %v391 = vsel %vm389, %v390, %v388
          %v392 = vmul.f32 %v362, %v362
          %v393 = vmul.f32 %v363, %v363
          %394 = vadd.xlane.f32.xlu0 %v392
          %v395 = vpop.xlane.xlu0 %394
          %396 = vadd.xlane.f32.xlu0 %v393
          %v397 = vpop.xlane.xlu0 %396
          %v398 = vmax.f32 %v395, 1e-15
          %v399 = vmax.f32 %v397, 1e-15
          %v400 = vrsqrt.pop %v398
          %v401 = vmul.f32 %v400, %v398
          %v402 = vmul.f32 %v401, %v400
          %v403 = vmul.f32 0.5, %v402
          %v404 = vsub.f32 1.5, %v403
          %v405 = vmul.f32 %v400, %v404
          %v406 = vmul.f32 %v398, %v405
          %vm407 = vcmp.eq.f32.partialorder %v398, inf
          %v408 = vsel %vm407, %v398, %v406
          %vm409 = vcmp.eq.f32.partialorder %v398, 0.0
          %v410 = vand.u32 %v398, 2147483648
          %v411 = vsel %vm409, %v410, %v408
          %v412 = vrsqrt.pop %v399
          %v413 = vmul.f32 %v412, %v399
          %v414 = vmul.f32 %v413, %v412
          %v415 = vmul.f32 0.5, %v414
          %v416 = vsub.f32 1.5, %v415
          %v417 = vmul.f32 %v412, %v416
          %v418 = vmul.f32 %v399, %v417
          %vm419 = vcmp.eq.f32.partialorder %v399, inf
          %v420 = vsel %vm419, %v399, %v418
          %vm421 = vcmp.eq.f32.partialorder %v399, 0.0
          %v422 = vand.u32 %v399, 2147483648
          %v423 = vsel %vm421, %v422, %v420
          %v424 = vrcp.pop %v379
          %v425 = vmul.f32 %v379, %v424
          %v426 = vsub.f32 1.0, %v425
          %v427 = vmul.f32 %v424, %v426
          %v428 = vadd.f32 %v424, %v427
          %vm429 = vweird.f32 %v379
          %vm430 = vweird.f32 %v424
          %vm431 = vmor %vm429, %vm430
          %v432 = vsel %vm431, %v424, %v428
          %v433 = vand.u32 2147483647, %v379
          %vm434 = vcmp.eq.f32.partialorder %v433, 8.507059e+37
          %v435 = vand.u32 %v379, 2147483648
          %v436 = vor.u32 1.1754944e-38, %v435
          %v437 = vsel %vm434, %v436, %v432
          %v438 = vmul.f32 %v411, %v437
          %v439 = vrcp.pop %v391
          %v440 = vmul.f32 %v391, %v439
          %v441 = vsub.f32 1.0, %v440
          %v442 = vmul.f32 %v439, %v441
          %v443 = vadd.f32 %v439, %v442
          %vm444 = vweird.f32 %v391
          %vm445 = vweird.f32 %v439
          %vm446 = vmor %vm444, %vm445
          %v447 = vsel %vm446, %v439, %v443
          %v448 = vand.u32 2147483647, %v391
          %vm449 = vcmp.eq.f32.partialorder %v448, 8.507059e+37
          %v450 = vand.u32 %v391, 2147483648
          %v451 = vor.u32 1.1754944e-38, %v450
          %v452 = vsel %vm449, %v451, %v447
          %v453 = vmul.f32 %v423, %v452
          %v454 = vmax.f32 %v379, -0.9999999
          %v455 = vmax.f32 %v391, -0.9999999
          %v456 = vmin.f32 %v454, 0.9999999
          %v457 = vmin.f32 %v455, 0.9999999
          %v458 = vadd.f32 %v456, 1.0
          %v459 = vlog2.pop %v458
          %v460 = vmul.f32 %v459, 0.6931472
          %v461 = vmul.f32 -0.5, %v456
          %v462 = vadd.f32 %v461, 1.0
          %v463 = vmul.f32 %v462, %v456
          %v464 = vand.u32 2147483647, %v456
          %vm465 = vcmp.lt.f32.partialorder %v464, 0.0004427343
          %v466 = vsel %vm465, %v463, %v460
          %v467 = vadd.f32 %v457, 1.0
          %v468 = vlog2.pop %v467
          %v469 = vmul.f32 %v468, 0.6931472
          %v470 = vmul.f32 -0.5, %v457
          %v471 = vadd.f32 %v470, 1.0
          %v472 = vmul.f32 %v471, %v457
          %v473 = vand.u32 2147483647, %v457
          %vm474 = vcmp.lt.f32.partialorder %v473, 0.0004427343
          %v475 = vsel %vm474, %v472, %v469
          %v476 = vsub.f32 0.0, %v456
          %v477 = vsub.f32 0.0, %v457
          %v478 = vadd.f32 %v476, 1.0
          %v479 = vlog2.pop %v478
          %v480 = vmul.f32 %v479, 0.6931472
          %v481 = vmul.f32 -0.5, %v476
          %v482 = vadd.f32 %v481, 1.0
          %v483 = vmul.f32 %v482, %v476
          %v484 = vand.u32 2147483647, %v476
          %vm485 = vcmp.lt.f32.partialorder %v484, 0.0004427343
          %v486 = vsel %vm485, %v483, %v480
          %v487 = vadd.f32 %v477, 1.0
          %v488 = vlog2.pop %v487
          %v489 = vmul.f32 %v488, 0.6931472
          %v490 = vmul.f32 -0.5, %v477
          %v491 = vadd.f32 %v490, 1.0
          %v492 = vmul.f32 %v491, %v477
          %v493 = vand.u32 2147483647, %v477
          %vm494 = vcmp.lt.f32.partialorder %v493, 0.0004427343
          %v495 = vsel %vm494, %v492, %v489
          %v496 = vsub.f32 %v466, %v486
          %v497 = vsub.f32 %v475, %v495
          %v498 = vmul.f32 %v496, 0.5
          %v499 = vmul.f32 %v497, 0.5
          %v500 = vmul.f32 %v438, %v498
          %v501 = vmul.f32 %v453, %v499
          %v502 = vtanh.pop %v500
          %v503 = vtanh.pop %v501
          %505 = vset.pattern.permute.xlu0 0
          %506 = vperm.xlu0 %505, %v502
          %v507 = vpop.permute.xlu0 %506
          %510 = vset.pattern.permute.xlu0 0
          %511 = vperm.xlu0 %510, %v503
          %v512 = vpop.permute.xlu0 %511
          %v514 = vmul.f32 %v507, %v362
          %v515 = vmul.f32 %v512, %v363
          %v516 = vrcp.pop %v411
          %v517 = vmul.f32 %v411, %v516
          %v518 = vsub.f32 1.0, %v517
          %v519 = vmul.f32 %v516, %v518
          %v520 = vadd.f32 %v516, %v519
          %vm521 = vweird.f32 %v411
          %vm522 = vweird.f32 %v516
          %vm523 = vmor %vm521, %vm522
          %v524 = vsel %vm523, %v516, %v520
          %v525 = vand.u32 2147483647, %v411
          %vm526 = vcmp.eq.f32.partialorder %v525, 8.507059e+37
          %v527 = vand.u32 %v411, 2147483648
          %v528 = vor.u32 1.1754944e-38, %v527
          %v529 = vsel %vm526, %v528, %v524
          %v530 = vmul.f32 %v514, %v529
          %v531 = vrcp.pop %v423
          %v532 = vmul.f32 %v423, %v531
          %v533 = vsub.f32 1.0, %v532
          %v534 = vmul.f32 %v531, %v533
          %v535 = vadd.f32 %v531, %v534
          %vm536 = vweird.f32 %v423
          %vm537 = vweird.f32 %v531
          %vm538 = vmor %vm536, %vm537
          %v539 = vsel %vm538, %v531, %v535
          %v540 = vand.u32 2147483647, %v423
          %vm541 = vcmp.eq.f32.partialorder %v540, 8.507059e+37
          %v542 = vand.u32 %v423, 2147483648
          %v543 = vor.u32 1.1754944e-38, %v542
          %v544 = vsel %vm541, %v543, %v539
          %v545 = vmul.f32 %v515, %v544
          %v546 = vmul.f32 %v411, %v411
          %v547 = vmul.f32 %v423, %v423
          %vm548 = vcmp.le.f32.partialorder %v546, 1e-15
          %vm549 = vcmp.le.f32.partialorder %v547, 1e-15
          %v550 = vsel %vm548, 1, 0
          %v551 = vsel %vm549, 1, 0
          %vm552 = vcmp.eq.s32.totalorder %v550, 1
          %vm553 = vcmp.eq.s32.totalorder %v551, 1
          %v554 = vsel %vm552, 0.0, %v530
          %v555 = vsel %vm553, 0.0, %v545
          %v556 = vld [vmem:[%s2] sm:$0x1]
          %s557 = sld [smem:[#allocation4]]
          %v558 = vmul.f32 %v554, %v554
          %v559 = vmul.f32 %v555, %v555
          %560 = vadd.xlane.f32.xlu0 %v558
          %v561 = vpop.xlane.xlu0 %560
          %562 = vadd.xlane.f32.xlu0 %v559
          %v563 = vpop.xlane.xlu0 %562
          %v565 = vperm.slane %v556, 0
          %v567 = vmul.f32 %v554, %v565
          %v568 = vmul.f32 %v555, %v565
          %569 = vadd.xlane.f32.xlu0 %v567
          %v570 = vpop.xlane.xlu0 %569
          %571 = vadd.xlane.f32.xlu0 %v568
          %v572 = vpop.xlane.xlu0 %571
          %v573 = vmul.f32 %v570, 2.0
          %v574 = vmul.f32 %v572, 2.0
          %v575 = vadd.f32 %v573, 1.0
          %v576 = vadd.f32 %v574, 1.0
          %v577 = vstv %s557
          %v578 = vadd.f32 %v575, %v577
          %v579 = vadd.f32 %v576, %v577
          %v580 = vmul.f32 %v578, %v554
          %v581 = vmul.f32 %v579, %v555
          %v582 = vsub.f32 1.0, %v561
          %v583 = vsub.f32 1.0, %v563
          %v584 = vmul.f32 %v582, %v565
          %v585 = vmul.f32 %v583, %v565
          %v586 = vadd.f32 %v580, %v584
          %v587 = vadd.f32 %v581, %v585
          %v588 = vmul.f32 %v561, %v577
          %v589 = vmul.f32 %v563, %v577
          %v590 = vadd.f32 %v575, %v588
          %v591 = vadd.f32 %v576, %v589
          %v592 = vmax.f32 %v590, 1e-15
          %v593 = vmax.f32 %v591, 1e-15
          %v594 = vrcp.pop %v592
          %v595 = vmul.f32 %v592, %v594
          %v596 = vsub.f32 1.0, %v595
          %v597 = vmul.f32 %v594, %v596
          %v598 = vadd.f32 %v594, %v597
          %vm599 = vweird.f32 %v592
          %vm600 = vweird.f32 %v594
          %vm601 = vmor %vm599, %vm600
          %v602 = vsel %vm601, %v594, %v598
          %v603 = vand.u32 2147483647, %v592
          %vm604 = vcmp.eq.f32.partialorder %v603, 8.507059e+37
          %v605 = vand.u32 %v592, 2147483648
          %v606 = vor.u32 1.1754944e-38, %v605
          %v607 = vsel %vm604, %v606, %v602
          %v608 = vmul.f32 %v586, %v607
          %v609 = vrcp.pop %v593
          %v610 = vmul.f32 %v593, %v609
          %v611 = vsub.f32 1.0, %v610
          %v612 = vmul.f32 %v609, %v611
          %v613 = vadd.f32 %v609, %v612
          %vm614 = vweird.f32 %v593
          %vm615 = vweird.f32 %v609
          %vm616 = vmor %vm614, %vm615
          %v617 = vsel %vm616, %v609, %v613
          %v618 = vand.u32 2147483647, %v593
          %vm619 = vcmp.eq.f32.partialorder %v618, 8.507059e+37
          %v620 = vand.u32 %v593, 2147483648
          %v621 = vor.u32 1.1754944e-38, %v620
          %v622 = vsel %vm619, %v621, %v617
          %v623 = vmul.f32 %v587, %v622
          %v624 = vmul.f32 %v608, %v608
          %v625 = vmul.f32 %v623, %v623
          %626 = vadd.xlane.f32.xlu0 %v624
          %v627 = vpop.xlane.xlu0 %626
          %628 = vadd.xlane.f32.xlu0 %v625
          %v629 = vpop.xlane.xlu0 %628
          %v630 = vmax.f32 %v627, 1e-15
          %v631 = vmax.f32 %v629, 1e-15
          %v632 = vrsqrt.pop %v630
          %v633 = vmul.f32 %v632, %v630
          %v634 = vmul.f32 %v633, %v632
          %v635 = vmul.f32 0.5, %v634
          %v636 = vsub.f32 1.5, %v635
          %v637 = vmul.f32 %v632, %v636
          %v638 = vmul.f32 %v630, %v637
          %vm639 = vcmp.eq.f32.partialorder %v630, inf
          %v640 = vsel %vm639, %v630, %v638
          %vm641 = vcmp.eq.f32.partialorder %v630, 0.0
          %v642 = vand.u32 %v630, 2147483648
          %v643 = vsel %vm641, %v642, %v640
          %v644 = vrsqrt.pop %v631
          %v645 = vmul.f32 %v644, %v631
          %v646 = vmul.f32 %v645, %v644
          %v647 = vmul.f32 0.5, %v646
          %v648 = vsub.f32 1.5, %v647
          %v649 = vmul.f32 %v644, %v648
          %v650 = vmul.f32 %v631, %v649
          %vm651 = vcmp.eq.f32.partialorder %v631, inf
          %v652 = vsel %vm651, %v631, %v650
          %vm653 = vcmp.eq.f32.partialorder %v631, 0.0
          %v654 = vand.u32 %v631, 2147483648
          %v655 = vsel %vm653, %v654, %v652
          %v656 = vrcp.pop %v643
          %v657 = vmul.f32 %v643, %v656
          %v658 = vsub.f32 1.0, %v657
          %v659 = vmul.f32 %v656, %v658
          %v660 = vadd.f32 %v656, %v659
          %vm661 = vweird.f32 %v643
          %vm662 = vweird.f32 %v656
          %vm663 = vmor %vm661, %vm662
          %v664 = vsel %vm663, %v656, %v660
          %v665 = vand.u32 2147483647, %v643
          %vm666 = vcmp.eq.f32.partialorder %v665, 8.507059e+37
          %v667 = vand.u32 %v643, 2147483648
          %v668 = vor.u32 1.1754944e-38, %v667
          %v669 = vsel %vm666, %v668, %v664
          %v670 = vmul.f32 0.99999, %v669
          %v671 = vrcp.pop %v655
          %v672 = vmul.f32 %v655, %v671
          %v673 = vsub.f32 1.0, %v672
          %v674 = vmul.f32 %v671, %v673
          %v675 = vadd.f32 %v671, %v674
          %vm676 = vweird.f32 %v655
          %vm677 = vweird.f32 %v671
          %vm678 = vmor %vm676, %vm677
          %v679 = vsel %vm678, %v671, %v675
          %v680 = vand.u32 2147483647, %v655
          %vm681 = vcmp.eq.f32.partialorder %v680, 8.507059e+37
          %v682 = vand.u32 %v655, 2147483648
          %v683 = vor.u32 1.1754944e-38, %v682
          %v684 = vsel %vm681, %v683, %v679
          %v685 = vmul.f32 0.99999, %v684
          %v686 = vmul.f32 %v608, %v670
          %v687 = vmul.f32 %v623, %v685
          %vm688 = vcmp.gt.f32.partialorder %v643, 0.99999
          %vm689 = vcmp.gt.f32.partialorder %v655, 0.99999
          %v690 = vsel %vm688, 1, 0
          %v691 = vsel %vm689, 1, 0
          %vm692 = vcmp.eq.s32.totalorder %v690, 1
          %vm693 = vcmp.eq.s32.totalorder %v691, 1
          %v694 = vsel %vm692, %v686, %v608
          %v695 = vsel %vm693, %v687, %v623
          %v696 = vmax.f32 %v694, 0.0
          %v697 = vmax.f32 %v695, 0.0
          %v698 = vmul.f32 %v696, %v696
          %v699 = vmul.f32 %v697, %v697
          %700 = vadd.xlane.f32.xlu0 %v698
          %v701 = vpop.xlane.xlu0 %700
          %702 = vadd.xlane.f32.xlu0 %v699
          %v703 = vpop.xlane.xlu0 %702
          %v704 = vsub.f32 1.0, %v701
          %v705 = vsub.f32 1.0, %v703
          %v706 = vmax.f32 %v704, 1e-15
          %v707 = vmax.f32 %v705, 1e-15
          %v708 = vrcp.pop %v706
          %v709 = vmul.f32 %v706, %v708
          %v710 = vsub.f32 1.0, %v709
          %v711 = vmul.f32 %v708, %v710
          %v712 = vadd.f32 %v708, %v711
          %vm713 = vweird.f32 %v706
          %vm714 = vweird.f32 %v708
          %vm715 = vmor %vm713, %vm714
          %v716 = vsel %vm715, %v708, %v712
          %v717 = vand.u32 2147483647, %v706
          %vm718 = vcmp.eq.f32.partialorder %v717, 8.507059e+37
          %v719 = vand.u32 %v706, 2147483648
          %v720 = vor.u32 1.1754944e-38, %v719
          %v721 = vsel %vm718, %v720, %v716
          %v722 = vmul.f32 2.0, %v721
          %v723 = vrcp.pop %v707
          %v724 = vmul.f32 %v707, %v723
          %v725 = vsub.f32 1.0, %v724
          %v726 = vmul.f32 %v723, %v725
          %v727 = vadd.f32 %v723, %v726
          %vm728 = vweird.f32 %v707
          %vm729 = vweird.f32 %v723
          %vm730 = vmor %vm728, %vm729
          %v731 = vsel %vm730, %v723, %v727
          %v732 = vand.u32 2147483647, %v707
          %vm733 = vcmp.eq.f32.partialorder %v732, 8.507059e+37
          %v734 = vand.u32 %v707, 2147483648
          %v735 = vor.u32 1.1754944e-38, %v734
          %v736 = vsel %vm733, %v735, %v731
          %v737 = vmul.f32 2.0, %v736
          %v738 = vsub.f32 1.0, %v351
          %v739 = vsub.f32 1.0, %v353
          %v740 = vmax.f32 %v738, 1e-15
          %v741 = vmax.f32 %v739, 1e-15
          %v742 = vrcp.pop %v740
          %v743 = vmul.f32 %v740, %v742
          %v744 = vsub.f32 1.0, %v743
          %v745 = vmul.f32 %v742, %v744
          %v746 = vadd.f32 %v742, %v745
          %vm747 = vweird.f32 %v740
          %vm748 = vweird.f32 %v742
          %vm749 = vmor %vm747, %vm748
          %v750 = vsel %vm749, %v742, %v746
          %v751 = vand.u32 2147483647, %v740
          %vm752 = vcmp.eq.f32.partialorder %v751, 8.507059e+37
          %v753 = vand.u32 %v740, 2147483648
          %v754 = vor.u32 1.1754944e-38, %v753
          %v755 = vsel %vm752, %v754, %v750
          %v756 = vmul.f32 2.0, %v755
          %v757 = vrcp.pop %v741
          %v758 = vmul.f32 %v741, %v757
          %v759 = vsub.f32 1.0, %v758
          %v760 = vmul.f32 %v757, %v759
          %v761 = vadd.f32 %v757, %v760
          %vm762 = vweird.f32 %v741
          %vm763 = vweird.f32 %v757
          %vm764 = vmor %vm762, %vm763
          %v765 = vsel %vm764, %v757, %v761
          %v766 = vand.u32 2147483647, %v741
          %vm767 = vcmp.eq.f32.partialorder %v766, 8.507059e+37
          %v768 = vand.u32 %v741, 2147483648
          %v769 = vor.u32 1.1754944e-38, %v768
          %v770 = vsel %vm767, %v769, %v765
          %v771 = vmul.f32 2.0, %v770
          %v772 = vsub.f32 %v722, 1.0
          %v773 = vsub.f32 %v737, 1.0
          %v774 = vmul.f32 %v772, 0.4054651
          %v775 = vmul.f32 %v773, 0.4054651
          %v776 = vsub.f32 %v756, 1.0
          %v777 = vsub.f32 %v771, 1.0
          %v778 = vmul.f32 %v776, 0.5945349
          %v779 = vmul.f32 %v777, 0.5945349
          %v780 = vadd.f32 %v774, %v778
          %v781 = vadd.f32 %v775, %v779
          %v782 = vmul.f32 %v722, 0.4054651
          %v783 = vmul.f32 %v737, 0.4054651
          %v784 = vmul.f32 %v782, %v696
          %v785 = vmul.f32 %v783, %v697
          %v786 = vmul.f32 %v756, 0.5945349
          %v787 = vmul.f32 %v771, 0.5945349
          %v788 = vmul.f32 %v786, %v299
          %v789 = vmul.f32 %v787, %v300
          %v790 = vadd.f32 %v784, %v788
          %v791 = vadd.f32 %v785, %v789
          %vm792 = vcmp.ge.f32.partialorder %v780, 0.0
          %vm793 = vcmp.ge.f32.partialorder %v781, 0.0
          %v794 = vsel %vm792, 1.0, -1.0
          %v795 = vsel %vm793, 1.0, -1.0
          %v796 = vand.u32 2147483647, %v780
          %v797 = vand.u32 2147483647, %v781
          %v798 = vmax.f32 %v796, 1e-10
          %v799 = vmax.f32 %v797, 1e-10
          %v800 = vmul.f32 %v794, %v798
          %v801 = vmul.f32 %v795, %v799
          %v802 = vrcp.pop %v800
          %v803 = vmul.f32 %v800, %v802
          %v804 = vsub.f32 1.0, %v803
          %v805 = vmul.f32 %v802, %v804
          %v806 = vadd.f32 %v802, %v805
          %vm807 = vweird.f32 %v800
          %vm808 = vweird.f32 %v802
          %vm809 = vmor %vm807, %vm808
          %v810 = vsel %vm809, %v802, %v806
          %v811 = vand.u32 2147483647, %v800
          %vm812 = vcmp.eq.f32.partialorder %v811, 8.507059e+37
          %v813 = vand.u32 %v800, 2147483648
          %v814 = vor.u32 1.1754944e-38, %v813
          %v815 = vsel %vm812, %v814, %v810
          %v816 = vmul.f32 %v790, %v815
          %v817 = vrcp.pop %v801
          %v818 = vmul.f32 %v801, %v817
          %v819 = vsub.f32 1.0, %v818
          %v820 = vmul.f32 %v817, %v819
          %v821 = vadd.f32 %v817, %v820
          %vm822 = vweird.f32 %v801
          %vm823 = vweird.f32 %v817
          %vm824 = vmor %vm822, %vm823
          %v825 = vsel %vm824, %v817, %v821
          %v826 = vand.u32 2147483647, %v801
          %vm827 = vcmp.eq.f32.partialorder %v826, 8.507059e+37
          %v828 = vand.u32 %v801, 2147483648
          %v829 = vor.u32 1.1754944e-38, %v828
          %v830 = vsel %vm827, %v829, %v825
          %v831 = vmul.f32 %v791, %v830
          %v832 = vmul.f32 %v816, %v816
          %v833 = vmul.f32 %v831, %v831
          %834 = vadd.xlane.f32.xlu0 %v832
          %v835 = vpop.xlane.xlu0 %834
          %836 = vadd.xlane.f32.xlu0 %v833
          %v837 = vpop.xlane.xlu0 %836
          %v838 = vmax.f32 %v835, 1e-15
          %v839 = vmax.f32 %v837, 1e-15
          %v840 = vrsqrt.pop %v838
          %v841 = vmul.f32 %v840, %v838
          %v842 = vmul.f32 %v841, %v840
          %v843 = vmul.f32 0.5, %v842
          %v844 = vsub.f32 1.5, %v843
          %v845 = vmul.f32 %v840, %v844
          %v846 = vmul.f32 %v838, %v845
          %vm847 = vcmp.eq.f32.partialorder %v838, inf
          %v848 = vsel %vm847, %v838, %v846
          %vm849 = vcmp.eq.f32.partialorder %v838, 0.0
          %v850 = vand.u32 %v838, 2147483648
          %v851 = vsel %vm849, %v850, %v848
          %v852 = vrsqrt.pop %v839
          %v853 = vmul.f32 %v852, %v839
          %v854 = vmul.f32 %v853, %v852
          %v855 = vmul.f32 0.5, %v854
          %v856 = vsub.f32 1.5, %v855
          %v857 = vmul.f32 %v852, %v856
          %v858 = vmul.f32 %v839, %v857
          %vm859 = vcmp.eq.f32.partialorder %v839, inf
          %v860 = vsel %vm859, %v839, %v858
          %vm861 = vcmp.eq.f32.partialorder %v839, 0.0
          %v862 = vand.u32 %v839, 2147483648
          %v863 = vsel %vm861, %v862, %v860
          %v864 = vmax.f32 %v851, -0.9999999
          %v865 = vmax.f32 %v863, -0.9999999
          %v866 = vmin.f32 %v864, 0.9999999
          %v867 = vmin.f32 %v865, 0.9999999
          %v868 = vadd.f32 %v866, 1.0
          %v869 = vlog2.pop %v868
          %v870 = vmul.f32 %v869, 0.6931472
          %v871 = vmul.f32 -0.5, %v866
          %v872 = vadd.f32 %v871, 1.0
          %v873 = vmul.f32 %v872, %v866
          %v874 = vand.u32 2147483647, %v866
          %vm875 = vcmp.lt.f32.partialorder %v874, 0.0004427343
          %v876 = vsel %vm875, %v873, %v870
          %v877 = vadd.f32 %v867, 1.0
          %v878 = vlog2.pop %v877
          %v879 = vmul.f32 %v878, 0.6931472
          %v880 = vmul.f32 -0.5, %v867
          %v881 = vadd.f32 %v880, 1.0
          %v882 = vmul.f32 %v881, %v867
          %v883 = vand.u32 2147483647, %v867
          %vm884 = vcmp.lt.f32.partialorder %v883, 0.0004427343
          %v885 = vsel %vm884, %v882, %v879
          %v886 = vsub.f32 0.0, %v866
          %v887 = vsub.f32 0.0, %v867
          %v888 = vadd.f32 %v886, 1.0
          %v889 = vlog2.pop %v888
          %v890 = vmul.f32 %v889, 0.6931472
          %v891 = vmul.f32 -0.5, %v886
          %v892 = vadd.f32 %v891, 1.0
          %v893 = vmul.f32 %v892, %v886
          %v894 = vand.u32 2147483647, %v886
          %vm895 = vcmp.lt.f32.partialorder %v894, 0.0004427343
          %v896 = vsel %vm895, %v893, %v890
          %v897 = vadd.f32 %v887, 1.0
          %v898 = vlog2.pop %v897
          %v899 = vmul.f32 %v898, 0.6931472
          %v900 = vmul.f32 -0.5, %v887
          %v901 = vadd.f32 %v900, 1.0
          %v902 = vmul.f32 %v901, %v887
          %v903 = vand.u32 2147483647, %v887
          %vm904 = vcmp.lt.f32.partialorder %v903, 0.0004427343
          %v905 = vsel %vm904, %v902, %v899
          %v906 = vsub.f32 %v876, %v896
          %v907 = vsub.f32 %v885, %v905
          %v908 = vmul.f32 %v906, 0.5
          %v909 = vmul.f32 %v907, 0.5
          %v910 = vmul.f32 %v908, 0.5
          %v911 = vmul.f32 %v909, 0.5
          %v912 = vtanh.pop %v910
          %v913 = vtanh.pop %v911
          %v914 = vmul.f32 %v912, %v816
          %v915 = vmul.f32 %v913, %v831
          %v916 = vrcp.pop %v851
          %v917 = vmul.f32 %v851, %v916
          %v918 = vsub.f32 1.0, %v917
          %v919 = vmul.f32 %v916, %v918
          %v920 = vadd.f32 %v916, %v919
          %vm921 = vweird.f32 %v851
          %vm922 = vweird.f32 %v916
          %vm923 = vmor %vm921, %vm922
          %v924 = vsel %vm923, %v916, %v920
          %v925 = vand.u32 2147483647, %v851
          %vm926 = vcmp.eq.f32.partialorder %v925, 8.507059e+37
          %v927 = vand.u32 %v851, 2147483648
          %v928 = vor.u32 1.1754944e-38, %v927
          %v929 = vsel %vm926, %v928, %v924
          %v930 = vmul.f32 %v914, %v929
          %v931 = vrcp.pop %v863
          %v932 = vmul.f32 %v863, %v931
          %v933 = vsub.f32 1.0, %v932
          %v934 = vmul.f32 %v931, %v933
          %v935 = vadd.f32 %v931, %v934
          %vm936 = vweird.f32 %v863
          %vm937 = vweird.f32 %v931
          %vm938 = vmor %vm936, %vm937
          %v939 = vsel %vm938, %v931, %v935
          %v940 = vand.u32 2147483647, %v863
          %vm941 = vcmp.eq.f32.partialorder %v940, 8.507059e+37
          %v942 = vand.u32 %v863, 2147483648
          %v943 = vor.u32 1.1754944e-38, %v942
          %v944 = vsel %vm941, %v943, %v939
          %v945 = vmul.f32 %v915, %v944
          %v946 = vmul.f32 %v930, %v930
          %v947 = vmul.f32 %v945, %v945
          %948 = vadd.xlane.f32.xlu0 %v946
          %v949 = vpop.xlane.xlu0 %948
          %950 = vadd.xlane.f32.xlu0 %v947
          %v951 = vpop.xlane.xlu0 %950
          %v952 = vmax.f32 %v949, 1e-15
          %v953 = vmax.f32 %v951, 1e-15
          %v954 = vrsqrt.pop %v952
          %v955 = vmul.f32 %v954, %v952
          %v956 = vmul.f32 %v955, %v954
          %v957 = vmul.f32 0.5, %v956
          %v958 = vsub.f32 1.5, %v957
          %v959 = vmul.f32 %v954, %v958
          %v960 = vmul.f32 %v952, %v959
          %vm961 = vcmp.eq.f32.partialorder %v952, inf
          %v962 = vsel %vm961, %v952, %v960
          %vm963 = vcmp.eq.f32.partialorder %v952, 0.0
          %v964 = vand.u32 %v952, 2147483648
          %v965 = vsel %vm963, %v964, %v962
          %v966 = vrsqrt.pop %v953
          %v967 = vmul.f32 %v966, %v953
          %v968 = vmul.f32 %v967, %v966
          %v969 = vmul.f32 0.5, %v968
          %v970 = vsub.f32 1.5, %v969
          %v971 = vmul.f32 %v966, %v970
          %v972 = vmul.f32 %v953, %v971
          %vm973 = vcmp.eq.f32.partialorder %v953, inf
          %v974 = vsel %vm973, %v953, %v972
          %vm975 = vcmp.eq.f32.partialorder %v953, 0.0
          %v976 = vand.u32 %v953, 2147483648
          %v977 = vsel %vm975, %v976, %v974
          %v978 = vrcp.pop %v965
          %v979 = vmul.f32 %v965, %v978
          %v980 = vsub.f32 1.0, %v979
          %v981 = vmul.f32 %v978, %v980
          %v982 = vadd.f32 %v978, %v981
          %vm983 = vweird.f32 %v965
          %vm984 = vweird.f32 %v978
          %vm985 = vmor %vm983, %vm984
          %v986 = vsel %vm985, %v978, %v982
          %v987 = vand.u32 2147483647, %v965
          %vm988 = vcmp.eq.f32.partialorder %v987, 8.507059e+37
          %v989 = vand.u32 %v965, 2147483648
          %v990 = vor.u32 1.1754944e-38, %v989
          %v991 = vsel %vm988, %v990, %v986
          %v992 = vmul.f32 0.99999, %v991
          %v993 = vrcp.pop %v977
          %v994 = vmul.f32 %v977, %v993
          %v995 = vsub.f32 1.0, %v994
          %v996 = vmul.f32 %v993, %v995
          %v997 = vadd.f32 %v993, %v996
          %vm998 = vweird.f32 %v977
          %vm999 = vweird.f32 %v993
          %vm1000 = vmor %vm998, %vm999
          %v1001 = vsel %vm1000, %v993, %v997
          %v1002 = vand.u32 2147483647, %v977
          %vm1003 = vcmp.eq.f32.partialorder %v1002, 8.507059e+37
          %v1004 = vand.u32 %v977, 2147483648
          %v1005 = vor.u32 1.1754944e-38, %v1004
          %v1006 = vsel %vm1003, %v1005, %v1001
          %v1007 = vmul.f32 0.99999, %v1006
          %v1008 = vmul.f32 %v930, %v992
          %v1009 = vmul.f32 %v945, %v1007
          %vm1010 = vcmp.gt.f32.partialorder %v965, 0.99999
          %vm1011 = vcmp.gt.f32.partialorder %v977, 0.99999
          %v1012 = vsel %vm1010, 1, 0
          %v1013 = vsel %vm1011, 1, 0
          %vm1014 = vcmp.eq.s32.totalorder %v1012, 1
          %vm1015 = vcmp.eq.s32.totalorder %v1013, 1
          %v1016 = vsel %vm1014, %v1008, %v930
          %v1017 = vsel %vm1015, %v1009, %v945
          %v1018 = vmul.f32 %v1016, %v1016
          %v1019 = vmul.f32 %v1017, %v1017
          %1020 = vadd.xlane.f32.xlu0 %v1018
          %v1021 = vpop.xlane.xlu0 %1020
          %1022 = vadd.xlane.f32.xlu0 %v1019
          %v1023 = vpop.xlane.xlu0 %1022
          %v1024 = vsub.f32 1.0, %v1021
          %v1025 = vsub.f32 1.0, %v1023
          %v1026 = vmax.f32 %v1024, 1e-15
          %v1027 = vmax.f32 %v1025, 1e-15
          %v1028 = vrcp.pop %v1026
          %v1029 = vmul.f32 %v1026, %v1028
          %v1030 = vsub.f32 1.0, %v1029
          %v1031 = vmul.f32 %v1028, %v1030
          %v1032 = vadd.f32 %v1028, %v1031
          %vm1033 = vweird.f32 %v1026
          %vm1034 = vweird.f32 %v1028
          %vm1035 = vmor %vm1033, %vm1034
          %v1036 = vsel %vm1035, %v1028, %v1032
          %v1037 = vand.u32 2147483647, %v1026
          %vm1038 = vcmp.eq.f32.partialorder %v1037, 8.507059e+37
          %v1039 = vand.u32 %v1026, 2147483648
          %v1040 = vor.u32 1.1754944e-38, %v1039
          %v1041 = vsel %vm1038, %v1040, %v1036
          %v1042 = vmul.f32 2.0, %v1041
          %v1043 = vrcp.pop %v1027
          %v1044 = vmul.f32 %v1027, %v1043
          %v1045 = vsub.f32 1.0, %v1044
          %v1046 = vmul.f32 %v1043, %v1045
          %v1047 = vadd.f32 %v1043, %v1046
          %vm1048 = vweird.f32 %v1027
          %vm1049 = vweird.f32 %v1043
          %vm1050 = vmor %vm1048, %vm1049
          %v1051 = vsel %vm1050, %v1043, %v1047
          %v1052 = vand.u32 2147483647, %v1027
          %vm1053 = vcmp.eq.f32.partialorder %v1052, 8.507059e+37
          %v1054 = vand.u32 %v1027, 2147483648
          %v1055 = vor.u32 1.1754944e-38, %v1054
          %v1056 = vsel %vm1053, %v1055, %v1051
          %v1057 = vmul.f32 2.0, %v1056
          %v1058 = vlaneseq
          %v1059 = vand.u32 %v1058, 127
          %vm1060 = vcmp.eq.s32.totalorder %v1059, 32
          %v1061 = vsel %vm1060, 1, 0
          %v1062 = vcvt.s32.f32 %v1061
          %v1063 = vmul.f32 %v1042, %v1016
          %v1064 = vmul.f32 %v1057, %v1017
          %v1065 = vsub.f32 %v1042, 1.0
          %v1066 = vsub.f32 %v1057, 1.0
          %v1067 = vmul.f32 %v1065, %v1062
          %v1068 = vmul.f32 %v1066, %v1062
          %v1069 = vadd.f32 %v1063, %v1067
          %v1070 = vadd.f32 %v1064, %v1068
          %1071 = vst [vmem:[%s265] sm:$0xff] %v1016
          %1072 = vst [vmem:[%s265 + $0x8] sm:$0xff] %v1017
          %v1073 = vpack.c.bf16 %v1069, %v1069
          %v1074 = vpack.c.bf16 %v1070, %v1070
          %1075 = vst [vmem:[%s288] sm:$0xf] %v1073
          %1076 = vst [vmem:[%s288 + $0x4] sm:$0xf] %v1074
        $region48: #{run.7} parent=35 // pred_fallthru
          _
        %s1077 = sand.u32 %s138, 1
        %s1078 = scalar_lea.sflag [#allocation7], %s1077
        %s1079 = sand.u32 %s138, 1
        %s1080 = smul.addr %s1079, 16
        %s1081 = scalar_lea.vmem [#allocation8], %s1080
        %s1082 = smul.u32 2, %s26
        %p1083 = scmp.lt.s32.totalorder %s1082, 3
        %s1084 = scalar_select %p1083, %s1082, 3
        %s1085 = smul.addr %s1084, 4
        %s1086 = scalar_lea.vmem %s5, %s1085
        // Predicated region
        $region49: #{run.7} parent=35 // pred_check
          %p1087 = pneg %p148
        $region50: #{run.7} parent=35 // pred_check_branch
          %1089 = sbr.rel (%p1087) target = $region52
        $region51: #{run.7} parent=35 // pred_region
          %s1090 = smul.u32 2, %s26
          %1092 = vsyncadd %s1078, 0
          %s1093 = smul.addr %s1090, 8
          %s1094 = scalar_lea.hbm %s4, %s1093
          %s1095 = sshll.u32 %s1081, 4
          %s1096 = int_to_ptr.vmem [resolvable:$true] %s1095
          %s1097 = sshll.u32 %s1094, 4
          %s1098 = int_to_ptr.hbm [resolvable:$true] %s1097
          %1103 = dma.vmem_to_hbm [thread:$0]  %s1096, 256, %s1098, %s1078, 128, 128, 8
        $region52: #{run.7} parent=35 // pred_fallthru
          _
        // Predicated region
        $region53: #{run.7} parent=35 // pred_check
          %p1104 = pneg %p174
        $region54: #{run.7} parent=35 // pred_check_branch
          %1106 = sbr.rel (%p1104) target = $region56
        $region55: #{run.7} parent=35 // pred_region
          %s1107 = smul.u32 2, %s26
        $region56: #{run.7} parent=35 // pred_fallthru
          _
      $region36: #{run.7} parent=5 // pred_fallthru
        _
      %p1108 = scmp.le.s32.totalorder 2, %s17
      // Predicated region
      $region57: #{run.7} parent=5 // pred_check
        %p1109 = pneg %p1108
      $region58: #{run.7} parent=5 // pred_check_branch
        %1111 = sbr.rel (%p1109) target = $region60
      $region59: #{run.7} parent=5 // pred_region
        %s1112 = ssub.s32 %s17, 2
        // Predicated region
        $region61: #{run.7} parent=59 // pred_check
          %p1113 = pneg %p154
        $region62: #{run.7} parent=59 // pred_check_branch
          %1115 = sbr.rel (%p1113) target = $region64
        $region63: #{run.7} parent=59 // pred_region
          %s1116 = sand.u32 %s139, 1
          %s1117 = scalar_lea.sflag [#allocation7], %s1116
          %s1118 = sand.u32 %s139, 1
          %s1119 = smul.addr %s1118, 16
          %s1120 = scalar_lea.vmem [#allocation8], %s1119
          %1122 = dma.done %s1117, 256
        $region64: #{run.7} parent=59 // pred_fallthru
          _
        // Predicated region
        $region65: #{run.7} parent=59 // pred_check
          %p1123 = pneg %p180
        $region66: #{run.7} parent=59 // pred_check_branch
          %1125 = sbr.rel (%p1123) target = $region68
        $region67: #{run.7} parent=59 // pred_region
          %s1126 = smul.u32 2, %s28
          %p1127 = scmp.lt.s32.totalorder %s1126, 3
          %s1128 = scalar_select %p1127, %s1126, 3
          %s1129 = smul.addr %s1128, 4
          %s1130 = scalar_lea.vmem %s5, %s1129
        $region68: #{run.7} parent=59 // pred_fallthru
          _
      $region60: #{run.7} parent=5 // pred_fallthru
        _
    $region6: #{run.7} parent=1 // loop_footer
      %s21 = sadd.s32 1, %s17
    $region7: #{run.7} parent=1 // loop_footer_branch
      %16 = sbr.rel target = $region3
    $region8: #{run.7} parent=1 // loop_exit
      _
    %1131 = vsyncpa [#allocation6], 1
    %s1132 = scalar_lea.sflag [#allocation6], 1
    %1133 = vsyncpa %s1132, 1
    %1134 = vsyncpa [#allocation7], 1
    %s1135 = scalar_lea.sflag [#allocation7], 1
    %1136 = vsyncpa %s1135, 1

// kernel: run.9
$region0: #{run.9}
  #allocation0 [shape = 'u32[]', space=smem, size = 0x4, offset = 0x4, fixed_abs, tag = 'smem constant byte address 0x4 - core index']
  #allocation1 [shape = 'u32[72,128]{1,0:T(1,128)}', space=vmem, size = 0x9000, scoped, tag = 'internal scratch']
  #allocation2 [shape = 'f32[16,128]{1,0:T(8,128)}', space=vmem, size = 0x2000, scoped, tag = 'scratch operand']
  #allocation3 [shape = 'f32[16,1]{1,0:T(8,128)}', space=vmem, size = 0x2000, scoped, tag = 'scratch operand']
  #allocation4 [shape = 'f32[1,1]{1,0:T(1,128)S(6)}', space=smem, size = 0x200, scoped, tag = 'scoped memory for run.9']
  %s0 = inlined_call_operand.vmem [shape: f32[32,128], index: 0, kind: input, shape index: {}]
  %s1 = inlined_call_operand.hbm [shape: f32[128,128], index: 1, kind: input, shape index: {}]
  %s2 = inlined_call_operand.vmem [shape: f32[1,128], index: 2, kind: input, shape index: {}]
  %s3 = inlined_call_operand.<no memory space> [shape: f32[1,1], index: 3, kind: input, shape index: {}]
  %s4 = inlined_call_operand.hbm [shape: f32[32,128], index: 4, kind: output, shape index: {}]
  %s5 = sld [smem:[#allocation0]]
  $region61: #{run.9} parent=0
    _
  %s7 = ssub.s32 1, %s5
  %s8 = scalar_select 0, %s7, %s5
  %9 = sst [smem:[#allocation4]] %s3
  $region1: #{run.9} parent=0
    #allocation5 [shape = 'u8[65536]{0}', space=vmem, size = 0x10000, scoped, tag = 'input window, operand 1, single buffered']
    #allocation6 [shape = 's32[2]{0}', space=sflag, size = 0x8, scoped, tag = 'scoped memory for run.9']
    #allocation7 [shape = 's32[2]{0}', space=sflag, size = 0x8, scoped, tag = 'scoped memory for run.9']
    #allocation8 [shape = 'u8[16384]{0}', space=vmem, size = 0x4000, scoped, tag = 'output window, operand 0']
    %10 = vsyncpa [#allocation6], 0
    %11 = vsyncpa [#allocation7], 0
    %s12 = scalar_lea.sflag [#allocation7], 1
    %13 = vsyncpa %s12, 0
    loop: start=0, step=1, limit=4
    $region2: #{run.9} parent=1 // loop_pre_header
      _
    $region3: #{run.9} parent=1 // loop_header
      %s15 = sphi 0, %s19
      %p16 = scmp.ge.s32.totalorder %s15, 4
      %s22 = sphi 0, %s34
      %s23 = sphi 0, %s30
      %s24 = sphi 0, %s22
      %s25 = sphi 0, %s23
      %s26 = sphi 0, %s24
      %s27 = sphi 0, %s25
      %s39 = sphi 0, %s41
      %s42 = sphi 0, %s39
      %s43 = sphi 0, %s42
      %s59 = sphi 0, %s43
      %s65 = sphi 0, %s67
      %s68 = sphi 0, %s65
      %s69 = sphi 0, %s68
      %s85 = sphi 0, %s69
      %s89 = sphi 0, %s89
      %s91 = sphi 0, %s89
      %s92 = sphi 0, %s91
      %s106 = sphi 0, %s92
      %s110 = sphi 0, %s110
      %s112 = sphi 0, %s110
      %s113 = sphi 0, %s112
      %s127 = sphi 0, %s113
      %s133 = sphi 0, %s135
      %s136 = sphi 0, %s133
      %s137 = sphi 0, %s136
      %s153 = sphi 0, %s137
    $region4: #{run.9} parent=1 // loop_header_branch
      %18 = sbr.rel (%p16) target = $region8
    $region5: #{run.9} parent=1 // loop_body
      %s20 = ssub.s32 %s15, 1
      %s21 = ssub.s32 %s15, 2
      %s28 = sadd.s32 1, %s23
      %p29 = scmp.ge.s32.totalorder %s28, 1
      %s30 = scalar_select %p29, 0, %s28
      %s31 = sadd.s32 1, %s22
      %s32 = scalar_select %p29, %s31, %s22
      %p33 = scmp.ge.s32.totalorder %s32, 2
      %s34 = scalar_select %p33, 0, %s32
      %s35 = ssub.s32 %s22, %s34
      %s36 = ssub.s32 %s23, %s30
      %s37 = sor.u32 %s35, %s36
      %p38 = scmp.eq.s32.totalorder %s37, 0
      %s40 = sadd.s32 %s39, 1
      %s41 = scalar_select %p38, %s39, %s40
      %p44 = pneg %p38
      %p45 = scmp.eq.s32.totalorder %s15, 1
      %p46 = por %p44, %p45
      %p47 = scmp.ne.s32.totalorder %s39, %s42
      %p48 = scmp.eq.s32.totalorder %s15, 0
      %p49 = por %p47, %p48
      %p50 = scmp.ne.s32.totalorder %s39, %s42
      %p51 = scmp.eq.s32.totalorder %s20, 1
      %p52 = por %p50, %p51
      %p53 = scmp.ne.s32.totalorder %s42, %s43
      %p54 = scmp.eq.s32.totalorder %s20, 0
      %p55 = por %p53, %p54
      %p56 = scmp.ne.s32.totalorder %s42, %s43
      %p57 = scmp.eq.s32.totalorder %s21, 1
      %p58 = por %p56, %p57
      %p60 = scmp.ne.s32.totalorder %s43, %s59
      %p61 = scmp.eq.s32.totalorder %s21, 0
      %p62 = por %p60, %p61
      %s63 = ssub.s32 %s23, %s30
      %p64 = scmp.eq.s32.totalorder %s63, 0
      %s66 = sadd.s32 %s65, 1
      %s67 = scalar_select %p64, %s65, %s66
      %p70 = pneg %p64
      %p71 = scmp.eq.s32.totalorder %s15, 1
      %p72 = por %p70, %p71
      %p73 = scmp.ne.s32.totalorder %s65, %s68
      %p74 = scmp.eq.s32.totalorder %s15, 0
      %p75 = por %p73, %p74
      %p76 = scmp.ne.s32.totalorder %s65, %s68
      %p77 = scmp.eq.s32.totalorder %s20, 1
      %p78 = por %p76, %p77
      %p79 = scmp.ne.s32.totalorder %s68, %s69
      %p80 = scmp.eq.s32.totalorder %s20, 0
      %p81 = por %p79, %p80
      %p82 = scmp.ne.s32.totalorder %s68, %s69
      %p83 = scmp.eq.s32.totalorder %s21, 1
      %p84 = por %p82, %p83
      %p86 = scmp.ne.s32.totalorder %s69, %s85
      %p87 = scmp.eq.s32.totalorder %s21, 0
      %p88 = por %p86, %p87
      %s90 = sadd.s32 %s89, 1
      %p93 = scmp.eq.s32.totalorder %s15, 1
      %p94 = scmp.ne.s32.totalorder %s89, %s91
      %p95 = scmp.eq.s32.totalorder %s15, 0
      %p96 = por %p94, %p95
      %p97 = scmp.ne.s32.totalorder %s89, %s91
      %p98 = scmp.eq.s32.totalorder %s20, 1
      %p99 = por %p97, %p98
      %p100 = scmp.ne.s32.totalorder %s91, %s92
      %p101 = scmp.eq.s32.totalorder %s20, 0
      %p102 = por %p100, %p101
      %p103 = scmp.ne.s32.totalorder %s91, %s92
      %p104 = scmp.eq.s32.totalorder %s21, 1
      %p105 = por %p103, %p104
      %p107 = scmp.ne.s32.totalorder %s92, %s106
      %p108 = scmp.eq.s32.totalorder %s21, 0
      %p109 = por %p107, %p108
      %s111 = sadd.s32 %s110, 1
      %p114 = scmp.eq.s32.totalorder %s15, 1
      %p115 = scmp.ne.s32.totalorder %s110, %s112
      %p116 = scmp.eq.s32.totalorder %s15, 0
      %p117 = por %p115, %p116
      %p118 = scmp.ne.s32.totalorder %s110, %s112
      %p119 = scmp.eq.s32.totalorder %s20, 1
      %p120 = por %p118, %p119
      %p121 = scmp.ne.s32.totalorder %s112, %s113
      %p122 = scmp.eq.s32.totalorder %s20, 0
      %p123 = por %p121, %p122
      %p124 = scmp.ne.s32.totalorder %s112, %s113
      %p125 = scmp.eq.s32.totalorder %s21, 1
      %p126 = por %p124, %p125
      %p128 = scmp.ne.s32.totalorder %s113, %s127
      %p129 = scmp.eq.s32.totalorder %s21, 0
      %p130 = por %p128, %p129
      %s131 = ssub.s32 %s22, %s34
      %p132 = scmp.eq.s32.totalorder %s131, 0
      %s134 = sadd.s32 %s133, 1
      %s135 = scalar_select %p132, %s133, %s134
      %p138 = pneg %p132
      %p139 = scmp.eq.s32.totalorder %s15, 1
      %p140 = por %p138, %p139
      %p141 = scmp.ne.s32.totalorder %s133, %s136
      %p142 = scmp.eq.s32.totalorder %s15, 0
      %p143 = por %p141, %p142
      %p144 = scmp.ne.s32.totalorder %s133, %s136
      %p145 = scmp.eq.s32.totalorder %s20, 1
      %p146 = por %p144, %p145
      %p147 = scmp.ne.s32.totalorder %s136, %s137
      %p148 = scmp.eq.s32.totalorder %s20, 0
      %p149 = por %p147, %p148
      %p150 = scmp.ne.s32.totalorder %s136, %s137
      %p151 = scmp.eq.s32.totalorder %s21, 1
      %p152 = por %p150, %p151
      %p154 = scmp.ne.s32.totalorder %s137, %s153
      %p155 = scmp.eq.s32.totalorder %s21, 0
      %p156 = por %p154, %p155
      %p157 = scmp.le.s32.totalorder 1, %s15
      %p158 = scmp.lt.s32.totalorder %s15, 3
      %p159 = pnand %p157, %p158
      %p160 = pneg %p159
      // Predicated region
      $region9: #{run.9} parent=5 // pred_check
        _
      $region10: #{run.9} parent=5 // pred_check_branch
        %162 = sbr.rel (%p159) target = $region12
      $region11: #{run.9} parent=5 // pred_region
        %s163 = ssub.s32 %s15, 1
        // Predicated region
        $region13: #{run.9} parent=11 // pred_check
          %p164 = pneg %p81
        $region14: #{run.9} parent=11 // pred_check_branch
          %166 = sbr.rel (%p164) target = $region16
        $region15: #{run.9} parent=11 // pred_region
          %s167 = smul.u32 16, %s25
          %169 = vsyncadd [#allocation6], 0
          %s170 = smul.addr %s167, 8
          %s171 = scalar_lea.hbm %s1, %s170
          %s172 = sshll.u32 %s171, 4
          %s173 = int_to_ptr.hbm [resolvable:$true] %s172
          %s174 = sshll.u32 [#allocation5], 4
          %s175 = int_to_ptr.vmem [resolvable:$true] %s174
          %180 = dma.hbm_to_vmem [thread:$0]  %s173, 2048, %s175, [#allocation6], 128, 128, 8
        $region16: #{run.9} parent=11 // pred_fallthru
          _
        // Predicated region
        $region17: #{run.9} parent=11 // pred_check
          %p181 = pneg %p102
        $region18: #{run.9} parent=11 // pred_check_branch
          %183 = sbr.rel (%p181) target = $region20
        $region19: #{run.9} parent=11 // pred_region
          _
        $region20: #{run.9} parent=11 // pred_fallthru
          _
        // Predicated region
        $region21: #{run.9} parent=11 // pred_check
          %p184 = pneg %p123
        $region22: #{run.9} parent=11 // pred_check_branch
          %186 = sbr.rel (%p184) target = $region24
        $region23: #{run.9} parent=11 // pred_region
          _
        $region24: #{run.9} parent=11 // pred_fallthru
          _
      $region12: #{run.9} parent=5 // pred_fallthru
        _
      %p187 = scmp.lt.s32.totalorder %s15, 2
      // Predicated region
      $region25: #{run.9} parent=5 // pred_check
        %p188 = pneg %p187
      $region26: #{run.9} parent=5 // pred_check_branch
        %190 = sbr.rel (%p188) target = $region28
      $region27: #{run.9} parent=5 // pred_region
        // Predicated region
        $region29: #{run.9} parent=27 // pred_check
          %p191 = pneg %p49
        $region30: #{run.9} parent=27 // pred_check_branch
          %193 = sbr.rel (%p191) target = $region32
        $region31: #{run.9} parent=27 // pred_region
          %s194 = smul.u32 2, %s22
          %p195 = scmp.lt.s32.totalorder %s194, 3
          %s196 = scalar_select %p195, %s194, 3
          %p197 = scmp.lt.s32.totalorder %s23, 0
          %s198 = scalar_select %p197, %s23, 0
          %s199 = sadd.s32 %s198, %s196
          %s200 = smul.addr %s199, 8
          %s201 = scalar_lea.vmem %s0, %s200
          %s202 = smul.u32 2, %s22
        $region32: #{run.9} parent=27 // pred_fallthru
          _
      $region28: #{run.9} parent=5 // pred_fallthru
        _
      %p203 = scmp.le.s32.totalorder 1, %s15
      %p204 = scmp.lt.s32.totalorder %s15, 3
      %p205 = pnand %p203, %p204
      %p206 = pneg %p205
      // Predicated region
      $region33: #{run.9} parent=5 // pred_check
        _
      $region34: #{run.9} parent=5 // pred_check_branch
        %208 = sbr.rel (%p205) target = $region36
      $region35: #{run.9} parent=5 // pred_region
        %s209 = ssub.s32 %s15, 1
        // Predicated region
        $region37: #{run.9} parent=35 // pred_check
          %p210 = pneg %p81
        $region38: #{run.9} parent=35 // pred_check_branch
          %212 = sbr.rel (%p210) target = $region40
        $region39: #{run.9} parent=35 // pred_region
          %214 = dma.done [#allocation6], 2048
        $region40: #{run.9} parent=35 // pred_fallthru
          _
        %s215 = smul.u32 2, %s24
        %p216 = scmp.lt.s32.totalorder %s215, 3
        %s217 = scalar_select %p216, %s215, 3
        %p218 = scmp.lt.s32.totalorder %s25, 0
        %s219 = scalar_select %p218, %s25, 0
        %s220 = sadd.s32 %s219, %s217
        %s221 = smul.addr %s220, 8
        %s222 = scalar_lea.vmem %s0, %s221
        %p223 = pneg %p55
        %p224 = pneg %p52
        %p225 = pneg %p81
        %p226 = pneg %p78
        %p227 = pneg %p102
        %p228 = pneg %p99
        %p229 = pneg %p123
        %p230 = pneg %p120
        %p231 = pneg %p149
        %p232 = pneg %p146
        %s233 = sand.u32 %s136, 1
        %s234 = scalar_lea.sflag [#allocation7], %s233
        %s235 = sand.u32 %s136, 1
        %s236 = smul.addr %s235, 16
        %s237 = scalar_lea.vmem [#allocation8], %s236
        %s238 = smul.u32 2, %s24
        %p239 = scmp.lt.s32.totalorder %s238, 3
        %s240 = scalar_select %p239, %s238, 3
        %p241 = scmp.lt.s32.totalorder %s25, 0
        %s242 = scalar_select %p241, %s25, 0
        %s243 = sadd.s32 %s242, %s240
        %s244 = smul.addr %s243, 8
        %s245 = scalar_lea.vmem %s0, %s244
        %s246 = smul.u32 2, %s24
        %s247 = smul.u32 16, %s25
        %s248 = smul.u32 2, %s24
        %p249 = scmp.eq.s32.totalorder %s25, 0
        // Predicated region
        $region41: #{run.9} parent=35 // pred_check
          %p250 = pneg %p249
        $region42: #{run.9} parent=35 // pred_check_branch
          %252 = sbr.rel (%p250) target = $region44
        $region43: #{run.9} parent=35 // pred_region
          %253 = vst [vmem:[#allocation2] sm:$0xff] 0.0
          %254 = vst [vmem:[#allocation2 + $0x8] sm:$0xff] 0.0
          %vm255 = vcmask 7168
          %256 = vst.msk [vmem:[#allocation3] sm:$0xff] %vm255, 0.0
          %257 = vst.msk [vmem:[#allocation3 + $0x8] sm:$0xff] %vm255, 0.0
        $region44: #{run.9} parent=35 // pred_fallthru
          _
        %v258 = vld [vmem:[%s245] sm:$0xff]
        %v259 = vld [vmem:[%s245 + $0x8] sm:$0xff]
        %v260 = vld [vmem:[#allocation2] sm:$0xff]
        %v261 = vld [vmem:[#allocation2 + $0x8] sm:$0xff]
        %v262 = vld [vmem:[#allocation5] sm:$0xff]
        %v263 = vld [vmem:[#allocation5 + $0x8] sm:$0xff]
        %v264 = vld [vmem:[#allocation5 + $0x10] sm:$0xff]
        %v265 = vld [vmem:[#allocation5 + $0x18] sm:$0xff]
        %v266 = vld [vmem:[#allocation5 + $0x20] sm:$0xff]
        %v267 = vld [vmem:[#allocation5 + $0x28] sm:$0xff]
        %v268 = vld [vmem:[#allocation5 + $0x30] sm:$0xff]
        %v269 = vld [vmem:[#allocation5 + $0x38] sm:$0xff]
        %v270 = vld [vmem:[#allocation5 + $0x40] sm:$0xff]
        %v271 = vld [vmem:[#allocation5 + $0x48] sm:$0xff]
        %v272 = vld [vmem:[#allocation5 + $0x50] sm:$0xff]
        %v273 = vld [vmem:[#allocation5 + $0x58] sm:$0xff]
        %v274 = vld [vmem:[#allocation5 + $0x60] sm:$0xff]
        %v275 = vld [vmem:[#allocation5 + $0x68] sm:$0xff]
        %v276 = vld [vmem:[#allocation5 + $0x70] sm:$0xff]
        %v277 = vld [vmem:[#allocation5 + $0x78] sm:$0xff]
        %278 = vmatpush.msra.mxu0 %v277
        %279 = vmatpush.msra.mxu0 %v276
        %280 = vmatpush.msra.mxu0 %v275
        %281 = vmatpush.msra.mxu0 %v274
        %282 = vmatpush.msra.mxu0 %v273
        %283 = vmatpush.msra.mxu0 %v272
        %284 = vmatpush.msra.mxu0 %v271
        %285 = vmatpush.msra.mxu0 %v270
        %286 = vmatpush.msra.mxu0 %v269
        %287 = vmatpush.msra.mxu0 %v268
        %288 = vmatpush.msra.mxu0 %v267
        %289 = vmatpush.msra.mxu0 %v266
        %290 = vmatpush.msra.mxu0 %v265
        %291 = vmatpush.msra.mxu0 %v264
        %292 = vmatpush.msra.mxu0 %v263
        %293 = vmatpush.msra.mxu0 %v262
        %294 = vmatmul.f32.gmra.mxu0 %v258
        %v295 = vpop.f32.mrf.mxu0
        %v296 = vadd.f32 0.0, %v295
        %297 = vmatmul.f32.gmra.mxu0 %v259
        %v298 = vpop.f32.mrf.mxu0
        %v299 = vadd.f32 0.0, %v298
        %300 = vdwg.mxu0
        %v301 = vadd.f32 %v260, %v296
        %v302 = vadd.f32 %v261, %v299
        %303 = vst [vmem:[#allocation2] sm:$0xff] %v301
        %304 = vst [vmem:[#allocation2 + $0x8] sm:$0xff] %v302
        %v305 = vld [vmem:[#allocation3] sm:$0xff]
        %v306 = vld [vmem:[#allocation3 + $0x8] sm:$0xff]
        %v307 = vmul.f32 %v258, %v258
        %v308 = vmul.f32 %v259, %v259
        %309 = vadd.xlane.f32.xlu0 %v307
        %v310 = vpop.xlane.xlu0 %309
        %311 = vadd.xlane.f32.xlu0 %v308
        %v312 = vpop.xlane.xlu0 %311
        %v313 = vadd.f32 %v305, %v310
        %v314 = vadd.f32 %v306, %v312
        %vm315 = vcmask 7168
        %316 = vst.msk [vmem:[#allocation3] sm:$0xff] %vm315, %v313
        %317 = vst.msk [vmem:[#allocation3 + $0x8] sm:$0xff] %vm315, %v314
        // Predicated region
        $region45: #{run.9} parent=35 // pred_check
          %p318 = pneg %p249
        $region46: #{run.9} parent=35 // pred_check_branch
          %320 = sbr.rel (%p318) target = $region48
        $region47: #{run.9} parent=35 // pred_region
          %v321 = vld [vmem:[#allocation2] sm:$0xff]
          %v322 = vld [vmem:[#allocation2 + $0x8] sm:$0xff]
          %v323 = vld [vmem:[#allocation3] sm:$0xff]
          %v324 = vld [vmem:[#allocation3 + $0x8] sm:$0xff]
          %v325 = vmax.f32 %v323, 1e-15
          %v326 = vmax.f32 %v324, 1e-15
          %v327 = vrsqrt.pop %v325
          %v328 = vmul.f32 %v327, %v325
          %v329 = vmul.f32 %v328, %v327
          %v330 = vmul.f32 0.5, %v329
          %v331 = vsub.f32 1.5, %v330
          %v332 = vmul.f32 %v327, %v331
          %v333 = vmul.f32 %v325, %v332
          %vm334 = vcmp.eq.f32.partialorder %v325, inf
          %v335 = vsel %vm334, %v325, %v333
          %vm336 = vcmp.eq.f32.partialorder %v325, 0.0
          %v337 = vand.u32 %v325, 2147483648
          %v338 = vsel %vm336, %v337, %v335
          %v339 = vrsqrt.pop %v326
          %v340 = vmul.f32 %v339, %v326
          %v341 = vmul.f32 %v340, %v339
          %v342 = vmul.f32 0.5, %v341
          %v343 = vsub.f32 1.5, %v342
          %v344 = vmul.f32 %v339, %v343
          %v345 = vmul.f32 %v326, %v344
          %vm346 = vcmp.eq.f32.partialorder %v326, inf
          %v347 = vsel %vm346, %v326, %v345
          %vm348 = vcmp.eq.f32.partialorder %v326, 0.0
          %v349 = vand.u32 %v326, 2147483648
          %v350 = vsel %vm348, %v349, %v347
          %v351 = vmul.f32 %v321, %v321
          %v352 = vmul.f32 %v322, %v322
          %353 = vadd.xlane.f32.xlu0 %v351
          %v354 = vpop.xlane.xlu0 %353
          %355 = vadd.xlane.f32.xlu0 %v352
          %v356 = vpop.xlane.xlu0 %355
          %v357 = vmax.f32 %v354, 1e-15
          %v358 = vmax.f32 %v356, 1e-15
          %v359 = vrsqrt.pop %v357
          %v360 = vmul.f32 %v359, %v357
          %v361 = vmul.f32 %v360, %v359
          %v362 = vmul.f32 0.5, %v361
          %v363 = vsub.f32 1.5, %v362
          %v364 = vmul.f32 %v359, %v363
          %v365 = vmul.f32 %v357, %v364
          %vm366 = vcmp.eq.f32.partialorder %v357, inf
          %v367 = vsel %vm366, %v357, %v365
          %vm368 = vcmp.eq.f32.partialorder %v357, 0.0
          %v369 = vand.u32 %v357, 2147483648
          %v370 = vsel %vm368, %v369, %v367
          %v371 = vrsqrt.pop %v358
          %v372 = vmul.f32 %v371, %v358
          %v373 = vmul.f32 %v372, %v371
          %v374 = vmul.f32 0.5, %v373
          %v375 = vsub.f32 1.5, %v374
          %v376 = vmul.f32 %v371, %v375
          %v377 = vmul.f32 %v358, %v376
          %vm378 = vcmp.eq.f32.partialorder %v358, inf
          %v379 = vsel %vm378, %v358, %v377
          %vm380 = vcmp.eq.f32.partialorder %v358, 0.0
          %v381 = vand.u32 %v358, 2147483648
          %v382 = vsel %vm380, %v381, %v379
          %v383 = vrcp.pop %v338
          %v384 = vmul.f32 %v338, %v383
          %v385 = vsub.f32 1.0, %v384
          %v386 = vmul.f32 %v383, %v385
          %v387 = vadd.f32 %v383, %v386
          %vm388 = vweird.f32 %v338
          %vm389 = vweird.f32 %v383
          %vm390 = vmor %vm388, %vm389
          %v391 = vsel %vm390, %v383, %v387
          %v392 = vand.u32 2147483647, %v338
          %vm393 = vcmp.eq.f32.partialorder %v392, 8.507059e+37
          %v394 = vand.u32 %v338, 2147483648
          %v395 = vor.u32 1.1754944e-38, %v394
          %v396 = vsel %vm393, %v395, %v391
          %v397 = vmul.f32 %v370, %v396
          %v398 = vrcp.pop %v350
          %v399 = vmul.f32 %v350, %v398
          %v400 = vsub.f32 1.0, %v399
          %v401 = vmul.f32 %v398, %v400
          %v402 = vadd.f32 %v398, %v401
          %vm403 = vweird.f32 %v350
          %vm404 = vweird.f32 %v398
          %vm405 = vmor %vm403, %vm404
          %v406 = vsel %vm405, %v398, %v402
          %v407 = vand.u32 2147483647, %v350
          %vm408 = vcmp.eq.f32.partialorder %v407, 8.507059e+37
          %v409 = vand.u32 %v350, 2147483648
          %v410 = vor.u32 1.1754944e-38, %v409
          %v411 = vsel %vm408, %v410, %v406
          %v412 = vmul.f32 %v382, %v411
          %v413 = vmax.f32 %v338, -0.9999999
          %v414 = vmax.f32 %v350, -0.9999999
          %v415 = vmin.f32 %v413, 0.9999999
          %v416 = vmin.f32 %v414, 0.9999999
          %v417 = vadd.f32 %v415, 1.0
          %v418 = vlog2.pop %v417
          %v419 = vmul.f32 %v418, 0.6931472
          %v420 = vmul.f32 -0.5, %v415
          %v421 = vadd.f32 %v420, 1.0
          %v422 = vmul.f32 %v421, %v415
          %v423 = vand.u32 2147483647, %v415
          %vm424 = vcmp.lt.f32.partialorder %v423, 0.0004427343
          %v425 = vsel %vm424, %v422, %v419
          %v426 = vadd.f32 %v416, 1.0
          %v427 = vlog2.pop %v426
          %v428 = vmul.f32 %v427, 0.6931472
          %v429 = vmul.f32 -0.5, %v416
          %v430 = vadd.f32 %v429, 1.0
          %v431 = vmul.f32 %v430, %v416
          %v432 = vand.u32 2147483647, %v416
          %vm433 = vcmp.lt.f32.partialorder %v432, 0.0004427343
          %v434 = vsel %vm433, %v431, %v428
          %v435 = vsub.f32 0.0, %v415
          %v436 = vsub.f32 0.0, %v416
          %v437 = vadd.f32 %v435, 1.0
          %v438 = vlog2.pop %v437
          %v439 = vmul.f32 %v438, 0.6931472
          %v440 = vmul.f32 -0.5, %v435
          %v441 = vadd.f32 %v440, 1.0
          %v442 = vmul.f32 %v441, %v435
          %v443 = vand.u32 2147483647, %v435
          %vm444 = vcmp.lt.f32.partialorder %v443, 0.0004427343
          %v445 = vsel %vm444, %v442, %v439
          %v446 = vadd.f32 %v436, 1.0
          %v447 = vlog2.pop %v446
          %v448 = vmul.f32 %v447, 0.6931472
          %v449 = vmul.f32 -0.5, %v436
          %v450 = vadd.f32 %v449, 1.0
          %v451 = vmul.f32 %v450, %v436
          %v452 = vand.u32 2147483647, %v436
          %vm453 = vcmp.lt.f32.partialorder %v452, 0.0004427343
          %v454 = vsel %vm453, %v451, %v448
          %v455 = vsub.f32 %v425, %v445
          %v456 = vsub.f32 %v434, %v454
          %v457 = vmul.f32 %v455, 0.5
          %v458 = vmul.f32 %v456, 0.5
          %v459 = vmul.f32 %v397, %v457
          %v460 = vmul.f32 %v412, %v458
          %v461 = vtanh.pop %v459
          %v462 = vtanh.pop %v460
          %464 = vset.pattern.permute.xlu0 0
          %465 = vperm.xlu0 %464, %v461
          %v466 = vpop.permute.xlu0 %465
          %469 = vset.pattern.permute.xlu0 0
          %470 = vperm.xlu0 %469, %v462
          %v471 = vpop.permute.xlu0 %470
          %v473 = vmul.f32 %v466, %v321
          %v474 = vmul.f32 %v471, %v322
          %v475 = vrcp.pop %v370
          %v476 = vmul.f32 %v370, %v475
          %v477 = vsub.f32 1.0, %v476
          %v478 = vmul.f32 %v475, %v477
          %v479 = vadd.f32 %v475, %v478
          %vm480 = vweird.f32 %v370
          %vm481 = vweird.f32 %v475
          %vm482 = vmor %vm480, %vm481
          %v483 = vsel %vm482, %v475, %v479
          %v484 = vand.u32 2147483647, %v370
          %vm485 = vcmp.eq.f32.partialorder %v484, 8.507059e+37
          %v486 = vand.u32 %v370, 2147483648
          %v487 = vor.u32 1.1754944e-38, %v486
          %v488 = vsel %vm485, %v487, %v483
          %v489 = vmul.f32 %v473, %v488
          %v490 = vrcp.pop %v382
          %v491 = vmul.f32 %v382, %v490
          %v492 = vsub.f32 1.0, %v491
          %v493 = vmul.f32 %v490, %v492
          %v494 = vadd.f32 %v490, %v493
          %vm495 = vweird.f32 %v382
          %vm496 = vweird.f32 %v490
          %vm497 = vmor %vm495, %vm496
          %v498 = vsel %vm497, %v490, %v494
          %v499 = vand.u32 2147483647, %v382
          %vm500 = vcmp.eq.f32.partialorder %v499, 8.507059e+37
          %v501 = vand.u32 %v382, 2147483648
          %v502 = vor.u32 1.1754944e-38, %v501
          %v503 = vsel %vm500, %v502, %v498
          %v504 = vmul.f32 %v474, %v503
          %v505 = vmul.f32 %v370, %v370
          %v506 = vmul.f32 %v382, %v382
          %vm507 = vcmp.le.f32.partialorder %v505, 1e-15
          %vm508 = vcmp.le.f32.partialorder %v506, 1e-15
          %v509 = vsel %vm507, 1, 0
          %v510 = vsel %vm508, 1, 0
          %vm511 = vcmp.eq.s32.totalorder %v509, 1
          %vm512 = vcmp.eq.s32.totalorder %v510, 1
          %v513 = vsel %vm511, 0.0, %v489
          %v514 = vsel %vm512, 0.0, %v504
          %v515 = vld [vmem:[%s2] sm:$0x1]
          %s516 = sld [smem:[#allocation4]]
          %v517 = vmul.f32 %v513, %v513
          %v518 = vmul.f32 %v514, %v514
          %519 = vadd.xlane.f32.xlu0 %v517
          %v520 = vpop.xlane.xlu0 %519
          %521 = vadd.xlane.f32.xlu0 %v518
          %v522 = vpop.xlane.xlu0 %521
          %v524 = vperm.slane %v515, 0
          %v526 = vmul.f32 %v513, %v524
          %v527 = vmul.f32 %v514, %v524
          %528 = vadd.xlane.f32.xlu0 %v526
          %v529 = vpop.xlane.xlu0 %528
          %530 = vadd.xlane.f32.xlu0 %v527
          %v531 = vpop.xlane.xlu0 %530
          %v532 = vmul.f32 %v529, 2.0
          %v533 = vmul.f32 %v531, 2.0
          %v534 = vadd.f32 %v532, 1.0
          %v535 = vadd.f32 %v533, 1.0
          %v536 = vstv %s516
          %v537 = vadd.f32 %v534, %v536
          %v538 = vadd.f32 %v535, %v536
          %v539 = vmul.f32 %v537, %v513
          %v540 = vmul.f32 %v538, %v514
          %v541 = vsub.f32 1.0, %v520
          %v542 = vsub.f32 1.0, %v522
          %v543 = vmul.f32 %v541, %v524
          %v544 = vmul.f32 %v542, %v524
          %v545 = vadd.f32 %v539, %v543
          %v546 = vadd.f32 %v540, %v544
          %v547 = vmul.f32 %v520, %v536
          %v548 = vmul.f32 %v522, %v536
          %v549 = vadd.f32 %v534, %v547
          %v550 = vadd.f32 %v535, %v548
          %v551 = vmax.f32 %v549, 1e-15
          %v552 = vmax.f32 %v550, 1e-15
          %v553 = vrcp.pop %v551
          %v554 = vmul.f32 %v551, %v553
          %v555 = vsub.f32 1.0, %v554
          %v556 = vmul.f32 %v553, %v555
          %v557 = vadd.f32 %v553, %v556
          %vm558 = vweird.f32 %v551
          %vm559 = vweird.f32 %v553
          %vm560 = vmor %vm558, %vm559
          %v561 = vsel %vm560, %v553, %v557
          %v562 = vand.u32 2147483647, %v551
          %vm563 = vcmp.eq.f32.partialorder %v562, 8.507059e+37
          %v564 = vand.u32 %v551, 2147483648
          %v565 = vor.u32 1.1754944e-38, %v564
          %v566 = vsel %vm563, %v565, %v561
          %v567 = vmul.f32 %v545, %v566
          %v568 = vrcp.pop %v552
          %v569 = vmul.f32 %v552, %v568
          %v570 = vsub.f32 1.0, %v569
          %v571 = vmul.f32 %v568, %v570
          %v572 = vadd.f32 %v568, %v571
          %vm573 = vweird.f32 %v552
          %vm574 = vweird.f32 %v568
          %vm575 = vmor %vm573, %vm574
          %v576 = vsel %vm575, %v568, %v572
          %v577 = vand.u32 2147483647, %v552
          %vm578 = vcmp.eq.f32.partialorder %v577, 8.507059e+37
          %v579 = vand.u32 %v552, 2147483648
          %v580 = vor.u32 1.1754944e-38, %v579
          %v581 = vsel %vm578, %v580, %v576
          %v582 = vmul.f32 %v546, %v581
          %v583 = vmul.f32 %v567, %v567
          %v584 = vmul.f32 %v582, %v582
          %585 = vadd.xlane.f32.xlu0 %v583
          %v586 = vpop.xlane.xlu0 %585
          %587 = vadd.xlane.f32.xlu0 %v584
          %v588 = vpop.xlane.xlu0 %587
          %v589 = vmax.f32 %v586, 1e-15
          %v590 = vmax.f32 %v588, 1e-15
          %v591 = vrsqrt.pop %v589
          %v592 = vmul.f32 %v591, %v589
          %v593 = vmul.f32 %v592, %v591
          %v594 = vmul.f32 0.5, %v593
          %v595 = vsub.f32 1.5, %v594
          %v596 = vmul.f32 %v591, %v595
          %v597 = vmul.f32 %v589, %v596
          %vm598 = vcmp.eq.f32.partialorder %v589, inf
          %v599 = vsel %vm598, %v589, %v597
          %vm600 = vcmp.eq.f32.partialorder %v589, 0.0
          %v601 = vand.u32 %v589, 2147483648
          %v602 = vsel %vm600, %v601, %v599
          %v603 = vrsqrt.pop %v590
          %v604 = vmul.f32 %v603, %v590
          %v605 = vmul.f32 %v604, %v603
          %v606 = vmul.f32 0.5, %v605
          %v607 = vsub.f32 1.5, %v606
          %v608 = vmul.f32 %v603, %v607
          %v609 = vmul.f32 %v590, %v608
          %vm610 = vcmp.eq.f32.partialorder %v590, inf
          %v611 = vsel %vm610, %v590, %v609
          %vm612 = vcmp.eq.f32.partialorder %v590, 0.0
          %v613 = vand.u32 %v590, 2147483648
          %v614 = vsel %vm612, %v613, %v611
          %v615 = vrcp.pop %v602
          %v616 = vmul.f32 %v602, %v615
          %v617 = vsub.f32 1.0, %v616
          %v618 = vmul.f32 %v615, %v617
          %v619 = vadd.f32 %v615, %v618
          %vm620 = vweird.f32 %v602
          %vm621 = vweird.f32 %v615
          %vm622 = vmor %vm620, %vm621
          %v623 = vsel %vm622, %v615, %v619
          %v624 = vand.u32 2147483647, %v602
          %vm625 = vcmp.eq.f32.partialorder %v624, 8.507059e+37
          %v626 = vand.u32 %v602, 2147483648
          %v627 = vor.u32 1.1754944e-38, %v626
          %v628 = vsel %vm625, %v627, %v623
          %v629 = vmul.f32 0.99999, %v628
          %v630 = vrcp.pop %v614
          %v631 = vmul.f32 %v614, %v630
          %v632 = vsub.f32 1.0, %v631
          %v633 = vmul.f32 %v630, %v632
          %v634 = vadd.f32 %v630, %v633
          %vm635 = vweird.f32 %v614
          %vm636 = vweird.f32 %v630
          %vm637 = vmor %vm635, %vm636
          %v638 = vsel %vm637, %v630, %v634
          %v639 = vand.u32 2147483647, %v614
          %vm640 = vcmp.eq.f32.partialorder %v639, 8.507059e+37
          %v641 = vand.u32 %v614, 2147483648
          %v642 = vor.u32 1.1754944e-38, %v641
          %v643 = vsel %vm640, %v642, %v638
          %v644 = vmul.f32 0.99999, %v643
          %v645 = vmul.f32 %v567, %v629
          %v646 = vmul.f32 %v582, %v644
          %vm647 = vcmp.gt.f32.partialorder %v602, 0.99999
          %vm648 = vcmp.gt.f32.partialorder %v614, 0.99999
          %v649 = vsel %vm647, 1, 0
          %v650 = vsel %vm648, 1, 0
          %vm651 = vcmp.eq.s32.totalorder %v649, 1
          %vm652 = vcmp.eq.s32.totalorder %v650, 1
          %v653 = vsel %vm651, %v645, %v567
          %v654 = vsel %vm652, %v646, %v582
          %v655 = vlaneseq
          %v656 = vand.u32 %v655, 127
          %vm657 = vcmp.lt.s32.totalorder %v656, 8
          %v658 = vsel %vm657, %v653, -1e+30
          %v659 = vsel %vm657, %v654, -1e+30
          %660 = vmax.xlane.f32.xlu0 %v658
          %v661 = vpop.xlane.xlu0 %660
          %662 = vmax.xlane.f32.xlu0 %v659
          %v663 = vpop.xlane.xlu0 %662
          %v664 = vsub.f32 %v658, %v661
          %v665 = vsub.f32 %v659, %v663
          %v666 = vmul.f32 %v664, 1.442695
          %v667 = vpow.pop %v666
          %v668 = vmul.f32 %v665, 1.442695
          %v669 = vpow.pop %v668
          %670 = vadd.xlane.f32.xlu0 %v667
          %v671 = vpop.xlane.xlu0 %670
          %672 = vadd.xlane.f32.xlu0 %v669
          %v673 = vpop.xlane.xlu0 %672
          %v674 = vlog2.pop %v671
          %v675 = vmul.f32 %v674, 0.6931472
          %v676 = vlog2.pop %v673
          %v677 = vmul.f32 %v676, 0.6931472
          %v678 = vsub.f32 %v664, %v675
          %v679 = vsub.f32 %v665, %v677
          %680 = vst [vmem:[%s237] sm:$0xff] %v678
          %681 = vst [vmem:[%s237 + $0x8] sm:$0xff] %v679
        $region48: #{run.9} parent=35 // pred_fallthru
          _
        %s682 = sand.u32 %s136, 1
        %s683 = scalar_lea.sflag [#allocation7], %s682
        %s684 = sand.u32 %s136, 1
        %s685 = smul.addr %s684, 16
        %s686 = scalar_lea.vmem [#allocation8], %s685
        // Predicated region
        $region49: #{run.9} parent=35 // pred_check
          %p687 = pneg %p146
        $region50: #{run.9} parent=35 // pred_check_branch
          %689 = sbr.rel (%p687) target = $region52
        $region51: #{run.9} parent=35 // pred_region
          %s690 = smul.u32 2, %s24
          %692 = vsyncadd %s683, 0
          %s693 = smul.addr %s690, 8
          %s694 = scalar_lea.hbm %s4, %s693
          %s695 = sshll.u32 %s686, 4
          %s696 = int_to_ptr.vmem [resolvable:$true] %s695
          %s697 = sshll.u32 %s694, 4
          %s698 = int_to_ptr.hbm [resolvable:$true] %s697
          %703 = dma.vmem_to_hbm [thread:$0]  %s696, 256, %s698, %s683, 128, 128, 8
        $region52: #{run.9} parent=35 // pred_fallthru
          _
      $region36: #{run.9} parent=5 // pred_fallthru
        _
      %p704 = scmp.le.s32.totalorder 2, %s15
      // Predicated region
      $region53: #{run.9} parent=5 // pred_check
        %p705 = pneg %p704
      $region54: #{run.9} parent=5 // pred_check_branch
        %707 = sbr.rel (%p705) target = $region56
      $region55: #{run.9} parent=5 // pred_region
        %s708 = ssub.s32 %s15, 2
        // Predicated region
        $region57: #{run.9} parent=55 // pred_check
          %p709 = pneg %p152
        $region58: #{run.9} parent=55 // pred_check_branch
          %711 = sbr.rel (%p709) target = $region60
        $region59: #{run.9} parent=55 // pred_region
          %s712 = sand.u32 %s137, 1
          %s713 = scalar_lea.sflag [#allocation7], %s712
          %s714 = sand.u32 %s137, 1
          %s715 = smul.addr %s714, 16
          %s716 = scalar_lea.vmem [#allocation8], %s715
          %718 = dma.done %s713, 256
        $region60: #{run.9} parent=55 // pred_fallthru
          _
      $region56: #{run.9} parent=5 // pred_fallthru
        _
    $region6: #{run.9} parent=1 // loop_footer
      %s19 = sadd.s32 1, %s15
    $region7: #{run.9} parent=1 // loop_footer_branch
      %14 = sbr.rel target = $region3
    $region8: #{run.9} parent=1 // loop_exit
      _
    %719 = vsyncpa [#allocation6], 1
    %s720 = scalar_lea.sflag [#allocation6], 1
    %721 = vsyncpa %s720, 1
    %722 = vsyncpa [#allocation7], 1
    %s723 = scalar_lea.sflag [#allocation7], 1
    %724 = vsyncpa %s723, 1

// kernel: run.6
$region0: #{run.6}
  #allocation0 [shape = 'u32[]', space=smem, size = 0x4, offset = 0x4, fixed_abs, tag = 'smem constant byte address 0x4 - core index']
  #allocation1 [shape = 'u32[72,128]{1,0:T(1,128)}', space=vmem, size = 0x9000, scoped, tag = 'internal scratch']
  #allocation2 [shape = 'f32[16,128]{1,0:T(8,128)}', space=vmem, size = 0x2000, scoped, tag = 'scratch operand']
  %s0 = inlined_call_operand.vmem [shape: bf16[32,128], index: 0, kind: input, shape index: {}]
  %s1 = inlined_call_operand.hbm [shape: bf16[32,32], index: 1, kind: input, shape index: {}]
  %s2 = inlined_call_operand.vmem [shape: f32[32,128], index: 2, kind: input, shape index: {}]
  %s3 = inlined_call_operand.vmem [shape: f32[32,128], index: 3, kind: output, shape index: {}]
  %s4 = sld [smem:[#allocation0]]
  $region57: #{run.6} parent=0
    _
  %s6 = ssub.s32 1, %s4
  %s7 = scalar_select 0, %s6, %s4
  $region1: #{run.6} parent=0
    #allocation3 [shape = 'u8[8192]{0}', space=vmem, size = 0x2000, scoped, tag = 'input window, operand 1']
    #allocation4 [shape = 's32[2]{0}', space=sflag, size = 0x8, scoped, tag = 'scoped memory for run.6']
    %8 = vsyncpa [#allocation4], 0
    %s9 = scalar_lea.sflag [#allocation4], 1
    %10 = vsyncpa %s9, 0
    loop: start=0, step=1, limit=4
    $region2: #{run.6} parent=1 // loop_pre_header
      _
    $region3: #{run.6} parent=1 // loop_header
      %s12 = sphi 0, %s16
      %p13 = scmp.ge.s32.totalorder %s12, 4
      %s19 = sphi 0, %s31
      %s20 = sphi 0, %s27
      %s21 = sphi 0, %s19
      %s22 = sphi 0, %s20
      %s23 = sphi 0, %s21
      %s24 = sphi 0, %s22
      %s34 = sphi 0, %s36
      %s37 = sphi 0, %s34
      %s38 = sphi 0, %s37
      %s54 = sphi 0, %s38
      %s62 = sphi 0, %s64
      %s65 = sphi 0, %s62
      %s66 = sphi 0, %s65
      %s82 = sphi 0, %s66
      %s88 = sphi 0, %s90
      %s91 = sphi 0, %s88
      %s92 = sphi 0, %s91
      %s108 = sphi 0, %s92
      %s114 = sphi 0, %s116
      %s117 = sphi 0, %s114
      %s118 = sphi 0, %s117
      %s134 = sphi 0, %s118
    $region4: #{run.6} parent=1 // loop_header_branch
      %15 = sbr.rel (%p13) target = $region8
    $region5: #{run.6} parent=1 // loop_body
      %s17 = ssub.s32 %s12, 1
      %s18 = ssub.s32 %s12, 2
      %s25 = sadd.s32 1, %s20
      %p26 = scmp.ge.s32.totalorder %s25, 1
      %s27 = scalar_select %p26, 0, %s25
      %s28 = sadd.s32 1, %s19
      %s29 = scalar_select %p26, %s28, %s19
      %p30 = scmp.ge.s32.totalorder %s29, 2
      %s31 = scalar_select %p30, 0, %s29
      %s32 = ssub.s32 %s20, %s27
      %p33 = scmp.eq.s32.totalorder %s32, 0
      %s35 = sadd.s32 %s34, 1
      %s36 = scalar_select %p33, %s34, %s35
      %p39 = pneg %p33
      %p40 = scmp.eq.s32.totalorder %s12, 1
      %p41 = por %p39, %p40
      %p42 = scmp.ne.s32.totalorder %s34, %s37
      %p43 = scmp.eq.s32.totalorder %s12, 0
      %p44 = por %p42, %p43
      %p45 = scmp.ne.s32.totalorder %s34, %s37
      %p46 = scmp.eq.s32.totalorder %s17, 1
      %p47 = por %p45, %p46
      %p48 = scmp.ne.s32.totalorder %s37, %s38
      %p49 = scmp.eq.s32.totalorder %s17, 0
      %p50 = por %p48, %p49
      %p51 = scmp.ne.s32.totalorder %s37, %s38
      %p52 = scmp.eq.s32.totalorder %s18, 1
      %p53 = por %p51, %p52
      %p55 = scmp.ne.s32.totalorder %s38, %s54
      %p56 = scmp.eq.s32.totalorder %s18, 0
      %p57 = por %p55, %p56
      %s58 = ssub.s32 %s19, %s31
      %s59 = ssub.s32 %s20, %s27
      %s60 = sor.u32 %s58, %s59
      %p61 = scmp.eq.s32.totalorder %s60, 0
      %s63 = sadd.s32 %s62, 1
      %s64 = scalar_select %p61, %s62, %s63
      %p67 = pneg %p61
      %p68 = scmp.eq.s32.totalorder %s12, 1
      %p69 = por %p67, %p68
      %p70 = scmp.ne.s32.totalorder %s62, %s65
      %p71 = scmp.eq.s32.totalorder %s12, 0
      %p72 = por %p70, %p71
      %p73 = scmp.ne.s32.totalorder %s62, %s65
      %p74 = scmp.eq.s32.totalorder %s17, 1
      %p75 = por %p73, %p74
      %p76 = scmp.ne.s32.totalorder %s65, %s66
      %p77 = scmp.eq.s32.totalorder %s17, 0
      %p78 = por %p76, %p77
      %p79 = scmp.ne.s32.totalorder %s65, %s66
      %p80 = scmp.eq.s32.totalorder %s18, 1
      %p81 = por %p79, %p80
      %p83 = scmp.ne.s32.totalorder %s66, %s82
      %p84 = scmp.eq.s32.totalorder %s18, 0
      %p85 = por %p83, %p84
      %s86 = ssub.s32 %s19, %s31
      %p87 = scmp.eq.s32.totalorder %s86, 0
      %s89 = sadd.s32 %s88, 1
      %s90 = scalar_select %p87, %s88, %s89
      %p93 = pneg %p87
      %p94 = scmp.eq.s32.totalorder %s12, 1
      %p95 = por %p93, %p94
      %p96 = scmp.ne.s32.totalorder %s88, %s91
      %p97 = scmp.eq.s32.totalorder %s12, 0
      %p98 = por %p96, %p97
      %p99 = scmp.ne.s32.totalorder %s88, %s91
      %p100 = scmp.eq.s32.totalorder %s17, 1
      %p101 = por %p99, %p100
      %p102 = scmp.ne.s32.totalorder %s91, %s92
      %p103 = scmp.eq.s32.totalorder %s17, 0
      %p104 = por %p102, %p103
      %p105 = scmp.ne.s32.totalorder %s91, %s92
      %p106 = scmp.eq.s32.totalorder %s18, 1
      %p107 = por %p105, %p106
      %p109 = scmp.ne.s32.totalorder %s92, %s108
      %p110 = scmp.eq.s32.totalorder %s18, 0
      %p111 = por %p109, %p110
      %s112 = ssub.s32 %s19, %s31
      %p113 = scmp.eq.s32.totalorder %s112, 0
      %s115 = sadd.s32 %s114, 1
      %s116 = scalar_select %p113, %s114, %s115
      %p119 = pneg %p113
      %p120 = scmp.eq.s32.totalorder %s12, 1
      %p121 = por %p119, %p120
      %p122 = scmp.ne.s32.totalorder %s114, %s117
      %p123 = scmp.eq.s32.totalorder %s12, 0
      %p124 = por %p122, %p123
      %p125 = scmp.ne.s32.totalorder %s114, %s117
      %p126 = scmp.eq.s32.totalorder %s17, 1
      %p127 = por %p125, %p126
      %p128 = scmp.ne.s32.totalorder %s117, %s118
      %p129 = scmp.eq.s32.totalorder %s17, 0
      %p130 = por %p128, %p129
      %p131 = scmp.ne.s32.totalorder %s117, %s118
      %p132 = scmp.eq.s32.totalorder %s18, 1
      %p133 = por %p131, %p132
      %p135 = scmp.ne.s32.totalorder %s118, %s134
      %p136 = scmp.eq.s32.totalorder %s18, 0
      %p137 = por %p135, %p136
      %p138 = scmp.le.s32.totalorder 1, %s12
      %p139 = scmp.lt.s32.totalorder %s12, 3
      %p140 = pnand %p138, %p139
      %p141 = pneg %p140
      // Predicated region
      $region9: #{run.6} parent=5 // pred_check
        _
      $region10: #{run.6} parent=5 // pred_check_branch
        %143 = sbr.rel (%p140) target = $region12
      $region11: #{run.6} parent=5 // pred_region
        %s144 = ssub.s32 %s12, 1
        // Predicated region
        $region13: #{run.6} parent=11 // pred_check
          %p145 = pneg %p50
        $region14: #{run.6} parent=11 // pred_check_branch
          %147 = sbr.rel (%p145) target = $region16
        $region15: #{run.6} parent=11 // pred_region
          %s148 = smul.u32 4, %s22
          %p149 = scmp.lt.s32.totalorder %s148, 3
          %s150 = scalar_select %p149, %s148, 3
          %s151 = smul.addr %s150, 4
          %s152 = scalar_lea.vmem %s0, %s151
          %s153 = smul.u32 4, %s22
        $region16: #{run.6} parent=11 // pred_fallthru
          _
      $region12: #{run.6} parent=5 // pred_fallthru
        _
      %p154 = scmp.lt.s32.totalorder %s12, 2
      // Predicated region
      $region17: #{run.6} parent=5 // pred_check
        %p155 = pneg %p154
      $region18: #{run.6} parent=5 // pred_check_branch
        %157 = sbr.rel (%p155) target = $region20
      $region19: #{run.6} parent=5 // pred_region
        // Predicated region
        $region21: #{run.6} parent=19 // pred_check
          %p158 = pneg %p72
        $region22: #{run.6} parent=19 // pred_check_branch
          %160 = sbr.rel (%p158) target = $region24
        $region23: #{run.6} parent=19 // pred_region
          %s161 = sand.u32 %s62, 1
          %s162 = scalar_lea.sflag [#allocation4], %s161
          %s163 = sand.u32 %s62, 1
          %s164 = smul.addr %s163, 8
          %s165 = scalar_lea.vmem [#allocation3], %s164
          %s166 = smul.u32 2, %s19
          %168 = vsyncadd %s162, 0
          %s169 = sadd.s32 %s20, %s166
          %s170 = smul.addr %s169, 4
          %s171 = scalar_lea.hbm %s1, %s170
          %s172 = sshll.u32 %s171, 4
          %s173 = int_to_ptr.hbm [resolvable:$true] %s172
          %s174 = sshll.u32 %s165, 4
          %s175 = int_to_ptr.vmem [resolvable:$true] %s174
          %180 = dma.hbm_to_vmem [thread:$0]  %s173, 128, %s175, %s162, 64, 64, 4
        $region24: #{run.6} parent=19 // pred_fallthru
          _
        // Predicated region
        $region25: #{run.6} parent=19 // pred_check
          %p181 = pneg %p98
        $region26: #{run.6} parent=19 // pred_check_branch
          %183 = sbr.rel (%p181) target = $region28
        $region27: #{run.6} parent=19 // pred_region
          %s184 = smul.u32 2, %s19
          %p185 = scmp.lt.s32.totalorder %s184, 3
          %s186 = scalar_select %p185, %s184, 3
          %s187 = smul.addr %s186, 8
          %s188 = scalar_lea.vmem %s2, %s187
          %s189 = smul.u32 2, %s19
        $region28: #{run.6} parent=19 // pred_fallthru
          _
      $region20: #{run.6} parent=5 // pred_fallthru
        _
      %p190 = scmp.le.s32.totalorder 1, %s12
      %p191 = scmp.lt.s32.totalorder %s12, 3
      %p192 = pnand %p190, %p191
      %p193 = pneg %p192
      // Predicated region
      $region29: #{run.6} parent=5 // pred_check
        _
      $region30: #{run.6} parent=5 // pred_check_branch
        %195 = sbr.rel (%p192) target = $region32
      $region31: #{run.6} parent=5 // pred_region
        %s196 = ssub.s32 %s12, 1
        %s197 = sand.u32 %s65, 1
        %s198 = scalar_lea.sflag [#allocation4], %s197
        %s199 = sand.u32 %s65, 1
        %s200 = smul.addr %s199, 8
        %s201 = scalar_lea.vmem [#allocation3], %s200
        // Predicated region
        $region33: #{run.6} parent=31 // pred_check
          %p202 = pneg %p78
        $region34: #{run.6} parent=31 // pred_check_branch
          %204 = sbr.rel (%p202) target = $region36
        $region35: #{run.6} parent=31 // pred_region
          %206 = dma.done %s198, 128
        $region36: #{run.6} parent=31 // pred_fallthru
          _
        %s207 = smul.u32 4, %s22
        %p208 = scmp.lt.s32.totalorder %s207, 3
        %s209 = scalar_select %p208, %s207, 3
        %s210 = smul.addr %s209, 4
        %s211 = scalar_lea.vmem %s0, %s210
        %p212 = pneg %p50
        %p213 = pneg %p47
        %s214 = sand.u32 %s65, 1
        %s215 = scalar_lea.sflag [#allocation4], %s214
        %s216 = sand.u32 %s65, 1
        %s217 = smul.addr %s216, 8
        %s218 = scalar_lea.vmem [#allocation3], %s217
        %p219 = pneg %p78
        %p220 = pneg %p75
        %s221 = smul.u32 2, %s21
        %p222 = scmp.lt.s32.totalorder %s221, 3
        %s223 = scalar_select %p222, %s221, 3
        %s224 = smul.addr %s223, 8
        %s225 = scalar_lea.vmem %s2, %s224
        %p226 = pneg %p104
        %p227 = pneg %p101
        %p228 = pneg %p130
        %p229 = pneg %p127
        %s230 = smul.u32 2, %s21
        %p231 = scmp.lt.s32.totalorder %s230, 3
        %s232 = scalar_select %p231, %s230, 3
        %s233 = smul.addr %s232, 8
        %s234 = scalar_lea.vmem %s3, %s233
        %s235 = smul.u32 4, %s22
        %p236 = scmp.lt.s32.totalorder %s235, 3
        %s237 = scalar_select %p236, %s235, 3
        %s238 = smul.addr %s237, 4
        %s239 = scalar_lea.vmem %s0, %s238
        %s240 = smul.u32 4, %s22
        %s241 = smul.u32 2, %s21
        %s242 = smul.u32 2, %s21
        %p243 = scmp.lt.s32.totalorder %s242, 3
        %s244 = scalar_select %p243, %s242, 3
        %s245 = smul.addr %s244, 8
        %s246 = scalar_lea.vmem %s2, %s245
        %s247 = smul.u32 2, %s21
        %s248 = smul.u32 2, %s21
        %p249 = scmp.lt.s32.totalorder %s248, 3
        %s250 = scalar_select %p249, %s248, 3
        %s251 = smul.addr %s250, 8
        %s252 = scalar_lea.vmem %s3, %s251
        %s253 = smul.u32 2, %s21
        %p255 = scmp.eq.s32.totalorder %s22, 0
        // Predicated region
        $region37: #{run.6} parent=31 // pred_check
          %p256 = pneg %p255
        $region38: #{run.6} parent=31 // pred_check_branch
          %258 = sbr.rel (%p256) target = $region40
        $region39: #{run.6} parent=31 // pred_region
          %259 = vst [vmem:[#allocation2] sm:$0xff] 0.0
          %260 = vst [vmem:[#allocation2 + $0x8] sm:$0xff] 0.0
        $region40: #{run.6} parent=31 // pred_fallthru
          _
        %v261 = vld [vmem:[#allocation2] sm:$0xff]
        %v262 = vld [vmem:[#allocation2 + $0x8] sm:$0xff]
        %v263 = vld [vmem:[%s201] sm:$0xf]
        %v264 = vld [vmem:[%s201 + $0x4] sm:$0xf]
        %v265 = vld [vmem:[%s239] sm:$0xf]
        %v266 = vld [vmem:[%s239 + $0x4] sm:$0xf]
        %v267 = vld [vmem:[%s239 + $0x8] sm:$0xf]
        %v268 = vld [vmem:[%s239 + $0xc] sm:$0xf]
        %v271 = vunpack.c.l.b16 %v263
        %v272 = vunpack.c.l.b16 %v264
        %v273 = vpack.c.b16 %v272, %v271
        %v278 = vunpack.c.l.b16 %v265
        %v279 = vunpack.c.l.b16 %v266
        %v280 = vunpack.c.l.b16 %v267
        %v281 = vunpack.c.l.b16 %v268
        %v282 = vpack.c.b16 %v279, %v278
        %v283 = vpack.c.b16 %v281, %v280
        %vm286 = vcmask 261120
        %v288 = vsel %vm286, %v273, 0
        %290 = vmatpush.bf16.msra.mxu0 0
        %291 = vmatpush.bf16.msra.mxu0 0
        %292 = vmatpush.bf16.msra.mxu0 0
        %293 = vmatpush.bf16.msra.mxu0 0
        %294 = vmatpush.bf16.msra.mxu0 0
        %295 = vmatpush.bf16.msra.mxu0 0
        %296 = vmatpush.bf16.msra.mxu0 %v283
        %297 = vmatpush.bf16.msra.mxu0 %v282
        %298 = vmatmul.bf16.gmra.mxu0 %v288
        %v299 = vpop.f32.mrf.mxu0
        %v300 = vadd.f32 0.0, %v299
        %v301 = vpop.f32.mrf.mxu0
        %v302 = vadd.f32 0.0, %v301
        %303 = vdwg.mxu0
        %v304 = vadd.f32 %v261, %v300
        %v305 = vadd.f32 %v262, %v302
        %306 = vst [vmem:[#allocation2] sm:$0xff] %v304
        %307 = vst [vmem:[#allocation2 + $0x8] sm:$0xff] %v305
        // Predicated region
        $region41: #{run.6} parent=31 // pred_check
          %p308 = pneg %p255
        $region42: #{run.6} parent=31 // pred_check_branch
          %310 = sbr.rel (%p308) target = $region44
        $region43: #{run.6} parent=31 // pred_region
          %v311 = vld [vmem:[#allocation2] sm:$0xff]
          %v312 = vld [vmem:[#allocation2 + $0x8] sm:$0xff]
          %v313 = vlaneseq
          %v314 = vand.u32 %v313, 127
          %vm315 = vcmp.lt.s32.totalorder %v314, 32
          %v316 = vsel %vm315, 1, 0
          %v317 = vcvt.s32.f32 %v316
          %v318 = vmul.f32 %v311, %v317
          %v319 = vmul.f32 %v312, %v317
          %vm320 = vcmp.ge.f32.partialorder %v311, 0.0
          %vm321 = vcmp.ge.f32.partialorder %v312, 0.0
          %v322 = vsel %vm320, 1.0, -1.0
          %v323 = vsel %vm321, 1.0, -1.0
          %v324 = vand.u32 2147483647, %v311
          %v325 = vand.u32 2147483647, %v312
          %v326 = vmax.f32 %v324, 1e-10
          %v327 = vmax.f32 %v325, 1e-10
          %v328 = vmul.f32 %v322, %v326
          %v329 = vmul.f32 %v323, %v327
          %331 = vset.pattern.permute.xlu0 32
          %332 = vperm.xlu0 %331, %v328
          %v333 = vpop.permute.xlu0 %332
          %336 = vset.pattern.permute.xlu0 32
          %337 = vperm.xlu0 %336, %v329
          %v338 = vpop.permute.xlu0 %337
          %v340 = vrcp.pop %v333
          %v341 = vmul.f32 %v333, %v340
          %v342 = vsub.f32 1.0, %v341
          %v343 = vmul.f32 %v340, %v342
          %v344 = vadd.f32 %v340, %v343
          %vm345 = vweird.f32 %v333
          %vm346 = vweird.f32 %v340
          %vm347 = vmor %vm345, %vm346
          %v348 = vsel %vm347, %v340, %v344
          %v349 = vand.u32 2147483647, %v333
          %vm350 = vcmp.eq.f32.partialorder %v349, 8.507059e+37
          %v351 = vand.u32 %v333, 2147483648
          %v352 = vor.u32 1.1754944e-38, %v351
          %v353 = vsel %vm350, %v352, %v348
          %v354 = vmul.f32 %v318, %v353
          %v355 = vrcp.pop %v338
          %v356 = vmul.f32 %v338, %v355
          %v357 = vsub.f32 1.0, %v356
          %v358 = vmul.f32 %v355, %v357
          %v359 = vadd.f32 %v355, %v358
          %vm360 = vweird.f32 %v338
          %vm361 = vweird.f32 %v355
          %vm362 = vmor %vm360, %vm361
          %v363 = vsel %vm362, %v355, %v359
          %v364 = vand.u32 2147483647, %v338
          %vm365 = vcmp.eq.f32.partialorder %v364, 8.507059e+37
          %v366 = vand.u32 %v338, 2147483648
          %v367 = vor.u32 1.1754944e-38, %v366
          %v368 = vsel %vm365, %v367, %v363
          %v369 = vmul.f32 %v319, %v368
          %v370 = vmul.f32 %v354, %v354
          %v371 = vmul.f32 %v369, %v369
          %372 = vadd.xlane.f32.xlu0 %v370
          %v373 = vpop.xlane.xlu0 %372
          %374 = vadd.xlane.f32.xlu0 %v371
          %v375 = vpop.xlane.xlu0 %374
          %v376 = vmax.f32 %v373, 1e-15
          %v377 = vmax.f32 %v375, 1e-15
          %v378 = vrsqrt.pop %v376
          %v379 = vmul.f32 %v378, %v376
          %v380 = vmul.f32 %v379, %v378
          %v381 = vmul.f32 0.5, %v380
          %v382 = vsub.f32 1.5, %v381
          %v383 = vmul.f32 %v378, %v382
          %v384 = vmul.f32 %v376, %v383
          %vm385 = vcmp.eq.f32.partialorder %v376, inf
          %v386 = vsel %vm385, %v376, %v384
          %vm387 = vcmp.eq.f32.partialorder %v376, 0.0
          %v388 = vand.u32 %v376, 2147483648
          %v389 = vsel %vm387, %v388, %v386
          %v390 = vrsqrt.pop %v377
          %v391 = vmul.f32 %v390, %v377
          %v392 = vmul.f32 %v391, %v390
          %v393 = vmul.f32 0.5, %v392
          %v394 = vsub.f32 1.5, %v393
          %v395 = vmul.f32 %v390, %v394
          %v396 = vmul.f32 %v377, %v395
          %vm397 = vcmp.eq.f32.partialorder %v377, inf
          %v398 = vsel %vm397, %v377, %v396
          %vm399 = vcmp.eq.f32.partialorder %v377, 0.0
          %v400 = vand.u32 %v377, 2147483648
          %v401 = vsel %vm399, %v400, %v398
          %v402 = vmax.f32 %v389, -0.9999999
          %v403 = vmax.f32 %v401, -0.9999999
          %v404 = vmin.f32 %v402, 0.9999999
          %v405 = vmin.f32 %v403, 0.9999999
          %v406 = vadd.f32 %v404, 1.0
          %v407 = vlog2.pop %v406
          %v408 = vmul.f32 %v407, 0.6931472
          %v409 = vmul.f32 -0.5, %v404
          %v410 = vadd.f32 %v409, 1.0
          %v411 = vmul.f32 %v410, %v404
          %v412 = vand.u32 2147483647, %v404
          %vm413 = vcmp.lt.f32.partialorder %v412, 0.0004427343
          %v414 = vsel %vm413, %v411, %v408
          %v415 = vadd.f32 %v405, 1.0
          %v416 = vlog2.pop %v415
          %v417 = vmul.f32 %v416, 0.6931472
          %v418 = vmul.f32 -0.5, %v405
          %v419 = vadd.f32 %v418, 1.0
          %v420 = vmul.f32 %v419, %v405
          %v421 = vand.u32 2147483647, %v405
          %vm422 = vcmp.lt.f32.partialorder %v421, 0.0004427343
          %v423 = vsel %vm422, %v420, %v417
          %v424 = vsub.f32 0.0, %v404
          %v425 = vsub.f32 0.0, %v405
          %v426 = vadd.f32 %v424, 1.0
          %v427 = vlog2.pop %v426
          %v428 = vmul.f32 %v427, 0.6931472
          %v429 = vmul.f32 -0.5, %v424
          %v430 = vadd.f32 %v429, 1.0
          %v431 = vmul.f32 %v430, %v424
          %v432 = vand.u32 2147483647, %v424
          %vm433 = vcmp.lt.f32.partialorder %v432, 0.0004427343
          %v434 = vsel %vm433, %v431, %v428
          %v435 = vadd.f32 %v425, 1.0
          %v436 = vlog2.pop %v435
          %v437 = vmul.f32 %v436, 0.6931472
          %v438 = vmul.f32 -0.5, %v425
          %v439 = vadd.f32 %v438, 1.0
          %v440 = vmul.f32 %v439, %v425
          %v441 = vand.u32 2147483647, %v425
          %vm442 = vcmp.lt.f32.partialorder %v441, 0.0004427343
          %v443 = vsel %vm442, %v440, %v437
          %v444 = vsub.f32 %v414, %v434
          %v445 = vsub.f32 %v423, %v443
          %v446 = vmul.f32 %v444, 0.5
          %v447 = vmul.f32 %v445, 0.5
          %v448 = vmul.f32 %v446, 0.5
          %v449 = vmul.f32 %v447, 0.5
          %v450 = vtanh.pop %v448
          %v451 = vtanh.pop %v449
          %v452 = vmul.f32 %v450, %v354
          %v453 = vmul.f32 %v451, %v369
          %v454 = vrcp.pop %v389
          %v455 = vmul.f32 %v389, %v454
          %v456 = vsub.f32 1.0, %v455
          %v457 = vmul.f32 %v454, %v456
          %v458 = vadd.f32 %v454, %v457
          %vm459 = vweird.f32 %v389
          %vm460 = vweird.f32 %v454
          %vm461 = vmor %vm459, %vm460
          %v462 = vsel %vm461, %v454, %v458
          %v463 = vand.u32 2147483647, %v389
          %vm464 = vcmp.eq.f32.partialorder %v463, 8.507059e+37
          %v465 = vand.u32 %v389, 2147483648
          %v466 = vor.u32 1.1754944e-38, %v465
          %v467 = vsel %vm464, %v466, %v462
          %v468 = vmul.f32 %v452, %v467
          %v469 = vrcp.pop %v401
          %v470 = vmul.f32 %v401, %v469
          %v471 = vsub.f32 1.0, %v470
          %v472 = vmul.f32 %v469, %v471
          %v473 = vadd.f32 %v469, %v472
          %vm474 = vweird.f32 %v401
          %vm475 = vweird.f32 %v469
          %vm476 = vmor %vm474, %vm475
          %v477 = vsel %vm476, %v469, %v473
          %v478 = vand.u32 2147483647, %v401
          %vm479 = vcmp.eq.f32.partialorder %v478, 8.507059e+37
          %v480 = vand.u32 %v401, 2147483648
          %v481 = vor.u32 1.1754944e-38, %v480
          %v482 = vsel %vm479, %v481, %v477
          %v483 = vmul.f32 %v453, %v482
          %v484 = vmul.f32 %v468, %v468
          %v485 = vmul.f32 %v483, %v483
          %486 = vadd.xlane.f32.xlu0 %v484
          %v487 = vpop.xlane.xlu0 %486
          %488 = vadd.xlane.f32.xlu0 %v485
          %v489 = vpop.xlane.xlu0 %488
          %v490 = vmax.f32 %v487, 1e-15
          %v491 = vmax.f32 %v489, 1e-15
          %v492 = vrsqrt.pop %v490
          %v493 = vmul.f32 %v492, %v490
          %v494 = vmul.f32 %v493, %v492
          %v495 = vmul.f32 0.5, %v494
          %v496 = vsub.f32 1.5, %v495
          %v497 = vmul.f32 %v492, %v496
          %v498 = vmul.f32 %v490, %v497
          %vm499 = vcmp.eq.f32.partialorder %v490, inf
          %v500 = vsel %vm499, %v490, %v498
          %vm501 = vcmp.eq.f32.partialorder %v490, 0.0
          %v502 = vand.u32 %v490, 2147483648
          %v503 = vsel %vm501, %v502, %v500
          %v504 = vrsqrt.pop %v491
          %v505 = vmul.f32 %v504, %v491
          %v506 = vmul.f32 %v505, %v504
          %v507 = vmul.f32 0.5, %v506
          %v508 = vsub.f32 1.5, %v507
          %v509 = vmul.f32 %v504, %v508
          %v510 = vmul.f32 %v491, %v509
          %vm511 = vcmp.eq.f32.partialorder %v491, inf
          %v512 = vsel %vm511, %v491, %v510
          %vm513 = vcmp.eq.f32.partialorder %v491, 0.0
          %v514 = vand.u32 %v491, 2147483648
          %v515 = vsel %vm513, %v514, %v512
          %v516 = vrcp.pop %v503
          %v517 = vmul.f32 %v503, %v516
          %v518 = vsub.f32 1.0, %v517
          %v519 = vmul.f32 %v516, %v518
          %v520 = vadd.f32 %v516, %v519
          %vm521 = vweird.f32 %v503
          %vm522 = vweird.f32 %v516
          %vm523 = vmor %vm521, %vm522
          %v524 = vsel %vm523, %v516, %v520
          %v525 = vand.u32 2147483647, %v503
          %vm526 = vcmp.eq.f32.partialorder %v525, 8.507059e+37
          %v527 = vand.u32 %v503, 2147483648
          %v528 = vor.u32 1.1754944e-38, %v527
          %v529 = vsel %vm526, %v528, %v524
          %v530 = vmul.f32 0.99999, %v529
          %v531 = vrcp.pop %v515
          %v532 = vmul.f32 %v515, %v531
          %v533 = vsub.f32 1.0, %v532
          %v534 = vmul.f32 %v531, %v533
          %v535 = vadd.f32 %v531, %v534
          %vm536 = vweird.f32 %v515
          %vm537 = vweird.f32 %v531
          %vm538 = vmor %vm536, %vm537
          %v539 = vsel %vm538, %v531, %v535
          %v540 = vand.u32 2147483647, %v515
          %vm541 = vcmp.eq.f32.partialorder %v540, 8.507059e+37
          %v542 = vand.u32 %v515, 2147483648
          %v543 = vor.u32 1.1754944e-38, %v542
          %v544 = vsel %vm541, %v543, %v539
          %v545 = vmul.f32 0.99999, %v544
          %v546 = vmul.f32 %v468, %v530
          %v547 = vmul.f32 %v483, %v545
          %vm548 = vcmp.gt.f32.partialorder %v503, 0.99999
          %vm549 = vcmp.gt.f32.partialorder %v515, 0.99999
          %v550 = vsel %vm548, 1, 0
          %v551 = vsel %vm549, 1, 0
          %vm552 = vcmp.eq.s32.totalorder %v550, 1
          %vm553 = vcmp.eq.s32.totalorder %v551, 1
          %v554 = vsel %vm552, %v546, %v468
          %v555 = vsel %vm553, %v547, %v483
          %v556 = vld [vmem:[%s246] sm:$0xff]
          %v557 = vld [vmem:[%s246 + $0x8] sm:$0xff]
          %v558 = vmul.f32 %v554, %v554
          %v559 = vmul.f32 %v555, %v555
          %560 = vadd.xlane.f32.xlu0 %v558
          %v561 = vpop.xlane.xlu0 %560
          %562 = vadd.xlane.f32.xlu0 %v559
          %v563 = vpop.xlane.xlu0 %562
          %v564 = vsub.f32 1.0, %v561
          %v565 = vsub.f32 1.0, %v563
          %v566 = vmax.f32 %v564, 1e-15
          %v567 = vmax.f32 %v565, 1e-15
          %v568 = vrcp.pop %v566
          %v569 = vmul.f32 %v566, %v568
          %v570 = vsub.f32 1.0, %v569
          %v571 = vmul.f32 %v568, %v570
          %v572 = vadd.f32 %v568, %v571
          %vm573 = vweird.f32 %v566
          %vm574 = vweird.f32 %v568
          %vm575 = vmor %vm573, %vm574
          %v576 = vsel %vm575, %v568, %v572
          %v577 = vand.u32 2147483647, %v566
          %vm578 = vcmp.eq.f32.partialorder %v577, 8.507059e+37
          %v579 = vand.u32 %v566, 2147483648
          %v580 = vor.u32 1.1754944e-38, %v579
          %v581 = vsel %vm578, %v580, %v576
          %v582 = vmul.f32 2.0, %v581
          %v583 = vrcp.pop %v567
          %v584 = vmul.f32 %v567, %v583
          %v585 = vsub.f32 1.0, %v584
          %v586 = vmul.f32 %v583, %v585
          %v587 = vadd.f32 %v583, %v586
          %vm588 = vweird.f32 %v567
          %vm589 = vweird.f32 %v583
          %vm590 = vmor %vm588, %vm589
          %v591 = vsel %vm590, %v583, %v587
          %v592 = vand.u32 2147483647, %v567
          %vm593 = vcmp.eq.f32.partialorder %v592, 8.507059e+37
          %v594 = vand.u32 %v567, 2147483648
          %v595 = vor.u32 1.1754944e-38, %v594
          %v596 = vsel %vm593, %v595, %v591
          %v597 = vmul.f32 2.0, %v596
          %v598 = vmul.f32 %v556, %v556
          %v599 = vmul.f32 %v557, %v557
          %600 = vadd.xlane.f32.xlu0 %v598
          %v601 = vpop.xlane.xlu0 %600
          %602 = vadd.xlane.f32.xlu0 %v599
          %v603 = vpop.xlane.xlu0 %602
          %v604 = vsub.f32 1.0, %v601
          %v605 = vsub.f32 1.0, %v603
          %v606 = vmax.f32 %v604, 1e-15
          %v607 = vmax.f32 %v605, 1e-15
          %v608 = vrcp.pop %v606
          %v609 = vmul.f32 %v606, %v608
          %v610 = vsub.f32 1.0, %v609
          %v611 = vmul.f32 %v608, %v610
          %v612 = vadd.f32 %v608, %v611
          %vm613 = vweird.f32 %v606
          %vm614 = vweird.f32 %v608
          %vm615 = vmor %vm613, %vm614
          %v616 = vsel %vm615, %v608, %v612
          %v617 = vand.u32 2147483647, %v606
          %vm618 = vcmp.eq.f32.partialorder %v617, 8.507059e+37
          %v619 = vand.u32 %v606, 2147483648
          %v620 = vor.u32 1.1754944e-38, %v619
          %v621 = vsel %vm618, %v620, %v616
          %v622 = vmul.f32 2.0, %v621
          %v623 = vrcp.pop %v607
          %v624 = vmul.f32 %v607, %v623
          %v625 = vsub.f32 1.0, %v624
          %v626 = vmul.f32 %v623, %v625
          %v627 = vadd.f32 %v623, %v626
          %vm628 = vweird.f32 %v607
          %vm629 = vweird.f32 %v623
          %vm630 = vmor %vm628, %vm629
          %v631 = vsel %vm630, %v623, %v627
          %v632 = vand.u32 2147483647, %v607
          %vm633 = vcmp.eq.f32.partialorder %v632, 8.507059e+37
          %v634 = vand.u32 %v607, 2147483648
          %v635 = vor.u32 1.1754944e-38, %v634
          %v636 = vsel %vm633, %v635, %v631
          %v637 = vmul.f32 2.0, %v636
          %v638 = vsub.f32 %v582, 1.0
          %v639 = vsub.f32 %v597, 1.0
          %v640 = vmul.f32 %v638, 0.9
          %v641 = vmul.f32 %v639, 0.9
          %v642 = vsub.f32 %v622, 1.0
          %v643 = vsub.f32 %v637, 1.0
          %v644 = vmul.f32 %v642, 0.1
          %v645 = vmul.f32 %v643, 0.1
          %v646 = vadd.f32 %v640, %v644
          %v647 = vadd.f32 %v641, %v645
          %v648 = vmul.f32 %v582, 0.9
          %v649 = vmul.f32 %v597, 0.9
          %v650 = vmul.f32 %v648, %v554
          %v651 = vmul.f32 %v649, %v555
          %v652 = vmul.f32 %v622, 0.1
          %v653 = vmul.f32 %v637, 0.1
          %v654 = vmul.f32 %v652, %v556
          %v655 = vmul.f32 %v653, %v557
          %v656 = vadd.f32 %v650, %v654
          %v657 = vadd.f32 %v651, %v655
          %vm658 = vcmp.ge.f32.partialorder %v646, 0.0
          %vm659 = vcmp.ge.f32.partialorder %v647, 0.0
          %v660 = vsel %vm658, 1.0, -1.0
          %v661 = vsel %vm659, 1.0, -1.0
          %v662 = vand.u32 2147483647, %v646
          %v663 = vand.u32 2147483647, %v647
          %v664 = vmax.f32 %v662, 1e-10
          %v665 = vmax.f32 %v663, 1e-10
          %v666 = vmul.f32 %v660, %v664
          %v667 = vmul.f32 %v661, %v665
          %v668 = vrcp.pop %v666
          %v669 = vmul.f32 %v666, %v668
          %v670 = vsub.f32 1.0, %v669
          %v671 = vmul.f32 %v668, %v670
          %v672 = vadd.f32 %v668, %v671
          %vm673 = vweird.f32 %v666
          %vm674 = vweird.f32 %v668
          %vm675 = vmor %vm673, %vm674
          %v676 = vsel %vm675, %v668, %v672
          %v677 = vand.u32 2147483647, %v666
          %vm678 = vcmp.eq.f32.partialorder %v677, 8.507059e+37
          %v679 = vand.u32 %v666, 2147483648
          %v680 = vor.u32 1.1754944e-38, %v679
          %v681 = vsel %vm678, %v680, %v676
          %v682 = vmul.f32 %v656, %v681
          %v683 = vrcp.pop %v667
          %v684 = vmul.f32 %v667, %v683
          %v685 = vsub.f32 1.0, %v684
          %v686 = vmul.f32 %v683, %v685
          %v687 = vadd.f32 %v683, %v686
          %vm688 = vweird.f32 %v667
          %vm689 = vweird.f32 %v683
          %vm690 = vmor %vm688, %vm689
          %v691 = vsel %vm690, %v683, %v687
          %v692 = vand.u32 2147483647, %v667
          %vm693 = vcmp.eq.f32.partialorder %v692, 8.507059e+37
          %v694 = vand.u32 %v667, 2147483648
          %v695 = vor.u32 1.1754944e-38, %v694
          %v696 = vsel %vm693, %v695, %v691
          %v697 = vmul.f32 %v657, %v696
          %v698 = vmul.f32 %v682, %v682
          %v699 = vmul.f32 %v697, %v697
          %700 = vadd.xlane.f32.xlu0 %v698
          %v701 = vpop.xlane.xlu0 %700
          %702 = vadd.xlane.f32.xlu0 %v699
          %v703 = vpop.xlane.xlu0 %702
          %v704 = vmax.f32 %v701, 1e-15
          %v705 = vmax.f32 %v703, 1e-15
          %v706 = vrsqrt.pop %v704
          %v707 = vmul.f32 %v706, %v704
          %v708 = vmul.f32 %v707, %v706
          %v709 = vmul.f32 0.5, %v708
          %v710 = vsub.f32 1.5, %v709
          %v711 = vmul.f32 %v706, %v710
          %v712 = vmul.f32 %v704, %v711
          %vm713 = vcmp.eq.f32.partialorder %v704, inf
          %v714 = vsel %vm713, %v704, %v712
          %vm715 = vcmp.eq.f32.partialorder %v704, 0.0
          %v716 = vand.u32 %v704, 2147483648
          %v717 = vsel %vm715, %v716, %v714
          %v718 = vrsqrt.pop %v705
          %v719 = vmul.f32 %v718, %v705
          %v720 = vmul.f32 %v719, %v718
          %v721 = vmul.f32 0.5, %v720
          %v722 = vsub.f32 1.5, %v721
          %v723 = vmul.f32 %v718, %v722
          %v724 = vmul.f32 %v705, %v723
          %vm725 = vcmp.eq.f32.partialorder %v705, inf
          %v726 = vsel %vm725, %v705, %v724
          %vm727 = vcmp.eq.f32.partialorder %v705, 0.0
          %v728 = vand.u32 %v705, 2147483648
          %v729 = vsel %vm727, %v728, %v726
          %v730 = vmax.f32 %v717, -0.9999999
          %v731 = vmax.f32 %v729, -0.9999999
          %v732 = vmin.f32 %v730, 0.9999999
          %v733 = vmin.f32 %v731, 0.9999999
          %v734 = vadd.f32 %v732, 1.0
          %v735 = vlog2.pop %v734
          %v736 = vmul.f32 %v735, 0.6931472
          %v737 = vmul.f32 -0.5, %v732
          %v738 = vadd.f32 %v737, 1.0
          %v739 = vmul.f32 %v738, %v732
          %v740 = vand.u32 2147483647, %v732
          %vm741 = vcmp.lt.f32.partialorder %v740, 0.0004427343
          %v742 = vsel %vm741, %v739, %v736
          %v743 = vadd.f32 %v733, 1.0
          %v744 = vlog2.pop %v743
          %v745 = vmul.f32 %v744, 0.6931472
          %v746 = vmul.f32 -0.5, %v733
          %v747 = vadd.f32 %v746, 1.0
          %v748 = vmul.f32 %v747, %v733
          %v749 = vand.u32 2147483647, %v733
          %vm750 = vcmp.lt.f32.partialorder %v749, 0.0004427343
          %v751 = vsel %vm750, %v748, %v745
          %v752 = vsub.f32 0.0, %v732
          %v753 = vsub.f32 0.0, %v733
          %v754 = vadd.f32 %v752, 1.0
          %v755 = vlog2.pop %v754
          %v756 = vmul.f32 %v755, 0.6931472
          %v757 = vmul.f32 -0.5, %v752
          %v758 = vadd.f32 %v757, 1.0
          %v759 = vmul.f32 %v758, %v752
          %v760 = vand.u32 2147483647, %v752
          %vm761 = vcmp.lt.f32.partialorder %v760, 0.0004427343
          %v762 = vsel %vm761, %v759, %v756
          %v763 = vadd.f32 %v753, 1.0
          %v764 = vlog2.pop %v763
          %v765 = vmul.f32 %v764, 0.6931472
          %v766 = vmul.f32 -0.5, %v753
          %v767 = vadd.f32 %v766, 1.0
          %v768 = vmul.f32 %v767, %v753
          %v769 = vand.u32 2147483647, %v753
          %vm770 = vcmp.lt.f32.partialorder %v769, 0.0004427343
          %v771 = vsel %vm770, %v768, %v765
          %v772 = vsub.f32 %v742, %v762
          %v773 = vsub.f32 %v751, %v771
          %v774 = vmul.f32 %v772, 0.5
          %v775 = vmul.f32 %v773, 0.5
          %v776 = vmul.f32 %v774, 0.5
          %v777 = vmul.f32 %v775, 0.5
          %v778 = vtanh.pop %v776
          %v779 = vtanh.pop %v777
          %v780 = vmul.f32 %v778, %v682
          %v781 = vmul.f32 %v779, %v697
          %v782 = vrcp.pop %v717
          %v783 = vmul.f32 %v717, %v782
          %v784 = vsub.f32 1.0, %v783
          %v785 = vmul.f32 %v782, %v784
          %v786 = vadd.f32 %v782, %v785
          %vm787 = vweird.f32 %v717
          %vm788 = vweird.f32 %v782
          %vm789 = vmor %vm787, %vm788
          %v790 = vsel %vm789, %v782, %v786
          %v791 = vand.u32 2147483647, %v717
          %vm792 = vcmp.eq.f32.partialorder %v791, 8.507059e+37
          %v793 = vand.u32 %v717, 2147483648
          %v794 = vor.u32 1.1754944e-38, %v793
          %v795 = vsel %vm792, %v794, %v790
          %v796 = vmul.f32 %v780, %v795
          %v797 = vrcp.pop %v729
          %v798 = vmul.f32 %v729, %v797
          %v799 = vsub.f32 1.0, %v798
          %v800 = vmul.f32 %v797, %v799
          %v801 = vadd.f32 %v797, %v800
          %vm802 = vweird.f32 %v729
          %vm803 = vweird.f32 %v797
          %vm804 = vmor %vm802, %vm803
          %v805 = vsel %vm804, %v797, %v801
          %v806 = vand.u32 2147483647, %v729
          %vm807 = vcmp.eq.f32.partialorder %v806, 8.507059e+37
          %v808 = vand.u32 %v729, 2147483648
          %v809 = vor.u32 1.1754944e-38, %v808
          %v810 = vsel %vm807, %v809, %v805
          %v811 = vmul.f32 %v781, %v810
          %v812 = vmul.f32 %v796, %v796
          %v813 = vmul.f32 %v811, %v811
          %814 = vadd.xlane.f32.xlu0 %v812
          %v815 = vpop.xlane.xlu0 %814
          %816 = vadd.xlane.f32.xlu0 %v813
          %v817 = vpop.xlane.xlu0 %816
          %v818 = vmax.f32 %v815, 1e-15
          %v819 = vmax.f32 %v817, 1e-15
          %v820 = vrsqrt.pop %v818
          %v821 = vmul.f32 %v820, %v818
          %v822 = vmul.f32 %v821, %v820
          %v823 = vmul.f32 0.5, %v822
          %v824 = vsub.f32 1.5, %v823
          %v825 = vmul.f32 %v820, %v824
          %v826 = vmul.f32 %v818, %v825
          %vm827 = vcmp.eq.f32.partialorder %v818, inf
          %v828 = vsel %vm827, %v818, %v826
          %vm829 = vcmp.eq.f32.partialorder %v818, 0.0
          %v830 = vand.u32 %v818, 2147483648
          %v831 = vsel %vm829, %v830, %v828
          %v832 = vrsqrt.pop %v819
          %v833 = vmul.f32 %v832, %v819
          %v834 = vmul.f32 %v833, %v832
          %v835 = vmul.f32 0.5, %v834
          %v836 = vsub.f32 1.5, %v835
          %v837 = vmul.f32 %v832, %v836
          %v838 = vmul.f32 %v819, %v837
          %vm839 = vcmp.eq.f32.partialorder %v819, inf
          %v840 = vsel %vm839, %v819, %v838
          %vm841 = vcmp.eq.f32.partialorder %v819, 0.0
          %v842 = vand.u32 %v819, 2147483648
          %v843 = vsel %vm841, %v842, %v840
          %v844 = vrcp.pop %v831
          %v845 = vmul.f32 %v831, %v844
          %v846 = vsub.f32 1.0, %v845
          %v847 = vmul.f32 %v844, %v846
          %v848 = vadd.f32 %v844, %v847
          %vm849 = vweird.f32 %v831
          %vm850 = vweird.f32 %v844
          %vm851 = vmor %vm849, %vm850
          %v852 = vsel %vm851, %v844, %v848
          %v853 = vand.u32 2147483647, %v831
          %vm854 = vcmp.eq.f32.partialorder %v853, 8.507059e+37
          %v855 = vand.u32 %v831, 2147483648
          %v856 = vor.u32 1.1754944e-38, %v855
          %v857 = vsel %vm854, %v856, %v852
          %v858 = vmul.f32 0.99999, %v857
          %v859 = vrcp.pop %v843
          %v860 = vmul.f32 %v843, %v859
          %v861 = vsub.f32 1.0, %v860
          %v862 = vmul.f32 %v859, %v861
          %v863 = vadd.f32 %v859, %v862
          %vm864 = vweird.f32 %v843
          %vm865 = vweird.f32 %v859
          %vm866 = vmor %vm864, %vm865
          %v867 = vsel %vm866, %v859, %v863
          %v868 = vand.u32 2147483647, %v843
          %vm869 = vcmp.eq.f32.partialorder %v868, 8.507059e+37
          %v870 = vand.u32 %v843, 2147483648
          %v871 = vor.u32 1.1754944e-38, %v870
          %v872 = vsel %vm869, %v871, %v867
          %v873 = vmul.f32 0.99999, %v872
          %v874 = vmul.f32 %v796, %v858
          %v875 = vmul.f32 %v811, %v873
          %vm876 = vcmp.gt.f32.partialorder %v831, 0.99999
          %vm877 = vcmp.gt.f32.partialorder %v843, 0.99999
          %v878 = vsel %vm876, 1, 0
          %v879 = vsel %vm877, 1, 0
          %vm880 = vcmp.eq.s32.totalorder %v878, 1
          %vm881 = vcmp.eq.s32.totalorder %v879, 1
          %v882 = vsel %vm880, %v874, %v796
          %v883 = vsel %vm881, %v875, %v811
          %884 = vst [vmem:[%s252] sm:$0xff] %v882
          %885 = vst [vmem:[%s252 + $0x8] sm:$0xff] %v883
        $region44: #{run.6} parent=31 // pred_fallthru
          _
        %s886 = smul.u32 2, %s21
        %p887 = scmp.lt.s32.totalorder %s886, 3
        %s888 = scalar_select %p887, %s886, 3
        %s889 = smul.addr %s888, 8
        %s890 = scalar_lea.vmem %s3, %s889
        // Predicated region
        $region45: #{run.6} parent=31 // pred_check
          %p891 = pneg %p127
        $region46: #{run.6} parent=31 // pred_check_branch
          %893 = sbr.rel (%p891) target = $region48
        $region47: #{run.6} parent=31 // pred_region
          %s894 = smul.u32 2, %s21
        $region48: #{run.6} parent=31 // pred_fallthru
          _
      $region32: #{run.6} parent=5 // pred_fallthru
        _
      %p895 = scmp.le.s32.totalorder 2, %s12
      // Predicated region
      $region49: #{run.6} parent=5 // pred_check
        %p896 = pneg %p895
      $region50: #{run.6} parent=5 // pred_check_branch
        %898 = sbr.rel (%p896) target = $region52
      $region51: #{run.6} parent=5 // pred_region
        %s899 = ssub.s32 %s12, 2
        // Predicated region
        $region53: #{run.6} parent=51 // pred_check
          %p900 = pneg %p133
        $region54: #{run.6} parent=51 // pred_check_branch
          %902 = sbr.rel (%p900) target = $region56
        $region55: #{run.6} parent=51 // pred_region
          %s903 = smul.u32 2, %s23
          %p904 = scmp.lt.s32.totalorder %s903, 3
          %s905 = scalar_select %p904, %s903, 3
          %s906 = smul.addr %s905, 8
          %s907 = scalar_lea.vmem %s3, %s906
        $region56: #{run.6} parent=51 // pred_fallthru
          _
      $region52: #{run.6} parent=5 // pred_fallthru
        _
    $region6: #{run.6} parent=1 // loop_footer
      %s16 = sadd.s32 1, %s12
    $region7: #{run.6} parent=1 // loop_footer_branch
      %11 = sbr.rel target = $region3
    $region8: #{run.6} parent=1 // loop_exit
      _
    %908 = vsyncpa [#allocation4], 1
    %s909 = scalar_lea.sflag [#allocation4], 1
    %910 = vsyncpa %s909, 1

</llo_original>
